<compile_context>
chip_gen: v7x
topology: tpu7x:2x2x1
jax: 0.10.0
libtpu: 0.0.40
codegen_flags: <defaults>
</compile_context>

<pallas_src>
import functools

import jax
import jax.numpy as jnp
from jax.experimental import pallas as pl
from jax.experimental.pallas import tpu as pltpu


def _critic_kernel(x_ref, w_ih_ref, w_mats_ref, vecs_ref, out_ref, e_ref, *,
                   n_process_block_iters, tanh_exploration, use_tanh):
    S, E, TB = x_ref.shape
    H = w_mats_ref.shape[1]

    # ---- weights (feature-major: PyTorch (out, in) layout used as-is) ----
    w_ih = w_ih_ref[...]                                   # [4H, E] bf16
    w_hh = w_mats_ref[0:4 * H, :]                          # [4H, H] f32
    w_q = w_mats_ref[4 * H:5 * H, :]                       # [H, H]
    w_r = w_mats_ref[5 * H:6 * H, :]                       # [H, H]
    w_d1 = w_mats_ref[6 * H:7 * H, :]                      # [H, H]

    # Loop-invariant column -> lane broadcasts, hoisted out of all loops.
    b_g = jnp.broadcast_to(vecs_ref[0:4 * H, :], (4 * H, TB))       # [4H, TB]
    b_q = jnp.broadcast_to(vecs_ref[4 * H:5 * H, :], (H, TB))       # [H, TB]
    b_r = jnp.broadcast_to(vecs_ref[5 * H:6 * H, :], (H, TB))       # [H, TB]
    v_b = jnp.broadcast_to(vecs_ref[7 * H:8 * H, :], (H, TB))       # [H, TB]
    b_d1 = vecs_ref[6 * H:7 * H, :]                        # [H, 1] (used once)
    w_d2 = vecs_ref[8 * H:9 * H, :]                        # [H, 1]
    b_d2 = vecs_ref[9 * H:9 * H + 1, :]                    # [1, 1]

    # ---- LSTM recurrence (zero init state, PyTorch i,f,g,o gate order) ----
    # project_ref (Conv1d(H,H,1) == per-position Linear) is fused in, so the
    # only S-scaling buffer is e_ref [S, H, TB].
    def step(t, carry):
        h, c = carry
        gates = (jnp.dot(w_ih, x_ref[t], preferred_element_type=jnp.float32)
                 + jnp.dot(w_hh, h, preferred_element_type=jnp.float32)
                 + b_g)                                    # [4H, TB]
        i_g = jax.nn.sigmoid(gates[0:H, :])
        f_g = jax.nn.sigmoid(gates[H:2 * H, :])
        g_g = jnp.tanh(gates[2 * H:3 * H, :])
        o_g = jax.nn.sigmoid(gates[3 * H:4 * H, :])
        c_new = f_g * c + i_g * g_g
        h_new = o_g * jnp.tanh(c_new)
        e_ref[t] = (jnp.dot(w_r, h_new, preferred_element_type=jnp.float32)
                    + b_r)                                 # [H, TB]
        return h_new, c_new

    h0 = jnp.zeros((H, TB), jnp.float32)
    c0 = jnp.zeros((H, TB), jnp.float32)
    lstm_unroll = S if S <= 16 else 8          # cap unroll for long sourceL
    h_last, _ = jax.lax.fori_loop(0, S, step, (h0, c0), unroll=lstm_unroll)

    # ---- Attention process block (softmax over sourceL) ----
    state = h_last                                         # enc_h_t[-1]: [H, TB]
    for _ in range(n_process_block_iters):
        e3 = e_ref[...]                                    # [S, H, TB]
        q = (jnp.dot(w_q, state, preferred_element_type=jnp.float32)
             + b_q)                                        # [H, TB]
        # u[s, b] = sum_h v[h] * tanh(q[h, b] + e[s, h, b])
        t = jnp.tanh(q[None, :, :] + e3)                   # [S, H, TB]
        u = jnp.sum(t * v_b[None, :, :], axis=1, keepdims=True)   # [S, 1, TB]
        if use_tanh:
            logits = tanh_exploration * jnp.tanh(u)
        else:
            logits = u
        # softmax over sourceL (legacy nn.Softmax() on [batch, sourceL] -> dim=1)
        m = jnp.max(logits, axis=0, keepdims=True)         # [1, 1, TB]
        p = jnp.exp(logits - m)                            # [S, 1, TB]
        denom = jnp.sum(p, axis=0)                         # [1, TB]
        # bmm(ref, softmax(logits).unsqueeze(2)).squeeze(2)
        state = jnp.sum(e3 * p, axis=0) / denom            # [H, TB]

    # ---- Decoder: Linear -> ReLU -> Linear(H,1) ----
    d1 = jnp.maximum(
        jnp.dot(w_d1, state, preferred_element_type=jnp.float32) + b_d1,
        0.0)                                               # [H, TB]
    # H -> 1 projection as VPU multiply + sublane reduce (lane-dense [1, TB])
    out = jnp.sum(d1 * w_d2, axis=0, keepdims=True) + b_d2  # [1, TB]
    out_ref[...] = out.astype(out_ref.dtype)


def critic_forward(inputs, params, *, n_process_block_iters,
                   tanh_exploration, use_tanh):
    S, B, E = inputs.shape
    H = params["w_hh"].shape[1]

    # ---- batch tiling: batch lives on the 128-wide lane axis ----
    TB = 128
    B_pad = ((B + TB - 1) // TB) * TB
    grid_steps = B_pad // TB

    # ---- host-side layout prep ----
    x = inputs
    if B_pad != B:
        x = jnp.pad(x, ((0, 0), (0, B_pad - B), (0, 0)))
    x = jnp.transpose(x, (0, 2, 1)).astype(jnp.bfloat16)   # [S, E, B_pad]

    w_ih = params["w_ih"].astype(jnp.bfloat16)             # [4H, E]
    w_mats = jnp.concatenate(
        [params["w_hh"], params["w_q"], params["w_r"], params["w_d1"]],
        axis=0).astype(jnp.float32)                        # [7H, H]
    vecs = jnp.concatenate(
        [(params["b_ih"] + params["b_hh"]).reshape(4 * H, 1),
         params["b_q"].reshape(H, 1),
         params["b_r"].reshape(H, 1),
         params["b_d1"].reshape(H, 1),
         params["v"].reshape(H, 1),
         params["w_d2"].reshape(H, 1),
         params["b_d2"].reshape(1, 1),
         jnp.zeros((7, 1), jnp.float32)],                  # pad rows to x8
        axis=0).astype(jnp.float32)                        # [9H+8, 1]

    def full_spec(a):
        nd = a.ndim
        return pl.BlockSpec(a.shape, lambda b, _nd=nd: (0,) * _nd)

    in_specs = [pl.BlockSpec((S, E, TB), lambda b: (0, 0, b)),
                full_spec(w_ih), full_spec(w_mats), full_spec(vecs)]
    out_spec = pl.BlockSpec((1, TB), lambda b: (0, b))

    kernel = functools.partial(
        _critic_kernel,
        n_process_block_iters=n_process_block_iters,
        tanh_exploration=tanh_exploration,
        use_tanh=use_tanh)

    # ---- explicit VMEM budget: scratch + temporaries scale with sourceL ----
    vmem_est = int(2 * S * E * TB * 2          # double-buffered bf16 x block
                   + S * H * TB * 4            # e scratch
                   + 3 * S * H * TB * 4        # attention temporaries
                   + w_ih.size * 2 + w_mats.size * 4 + vecs.size * 4
                   + (4 << 20))
    vmem_limit = int(min(64 << 20, max(vmem_est, 32 << 20)))
    # TODO(synk): for extreme sourceL (S*H*TB*4 approaching VMEM) chunk the
    # attention pass over S instead of materializing full [S,H,TB] temporaries.

    flops = grid_steps * (
        2 * S * TB * (4 * H * (E + H) + H * H)                 # LSTM + project_ref
        + n_process_block_iters * (2 * TB * H * H + 6 * S * TB * H)
        + 2 * TB * H * (H + 1))                                # decoder
    transcendentals = grid_steps * (
        S * TB * 5 * H + n_process_block_iters * S * TB * (H + 2))
    bytes_accessed = int(
        x.size * 2 + B_pad * 4
        + grid_steps * (w_ih.size * 2 + w_mats.size * 4 + vecs.size * 4))

    out = pl.pallas_call(
        kernel,
        out_shape=jax.ShapeDtypeStruct((1, B_pad), jnp.float32),
        grid=(grid_steps,),
        in_specs=in_specs,
        out_specs=out_spec,
        scratch_shapes=[pltpu.VMEM((S, H, TB), jnp.float32)],  # e = project_ref(enc)
        compiler_params=pltpu.CompilerParams(
            dimension_semantics=("parallel",),
            vmem_limit_bytes=vmem_limit),
        cost_estimate=pl.CostEstimate(
            flops=int(flops),
            transcendentals=int(transcendentals),
            bytes_accessed=bytes_accessed),
    )(x, w_ih, w_mats, vecs)
    return out[0, :B].reshape(B, 1)


def init_params(key, embedding_dim, hidden_dim):
    """Deterministic synthetic parameters with PyTorch-default-style shapes."""
    E, H = embedding_dim, hidden_dim
    ks = jax.random.split(key, 14)
    s_lstm = 1.0 / jnp.sqrt(H)
    s_lin = 1.0 / jnp.sqrt(H)

    def u(k, shape, s):
        return jax.random.uniform(k, shape, jnp.float32, -s, s)

    return {
        # nn.LSTM(E, H): gate order (i, f, g, o)
        "w_ih": u(ks[0], (4 * H, E), s_lstm),
        "w_hh": u(ks[1], (4 * H, H), s_lstm),
        "b_ih": u(ks[2], (1, 4 * H), s_lstm),
        "b_hh": u(ks[3], (1, 4 * H), s_lstm),
        # Attention: project_query Linear(H,H), project_ref Conv1d(H,H,1), v
        "w_q": u(ks[4], (H, H), s_lin),
        "b_q": u(ks[5], (1, H), s_lin),
        "w_r": u(ks[6], (H, H), s_lin),     # Conv1d weight [H,H,1] squeezed
        "b_r": u(ks[7], (1, H), s_lin),
        "v": u(ks[8], (1, H), s_lin),
        # decoder: Linear(H,H) -> ReLU -> Linear(H,1)
        "w_d1": u(ks[9], (H, H), s_lin),
        "b_d1": u(ks[10], (1, H), s_lin),
        "w_d2": u(ks[11], (1, H), s_lin),
        "b_d2": u(ks[12], (1, 1), s_lin),
    }


if __name__ == "__main__":
    embedding_dim = 16
    hidden_dim = 32
    sourceL = 8
    batch = 2
    n_process_block_iters = 3
    tanh_exploration = 10.0
    use_tanh = True

    key = jax.random.PRNGKey(0)
    k_in, k_p = jax.random.split(key)
    inputs = jax.random.normal(k_in, (sourceL, batch, embedding_dim),
                               jnp.float32)
    params = init_params(k_p, embedding_dim, hidden_dim)

    out = critic_forward(inputs, params,
                         n_process_block_iters=n_process_block_iters,
                         tanh_exploration=tanh_exploration,
                         use_tanh=use_tanh)
    out = jax.block_until_ready(out)
    assert out.shape == (batch, 1) and out.dtype == jnp.float32
    assert bool(jnp.all(jnp.isfinite(out)))
    print("KERNEL_OK")
</pallas_src>

<mosaic_0001>
module attributes {stable_mosaic.version = 11 : i64} {
  func.func @_critic_kernel(%arg0: i32, %arg1: memref<8x16x128xbf16, #tpu.memory_space<vmem>>, %arg2: memref<128x16xbf16, #tpu.memory_space<vmem>>, %arg3: memref<224x32xf32, #tpu.memory_space<vmem>>, %arg4: memref<296x1xf32, #tpu.memory_space<vmem>>, %arg5: memref<1x128xf32, #tpu.memory_space<vmem>>, %arg6: memref<8x32x128xf32, #tpu.memory_space<vmem>>) attributes {dimension_semantics = [#tpu.dimension_semantics<parallel>], iteration_bounds = array<i64: 1>, scalar_prefetch = 0 : i64, scratch_operands = 1 : i64, tpu.core_type = #tpu.core_type<tc>, window_params = [{transform_indices = @transform_0, window_bounds = array<i64: 8, 16, 128>}, {pipeline_mode = #tpu.pipeline_mode<synchronous>, transform_indices = @transform_1, window_bounds = array<i64: 128, 16>}, {pipeline_mode = #tpu.pipeline_mode<synchronous>, transform_indices = @transform_2, window_bounds = array<i64: 224, 32>}, {pipeline_mode = #tpu.pipeline_mode<synchronous>, transform_indices = @transform_3, window_bounds = array<i64: 296, 1>}, {transform_indices = @transform_4, window_bounds = array<i64: 1, 128>}]} {
    %c0 = arith.constant 0 : index
    %c0_0 = arith.constant 0 : index
    %0 = vector.load %arg2[%c0, %c0_0] : memref<128x16xbf16, #tpu.memory_space<vmem>>, vector<128x16xbf16>
    %c0_1 = arith.constant 0 : index
    %c0_2 = arith.constant 0 : index
    %1 = vector.load %arg3[%c0_1, %c0_2] : memref<224x32xf32, #tpu.memory_space<vmem>>, vector<128x32xf32>
    %c128 = arith.constant 128 : index
    %c0_3 = arith.constant 0 : index
    %2 = vector.load %arg3[%c128, %c0_3] : memref<224x32xf32, #tpu.memory_space<vmem>>, vector<32x32xf32>
    %c160 = arith.constant 160 : index
    %c0_4 = arith.constant 0 : index
    %3 = vector.load %arg3[%c160, %c0_4] : memref<224x32xf32, #tpu.memory_space<vmem>>, vector<32x32xf32>
    %c192 = arith.constant 192 : index
    %c0_5 = arith.constant 0 : index
    %4 = vector.load %arg3[%c192, %c0_5] : memref<224x32xf32, #tpu.memory_space<vmem>>, vector<32x32xf32>
    %c0_6 = arith.constant 0 : index
    %c0_7 = arith.constant 0 : index
    %5 = vector.load %arg4[%c0_6, %c0_7] : memref<296x1xf32, #tpu.memory_space<vmem>>, vector<128x1xf32>
    %6 = vector.shape_cast %5 : vector<128x1xf32> to vector<128x1xf32>
    %7 = vector.broadcast %6 : vector<128x1xf32> to vector<128x128xf32>
    %c128_8 = arith.constant 128 : index
    %c0_9 = arith.constant 0 : index
    %8 = vector.load %arg4[%c128_8, %c0_9] : memref<296x1xf32, #tpu.memory_space<vmem>>, vector<32x1xf32>
    %9 = vector.shape_cast %8 : vector<32x1xf32> to vector<32x1xf32>
    %10 = vector.broadcast %9 : vector<32x1xf32> to vector<32x128xf32>
    %c160_10 = arith.constant 160 : index
    %c0_11 = arith.constant 0 : index
    %11 = vector.load %arg4[%c160_10, %c0_11] : memref<296x1xf32, #tpu.memory_space<vmem>>, vector<32x1xf32>
    %12 = vector.shape_cast %11 : vector<32x1xf32> to vector<32x1xf32>
    %13 = vector.broadcast %12 : vector<32x1xf32> to vector<32x128xf32>
    %c224 = arith.constant 224 : index
    %c0_12 = arith.constant 0 : index
    %14 = vector.load %arg4[%c224, %c0_12] : memref<296x1xf32, #tpu.memory_space<vmem>>, vector<32x1xf32>
    %15 = vector.shape_cast %14 : vector<32x1xf32> to vector<32x1xf32>
    %16 = vector.broadcast %15 : vector<32x1xf32> to vector<32x128xf32>
    %c192_13 = arith.constant 192 : index
    %c0_14 = arith.constant 0 : index
    %17 = vector.load %arg4[%c192_13, %c0_14] : memref<296x1xf32, #tpu.memory_space<vmem>>, vector<32x1xf32>
    %c256 = arith.constant 256 : index
    %c0_15 = arith.constant 0 : index
    %18 = vector.load %arg4[%c256, %c0_15] : memref<296x1xf32, #tpu.memory_space<vmem>>, vector<32x1xf32>
    %c288 = arith.constant 288 : index
    %c0_16 = arith.constant 0 : index
    %19 = vector.load %arg4[%c288, %c0_16] : memref<296x1xf32, #tpu.memory_space<vmem>>, vector<1x1xf32>
    %cst = arith.constant 0.000000e+00 : f32
    %20 = vector.broadcast %cst : f32 to vector<32x128xf32>
    %cst_17 = arith.constant 0.000000e+00 : f32
    %21 = vector.broadcast %cst_17 : f32 to vector<32x128xf32>
    %c0_i32 = arith.constant 0 : i32
    %22 = arith.index_cast %c0_i32 : i32 to index
    %c0_18 = arith.constant 0 : index
    %c0_19 = arith.constant 0 : index
    %23 = vector.load %arg1[%22, %c0_18, %c0_19] : memref<8x16x128xbf16, #tpu.memory_space<vmem>>, vector<1x16x128xbf16>
    %24 = vector.shape_cast %23 : vector<1x16x128xbf16> to vector<16x128xbf16>
    %cst_20 = arith.constant dense<0.000000e+00> : vector<128x128xf32>
    %25 = tpu.matmul %0, %24, %cst_20 {dimension_numbers = #tpu.dot_dimension_numbers<[1], [0], [0], [1], [0, 0, 1, 1], [], []>} : vector<128x16xbf16>, vector<16x128xbf16>, vector<128x128xf32> -> vector<128x128xf32>
    %cst_21 = arith.constant dense<0.000000e+00> : vector<128x128xf32>
    %26 = tpu.matmul %1, %20, %cst_21 {dimension_numbers = #tpu.dot_dimension_numbers<[1], [0], [0], [1], [0, 0, 1, 1], [], []>} : vector<128x32xf32>, vector<32x128xf32>, vector<128x128xf32> -> vector<128x128xf32>
    %27 = arith.addf %25, %26 : vector<128x128xf32>
    %28 = arith.addf %27, %7 : vector<128x128xf32>
    %29 = vector.extract_strided_slice %28 {offsets = [0, 0], sizes = [32, 128], strides = [1, 1]} : vector<128x128xf32> to vector<32x128xf32>
    %30 = arith.negf %29 : vector<32x128xf32>
    %31 = math.exp %30 : vector<32x128xf32>
    %cst_22 = arith.constant 1.000000e+00 : f32
    %32 = vector.broadcast %cst_22 : f32 to vector<32x128xf32>
    %33 = arith.addf %32, %31 : vector<32x128xf32>
    %34 = arith.divf %32, %33 : vector<32x128xf32>
    %35 = vector.extract_strided_slice %28 {offsets = [32, 0], sizes = [32, 128], strides = [1, 1]} : vector<128x128xf32> to vector<32x128xf32>
    %36 = arith.negf %35 : vector<32x128xf32>
    %37 = math.exp %36 : vector<32x128xf32>
    %cst_23 = arith.constant 1.000000e+00 : f32
    %38 = vector.broadcast %cst_23 : f32 to vector<32x128xf32>
    %39 = arith.addf %38, %37 : vector<32x128xf32>
    %40 = arith.divf %38, %39 : vector<32x128xf32>
    %41 = vector.extract_strided_slice %28 {offsets = [64, 0], sizes = [32, 128], strides = [1, 1]} : vector<128x128xf32> to vector<32x128xf32>
    %42 = math.tanh %41 : vector<32x128xf32>
    %43 = vector.extract_strided_slice %28 {offsets = [96, 0], sizes = [32, 128], strides = [1, 1]} : vector<128x128xf32> to vector<32x128xf32>
    %44 = arith.negf %43 : vector<32x128xf32>
    %45 = math.exp %44 : vector<32x128xf32>
    %cst_24 = arith.constant 1.000000e+00 : f32
    %46 = vector.broadcast %cst_24 : f32 to vector<32x128xf32>
    %47 = arith.addf %46, %45 : vector<32x128xf32>
    %48 = arith.divf %46, %47 : vector<32x128xf32>
    %49 = arith.mulf %40, %21 : vector<32x128xf32>
    %50 = arith.mulf %34, %42 : vector<32x128xf32>
    %51 = arith.addf %49, %50 : vector<32x128xf32>
    %52 = math.tanh %51 : vector<32x128xf32>
    %53 = arith.mulf %48, %52 : vector<32x128xf32>
    %cst_25 = arith.constant dense<0.000000e+00> : vector<32x128xf32>
    %54 = tpu.matmul %3, %53, %cst_25 {dimension_numbers = #tpu.dot_dimension_numbers<[1], [0], [0], [1], [0, 0, 1, 1], [], []>} : vector<32x32xf32>, vector<32x128xf32>, vector<32x128xf32> -> vector<32x128xf32>
    %55 = arith.addf %54, %13 : vector<32x128xf32>
    %56 = arith.index_cast %c0_i32 : i32 to index
    %c0_26 = arith.constant 0 : index
    %c0_27 = arith.constant 0 : index
    %57 = vector.load %arg6[%56, %c0_26, %c0_27] : memref<8x32x128xf32, #tpu.memory_space<vmem>>, vector<1x32x128xf32>
    %58 = vector.shape_cast %57 : vector<1x32x128xf32> to vector<32x128xf32>
    %59 = vector.shape_cast %55 : vector<32x128xf32> to vector<1x32x128xf32>
    tpu.vector_store %arg6[%56, %c0_26, %c0_27], %59 {strides = array<i32>} : memref<8x32x128xf32, #tpu.memory_space<vmem>>, vector<1x32x128xf32>,
    %c1_i32 = arith.constant 1 : i32
    %60 = arith.index_cast %c1_i32 : i32 to index
    %c0_28 = arith.constant 0 : index
    %c0_29 = arith.constant 0 : index
    %61 = vector.load %arg1[%60, %c0_28, %c0_29] : memref<8x16x128xbf16, #tpu.memory_space<vmem>>, vector<1x16x128xbf16>
    %62 = vector.shape_cast %61 : vector<1x16x128xbf16> to vector<16x128xbf16>
    %cst_30 = arith.constant dense<0.000000e+00> : vector<128x128xf32>
    %63 = tpu.matmul %0, %62, %cst_30 {dimension_numbers = #tpu.dot_dimension_numbers<[1], [0], [0], [1], [0, 0, 1, 1], [], []>} : vector<128x16xbf16>, vector<16x128xbf16>, vector<128x128xf32> -> vector<128x128xf32>
    %cst_31 = arith.constant dense<0.000000e+00> : vector<128x128xf32>
    %64 = tpu.matmul %1, %53, %cst_31 {dimension_numbers = #tpu.dot_dimension_numbers<[1], [0], [0], [1], [0, 0, 1, 1], [], []>} : vector<128x32xf32>, vector<32x128xf32>, vector<128x128xf32> -> vector<128x128xf32>
    %65 = arith.addf %63, %64 : vector<128x128xf32>
    %66 = arith.addf %65, %7 : vector<128x128xf32>
    %67 = vector.extract_strided_slice %66 {offsets = [0, 0], sizes = [32, 128], strides = [1, 1]} : vector<128x128xf32> to vector<32x128xf32>
    %68 = arith.negf %67 : vector<32x128xf32>
    %69 = math.exp %68 : vector<32x128xf32>
    %cst_32 = arith.constant 1.000000e+00 : f32
    %70 = vector.broadcast %cst_32 : f32 to vector<32x128xf32>
    %71 = arith.addf %70, %69 : vector<32x128xf32>
    %72 = arith.divf %70, %71 : vector<32x128xf32>
    %73 = vector.extract_strided_slice %66 {offsets = [32, 0], sizes = [32, 128], strides = [1, 1]} : vector<128x128xf32> to vector<32x128xf32>
    %74 = arith.negf %73 : vector<32x128xf32>
    %75 = math.exp %74 : vector<32x128xf32>
    %cst_33 = arith.constant 1.000000e+00 : f32
    %76 = vector.broadcast %cst_33 : f32 to vector<32x128xf32>
    %77 = arith.addf %76, %75 : vector<32x128xf32>
    %78 = arith.divf %76, %77 : vector<32x128xf32>
    %79 = vector.extract_strided_slice %66 {offsets = [64, 0], sizes = [32, 128], strides = [1, 1]} : vector<128x128xf32> to vector<32x128xf32>
    %80 = math.tanh %79 : vector<32x128xf32>
    %81 = vector.extract_strided_slice %66 {offsets = [96, 0], sizes = [32, 128], strides = [1, 1]} : vector<128x128xf32> to vector<32x128xf32>
    %82 = arith.negf %81 : vector<32x128xf32>
    %83 = math.exp %82 : vector<32x128xf32>
    %cst_34 = arith.constant 1.000000e+00 : f32
    %84 = vector.broadcast %cst_34 : f32 to vector<32x128xf32>
    %85 = arith.addf %84, %83 : vector<32x128xf32>
    %86 = arith.divf %84, %85 : vector<32x128xf32>
    %87 = arith.mulf %78, %51 : vector<32x128xf32>
    %88 = arith.mulf %72, %80 : vector<32x128xf32>
    %89 = arith.addf %87, %88 : vector<32x128xf32>
    %90 = math.tanh %89 : vector<32x128xf32>
    %91 = arith.mulf %86, %90 : vector<32x128xf32>
    %cst_35 = arith.constant dense<0.000000e+00> : vector<32x128xf32>
    %92 = tpu.matmul %3, %91, %cst_35 {dimension_numbers = #tpu.dot_dimension_numbers<[1], [0], [0], [1], [0, 0, 1, 1], [], []>} : vector<32x32xf32>, vector<32x128xf32>, vector<32x128xf32> -> vector<32x128xf32>
    %93 = arith.addf %92, %13 : vector<32x128xf32>
    %94 = arith.index_cast %c1_i32 : i32 to index
    %c0_36 = arith.constant 0 : index
    %c0_37 = arith.constant 0 : index
    %95 = vector.load %arg6[%94, %c0_36, %c0_37] : memref<8x32x128xf32, #tpu.memory_space<vmem>>, vector<1x32x128xf32>
    %96 = vector.shape_cast %95 : vector<1x32x128xf32> to vector<32x128xf32>
    %97 = vector.shape_cast %93 : vector<32x128xf32> to vector<1x32x128xf32>
    tpu.vector_store %arg6[%94, %c0_36, %c0_37], %97 {strides = array<i32>} : memref<8x32x128xf32, #tpu.memory_space<vmem>>, vector<1x32x128xf32>,
    %c2_i32 = arith.constant 2 : i32
    %98 = arith.index_cast %c2_i32 : i32 to index
    %c0_38 = arith.constant 0 : index
    %c0_39 = arith.constant 0 : index
    %99 = vector.load %arg1[%98, %c0_38, %c0_39] : memref<8x16x128xbf16, #tpu.memory_space<vmem>>, vector<1x16x128xbf16>
    %100 = vector.shape_cast %99 : vector<1x16x128xbf16> to vector<16x128xbf16>
    %cst_40 = arith.constant dense<0.000000e+00> : vector<128x128xf32>
    %101 = tpu.matmul %0, %100, %cst_40 {dimension_numbers = #tpu.dot_dimension_numbers<[1], [0], [0], [1], [0, 0, 1, 1], [], []>} : vector<128x16xbf16>, vector<16x128xbf16>, vector<128x128xf32> -> vector<128x128xf32>
    %cst_41 = arith.constant dense<0.000000e+00> : vector<128x128xf32>
    %102 = tpu.matmul %1, %91, %cst_41 {dimension_numbers = #tpu.dot_dimension_numbers<[1], [0], [0], [1], [0, 0, 1, 1], [], []>} : vector<128x32xf32>, vector<32x128xf32>, vector<128x128xf32> -> vector<128x128xf32>
    %103 = arith.addf %101, %102 : vector<128x128xf32>
    %104 = arith.addf %103, %7 : vector<128x128xf32>
    %105 = vector.extract_strided_slice %104 {offsets = [0, 0], sizes = [32, 128], strides = [1, 1]} : vector<128x128xf32> to vector<32x128xf32>
    %106 = arith.negf %105 : vector<32x128xf32>
    %107 = math.exp %106 : vector<32x128xf32>
    %cst_42 = arith.constant 1.000000e+00 : f32
    %108 = vector.broadcast %cst_42 : f32 to vector<32x128xf32>
    %109 = arith.addf %108, %107 : vector<32x128xf32>
    %110 = arith.divf %108, %109 : vector<32x128xf32>
    %111 = vector.extract_strided_slice %104 {offsets = [32, 0], sizes = [32, 128], strides = [1, 1]} : vector<128x128xf32> to vector<32x128xf32>
    %112 = arith.negf %111 : vector<32x128xf32>
    %113 = math.exp %112 : vector<32x128xf32>
    %cst_43 = arith.constant 1.000000e+00 : f32
    %114 = vector.broadcast %cst_43 : f32 to vector<32x128xf32>
    %115 = arith.addf %114, %113 : vector<32x128xf32>
    %116 = arith.divf %114, %115 : vector<32x128xf32>
    %117 = vector.extract_strided_slice %104 {offsets = [64, 0], sizes = [32, 128], strides = [1, 1]} : vector<128x128xf32> to vector<32x128xf32>
    %118 = math.tanh %117 : vector<32x128xf32>
    %119 = vector.extract_strided_slice %104 {offsets = [96, 0], sizes = [32, 128], strides = [1, 1]} : vector<128x128xf32> to vector<32x128xf32>
    %120 = arith.negf %119 : vector<32x128xf32>
    %121 = math.exp %120 : vector<32x128xf32>
    %cst_44 = arith.constant 1.000000e+00 : f32
    %122 = vector.broadcast %cst_44 : f32 to vector<32x128xf32>
    %123 = arith.addf %122, %121 : vector<32x128xf32>
    %124 = arith.divf %122, %123 : vector<32x128xf32>
    %125 = arith.mulf %116, %89 : vector<32x128xf32>
    %126 = arith.mulf %110, %118 : vector<32x128xf32>
    %127 = arith.addf %125, %126 : vector<32x128xf32>
    %128 = math.tanh %127 : vector<32x128xf32>
    %129 = arith.mulf %124, %128 : vector<32x128xf32>
    %cst_45 = arith.constant dense<0.000000e+00> : vector<32x128xf32>
    %130 = tpu.matmul %3, %129, %cst_45 {dimension_numbers = #tpu.dot_dimension_numbers<[1], [0], [0], [1], [0, 0, 1, 1], [], []>} : vector<32x32xf32>, vector<32x128xf32>, vector<32x128xf32> -> vector<32x128xf32>
    %131 = arith.addf %130, %13 : vector<32x128xf32>
    %132 = arith.index_cast %c2_i32 : i32 to index
    %c0_46 = arith.constant 0 : index
    %c0_47 = arith.constant 0 : index
    %133 = vector.load %arg6[%132, %c0_46, %c0_47] : memref<8x32x128xf32, #tpu.memory_space<vmem>>, vector<1x32x128xf32>
    %134 = vector.shape_cast %133 : vector<1x32x128xf32> to vector<32x128xf32>
    %135 = vector.shape_cast %131 : vector<32x128xf32> to vector<1x32x128xf32>
    tpu.vector_store %arg6[%132, %c0_46, %c0_47], %135 {strides = array<i32>} : memref<8x32x128xf32, #tpu.memory_space<vmem>>, vector<1x32x128xf32>,
    %c3_i32 = arith.constant 3 : i32
    %136 = arith.index_cast %c3_i32 : i32 to index
    %c0_48 = arith.constant 0 : index
    %c0_49 = arith.constant 0 : index
    %137 = vector.load %arg1[%136, %c0_48, %c0_49] : memref<8x16x128xbf16, #tpu.memory_space<vmem>>, vector<1x16x128xbf16>
    %138 = vector.shape_cast %137 : vector<1x16x128xbf16> to vector<16x128xbf16>
    %cst_50 = arith.constant dense<0.000000e+00> : vector<128x128xf32>
    %139 = tpu.matmul %0, %138, %cst_50 {dimension_numbers = #tpu.dot_dimension_numbers<[1], [0], [0], [1], [0, 0, 1, 1], [], []>} : vector<128x16xbf16>, vector<16x128xbf16>, vector<128x128xf32> -> vector<128x128xf32>
    %cst_51 = arith.constant dense<0.000000e+00> : vector<128x128xf32>
    %140 = tpu.matmul %1, %129, %cst_51 {dimension_numbers = #tpu.dot_dimension_numbers<[1], [0], [0], [1], [0, 0, 1, 1], [], []>} : vector<128x32xf32>, vector<32x128xf32>, vector<128x128xf32> -> vector<128x128xf32>
    %141 = arith.addf %139, %140 : vector<128x128xf32>
    %142 = arith.addf %141, %7 : vector<128x128xf32>
    %143 = vector.extract_strided_slice %142 {offsets = [0, 0], sizes = [32, 128], strides = [1, 1]} : vector<128x128xf32> to vector<32x128xf32>
    %144 = arith.negf %143 : vector<32x128xf32>
    %145 = math.exp %144 : vector<32x128xf32>
    %cst_52 = arith.constant 1.000000e+00 : f32
    %146 = vector.broadcast %cst_52 : f32 to vector<32x128xf32>
    %147 = arith.addf %146, %145 : vector<32x128xf32>
    %148 = arith.divf %146, %147 : vector<32x128xf32>
    %149 = vector.extract_strided_slice %142 {offsets = [32, 0], sizes = [32, 128], strides = [1, 1]} : vector<128x128xf32> to vector<32x128xf32>
    %150 = arith.negf %149 : vector<32x128xf32>
    %151 = math.exp %150 : vector<32x128xf32>
    %cst_53 = arith.constant 1.000000e+00 : f32
    %152 = vector.broadcast %cst_53 : f32 to vector<32x128xf32>
    %153 = arith.addf %152, %151 : vector<32x128xf32>
    %154 = arith.divf %152, %153 : vector<32x128xf32>
    %155 = vector.extract_strided_slice %142 {offsets = [64, 0], sizes = [32, 128], strides = [1, 1]} : vector<128x128xf32> to vector<32x128xf32>
    %156 = math.tanh %155 : vector<32x128xf32>
    %157 = vector.extract_strided_slice %142 {offsets = [96, 0], sizes = [32, 128], strides = [1, 1]} : vector<128x128xf32> to vector<32x128xf32>
    %158 = arith.negf %157 : vector<32x128xf32>
    %159 = math.exp %158 : vector<32x128xf32>
    %cst_54 = arith.constant 1.000000e+00 : f32
    %160 = vector.broadcast %cst_54 : f32 to vector<32x128xf32>
    %161 = arith.addf %160, %159 : vector<32x128xf32>
    %162 = arith.divf %160, %161 : vector<32x128xf32>
    %163 = arith.mulf %154, %127 : vector<32x128xf32>
    %164 = arith.mulf %148, %156 : vector<32x128xf32>
    %165 = arith.addf %163, %164 : vector<32x128xf32>
    %166 = math.tanh %165 : vector<32x128xf32>
    %167 = arith.mulf %162, %166 : vector<32x128xf32>
    %cst_55 = arith.constant dense<0.000000e+00> : vector<32x128xf32>
    %168 = tpu.matmul %3, %167, %cst_55 {dimension_numbers = #tpu.dot_dimension_numbers<[1], [0], [0], [1], [0, 0, 1, 1], [], []>} : vector<32x32xf32>, vector<32x128xf32>, vector<32x128xf32> -> vector<32x128xf32>
    %169 = arith.addf %168, %13 : vector<32x128xf32>
    %170 = arith.index_cast %c3_i32 : i32 to index
    %c0_56 = arith.constant 0 : index
    %c0_57 = arith.constant 0 : index
    %171 = vector.load %arg6[%170, %c0_56, %c0_57] : memref<8x32x128xf32, #tpu.memory_space<vmem>>, vector<1x32x128xf32>
    %172 = vector.shape_cast %171 : vector<1x32x128xf32> to vector<32x128xf32>
    %173 = vector.shape_cast %169 : vector<32x128xf32> to vector<1x32x128xf32>
    tpu.vector_store %arg6[%170, %c0_56, %c0_57], %173 {strides = array<i32>} : memref<8x32x128xf32, #tpu.memory_space<vmem>>, vector<1x32x128xf32>,
    %c4_i32 = arith.constant 4 : i32
    %174 = arith.index_cast %c4_i32 : i32 to index
    %c0_58 = arith.constant 0 : index
    %c0_59 = arith.constant 0 : index
    %175 = vector.load %arg1[%174, %c0_58, %c0_59] : memref<8x16x128xbf16, #tpu.memory_space<vmem>>, vector<1x16x128xbf16>
    %176 = vector.shape_cast %175 : vector<1x16x128xbf16> to vector<16x128xbf16>
    %cst_60 = arith.constant dense<0.000000e+00> : vector<128x128xf32>
    %177 = tpu.matmul %0, %176, %cst_60 {dimension_numbers = #tpu.dot_dimension_numbers<[1], [0], [0], [1], [0, 0, 1, 1], [], []>} : vector<128x16xbf16>, vector<16x128xbf16>, vector<128x128xf32> -> vector<128x128xf32>
    %cst_61 = arith.constant dense<0.000000e+00> : vector<128x128xf32>
    %178 = tpu.matmul %1, %167, %cst_61 {dimension_numbers = #tpu.dot_dimension_numbers<[1], [0], [0], [1], [0, 0, 1, 1], [], []>} : vector<128x32xf32>, vector<32x128xf32>, vector<128x128xf32> -> vector<128x128xf32>
    %179 = arith.addf %177, %178 : vector<128x128xf32>
    %180 = arith.addf %179, %7 : vector<128x128xf32>
    %181 = vector.extract_strided_slice %180 {offsets = [0, 0], sizes = [32, 128], strides = [1, 1]} : vector<128x128xf32> to vector<32x128xf32>
    %182 = arith.negf %181 : vector<32x128xf32>
    %183 = math.exp %182 : vector<32x128xf32>
    %cst_62 = arith.constant 1.000000e+00 : f32
    %184 = vector.broadcast %cst_62 : f32 to vector<32x128xf32>
    %185 = arith.addf %184, %183 : vector<32x128xf32>
    %186 = arith.divf %184, %185 : vector<32x128xf32>
    %187 = vector.extract_strided_slice %180 {offsets = [32, 0], sizes = [32, 128], strides = [1, 1]} : vector<128x128xf32> to vector<32x128xf32>
    %188 = arith.negf %187 : vector<32x128xf32>
    %189 = math.exp %188 : vector<32x128xf32>
    %cst_63 = arith.constant 1.000000e+00 : f32
    %190 = vector.broadcast %cst_63 : f32 to vector<32x128xf32>
    %191 = arith.addf %190, %189 : vector<32x128xf32>
    %192 = arith.divf %190, %191 : vector<32x128xf32>
    %193 = vector.extract_strided_slice %180 {offsets = [64, 0], sizes = [32, 128], strides = [1, 1]} : vector<128x128xf32> to vector<32x128xf32>
    %194 = math.tanh %193 : vector<32x128xf32>
    %195 = vector.extract_strided_slice %180 {offsets = [96, 0], sizes = [32, 128], strides = [1, 1]} : vector<128x128xf32> to vector<32x128xf32>
    %196 = arith.negf %195 : vector<32x128xf32>
    %197 = math.exp %196 : vector<32x128xf32>
    %cst_64 = arith.constant 1.000000e+00 : f32
    %198 = vector.broadcast %cst_64 : f32 to vector<32x128xf32>
    %199 = arith.addf %198, %197 : vector<32x128xf32>
    %200 = arith.divf %198, %199 : vector<32x128xf32>
    %201 = arith.mulf %192, %165 : vector<32x128xf32>
    %202 = arith.mulf %186, %194 : vector<32x128xf32>
    %203 = arith.addf %201, %202 : vector<32x128xf32>
    %204 = math.tanh %203 : vector<32x128xf32>
    %205 = arith.mulf %200, %204 : vector<32x128xf32>
    %cst_65 = arith.constant dense<0.000000e+00> : vector<32x128xf32>
    %206 = tpu.matmul %3, %205, %cst_65 {dimension_numbers = #tpu.dot_dimension_numbers<[1], [0], [0], [1], [0, 0, 1, 1], [], []>} : vector<32x32xf32>, vector<32x128xf32>, vector<32x128xf32> -> vector<32x128xf32>
    %207 = arith.addf %206, %13 : vector<32x128xf32>
    %208 = arith.index_cast %c4_i32 : i32 to index
    %c0_66 = arith.constant 0 : index
    %c0_67 = arith.constant 0 : index
    %209 = vector.load %arg6[%208, %c0_66, %c0_67] : memref<8x32x128xf32, #tpu.memory_space<vmem>>, vector<1x32x128xf32>
    %210 = vector.shape_cast %209 : vector<1x32x128xf32> to vector<32x128xf32>
    %211 = vector.shape_cast %207 : vector<32x128xf32> to vector<1x32x128xf32>
    tpu.vector_store %arg6[%208, %c0_66, %c0_67], %211 {strides = array<i32>} : memref<8x32x128xf32, #tpu.memory_space<vmem>>, vector<1x32x128xf32>,
    %c5_i32 = arith.constant 5 : i32
    %212 = arith.index_cast %c5_i32 : i32 to index
    %c0_68 = arith.constant 0 : index
    %c0_69 = arith.constant 0 : index
    %213 = vector.load %arg1[%212, %c0_68, %c0_69] : memref<8x16x128xbf16, #tpu.memory_space<vmem>>, vector<1x16x128xbf16>
    %214 = vector.shape_cast %213 : vector<1x16x128xbf16> to vector<16x128xbf16>
    %cst_70 = arith.constant dense<0.000000e+00> : vector<128x128xf32>
    %215 = tpu.matmul %0, %214, %cst_70 {dimension_numbers = #tpu.dot_dimension_numbers<[1], [0], [0], [1], [0, 0, 1, 1], [], []>} : vector<128x16xbf16>, vector<16x128xbf16>, vector<128x128xf32> -> vector<128x128xf32>
    %cst_71 = arith.constant dense<0.000000e+00> : vector<128x128xf32>
    %216 = tpu.matmul %1, %205, %cst_71 {dimension_numbers = #tpu.dot_dimension_numbers<[1], [0], [0], [1], [0, 0, 1, 1], [], []>} : vector<128x32xf32>, vector<32x128xf32>, vector<128x128xf32> -> vector<128x128xf32>
    %217 = arith.addf %215, %216 : vector<128x128xf32>
    %218 = arith.addf %217, %7 : vector<128x128xf32>
    %219 = vector.extract_strided_slice %218 {offsets = [0, 0], sizes = [32, 128], strides = [1, 1]} : vector<128x128xf32> to vector<32x128xf32>
    %220 = arith.negf %219 : vector<32x128xf32>
    %221 = math.exp %220 : vector<32x128xf32>
    %cst_72 = arith.constant 1.000000e+00 : f32
    %222 = vector.broadcast %cst_72 : f32 to vector<32x128xf32>
    %223 = arith.addf %222, %221 : vector<32x128xf32>
    %224 = arith.divf %222, %223 : vector<32x128xf32>
    %225 = vector.extract_strided_slice %218 {offsets = [32, 0], sizes = [32, 128], strides = [1, 1]} : vector<128x128xf32> to vector<32x128xf32>
    %226 = arith.negf %225 : vector<32x128xf32>
    %227 = math.exp %226 : vector<32x128xf32>
    %cst_73 = arith.constant 1.000000e+00 : f32
    %228 = vector.broadcast %cst_73 : f32 to vector<32x128xf32>
    %229 = arith.addf %228, %227 : vector<32x128xf32>
    %230 = arith.divf %228, %229 : vector<32x128xf32>
    %231 = vector.extract_strided_slice %218 {offsets = [64, 0], sizes = [32, 128], strides = [1, 1]} : vector<128x128xf32> to vector<32x128xf32>
    %232 = math.tanh %231 : vector<32x128xf32>
    %233 = vector.extract_strided_slice %218 {offsets = [96, 0], sizes = [32, 128], strides = [1, 1]} : vector<128x128xf32> to vector<32x128xf32>
    %234 = arith.negf %233 : vector<32x128xf32>
    %235 = math.exp %234 : vector<32x128xf32>
    %cst_74 = arith.constant 1.000000e+00 : f32
    %236 = vector.broadcast %cst_74 : f32 to vector<32x128xf32>
    %237 = arith.addf %236, %235 : vector<32x128xf32>
    %238 = arith.divf %236, %237 : vector<32x128xf32>
    %239 = arith.mulf %230, %203 : vector<32x128xf32>
    %240 = arith.mulf %224, %232 : vector<32x128xf32>
    %241 = arith.addf %239, %240 : vector<32x128xf32>
    %242 = math.tanh %241 : vector<32x128xf32>
    %243 = arith.mulf %238, %242 : vector<32x128xf32>
    %cst_75 = arith.constant dense<0.000000e+00> : vector<32x128xf32>
    %244 = tpu.matmul %3, %243, %cst_75 {dimension_numbers = #tpu.dot_dimension_numbers<[1], [0], [0], [1], [0, 0, 1, 1], [], []>} : vector<32x32xf32>, vector<32x128xf32>, vector<32x128xf32> -> vector<32x128xf32>
    %245 = arith.addf %244, %13 : vector<32x128xf32>
    %246 = arith.index_cast %c5_i32 : i32 to index
    %c0_76 = arith.constant 0 : index
    %c0_77 = arith.constant 0 : index
    %247 = vector.load %arg6[%246, %c0_76, %c0_77] : memref<8x32x128xf32, #tpu.memory_space<vmem>>, vector<1x32x128xf32>
    %248 = vector.shape_cast %247 : vector<1x32x128xf32> to vector<32x128xf32>
    %249 = vector.shape_cast %245 : vector<32x128xf32> to vector<1x32x128xf32>
    tpu.vector_store %arg6[%246, %c0_76, %c0_77], %249 {strides = array<i32>} : memref<8x32x128xf32, #tpu.memory_space<vmem>>, vector<1x32x128xf32>,
    %c6_i32 = arith.constant 6 : i32
    %250 = arith.index_cast %c6_i32 : i32 to index
    %c0_78 = arith.constant 0 : index
    %c0_79 = arith.constant 0 : index
    %251 = vector.load %arg1[%250, %c0_78, %c0_79] : memref<8x16x128xbf16, #tpu.memory_space<vmem>>, vector<1x16x128xbf16>
    %252 = vector.shape_cast %251 : vector<1x16x128xbf16> to vector<16x128xbf16>
    %cst_80 = arith.constant dense<0.000000e+00> : vector<128x128xf32>
    %253 = tpu.matmul %0, %252, %cst_80 {dimension_numbers = #tpu.dot_dimension_numbers<[1], [0], [0], [1], [0, 0, 1, 1], [], []>} : vector<128x16xbf16>, vector<16x128xbf16>, vector<128x128xf32> -> vector<128x128xf32>
    %cst_81 = arith.constant dense<0.000000e+00> : vector<128x128xf32>
    %254 = tpu.matmul %1, %243, %cst_81 {dimension_numbers = #tpu.dot_dimension_numbers<[1], [0], [0], [1], [0, 0, 1, 1], [], []>} : vector<128x32xf32>, vector<32x128xf32>, vector<128x128xf32> -> vector<128x128xf32>
    %255 = arith.addf %253, %254 : vector<128x128xf32>
    %256 = arith.addf %255, %7 : vector<128x128xf32>
    %257 = vector.extract_strided_slice %256 {offsets = [0, 0], sizes = [32, 128], strides = [1, 1]} : vector<128x128xf32> to vector<32x128xf32>
    %258 = arith.negf %257 : vector<32x128xf32>
    %259 = math.exp %258 : vector<32x128xf32>
    %cst_82 = arith.constant 1.000000e+00 : f32
    %260 = vector.broadcast %cst_82 : f32 to vector<32x128xf32>
    %261 = arith.addf %260, %259 : vector<32x128xf32>
    %262 = arith.divf %260, %261 : vector<32x128xf32>
    %263 = vector.extract_strided_slice %256 {offsets = [32, 0], sizes = [32, 128], strides = [1, 1]} : vector<128x128xf32> to vector<32x128xf32>
    %264 = arith.negf %263 : vector<32x128xf32>
    %265 = math.exp %264 : vector<32x128xf32>
    %cst_83 = arith.constant 1.000000e+00 : f32
    %266 = vector.broadcast %cst_83 : f32 to vector<32x128xf32>
    %267 = arith.addf %266, %265 : vector<32x128xf32>
    %268 = arith.divf %266, %267 : vector<32x128xf32>
    %269 = vector.extract_strided_slice %256 {offsets = [64, 0], sizes = [32, 128], strides = [1, 1]} : vector<128x128xf32> to vector<32x128xf32>
    %270 = math.tanh %269 : vector<32x128xf32>
    %271 = vector.extract_strided_slice %256 {offsets = [96, 0], sizes = [32, 128], strides = [1, 1]} : vector<128x128xf32> to vector<32x128xf32>
    %272 = arith.negf %271 : vector<32x128xf32>
    %273 = math.exp %272 : vector<32x128xf32>
    %cst_84 = arith.constant 1.000000e+00 : f32
    %274 = vector.broadcast %cst_84 : f32 to vector<32x128xf32>
    %275 = arith.addf %274, %273 : vector<32x128xf32>
    %276 = arith.divf %274, %275 : vector<32x128xf32>
    %277 = arith.mulf %268, %241 : vector<32x128xf32>
    %278 = arith.mulf %262, %270 : vector<32x128xf32>
    %279 = arith.addf %277, %278 : vector<32x128xf32>
    %280 = math.tanh %279 : vector<32x128xf32>
    %281 = arith.mulf %276, %280 : vector<32x128xf32>
    %cst_85 = arith.constant dense<0.000000e+00> : vector<32x128xf32>
    %282 = tpu.matmul %3, %281, %cst_85 {dimension_numbers = #tpu.dot_dimension_numbers<[1], [0], [0], [1], [0, 0, 1, 1], [], []>} : vector<32x32xf32>, vector<32x128xf32>, vector<32x128xf32> -> vector<32x128xf32>
    %283 = arith.addf %282, %13 : vector<32x128xf32>
    %284 = arith.index_cast %c6_i32 : i32 to index
    %c0_86 = arith.constant 0 : index
    %c0_87 = arith.constant 0 : index
    %285 = vector.load %arg6[%284, %c0_86, %c0_87] : memref<8x32x128xf32, #tpu.memory_space<vmem>>, vector<1x32x128xf32>
    %286 = vector.shape_cast %285 : vector<1x32x128xf32> to vector<32x128xf32>
    %287 = vector.shape_cast %283 : vector<32x128xf32> to vector<1x32x128xf32>
    tpu.vector_store %arg6[%284, %c0_86, %c0_87], %287 {strides = array<i32>} : memref<8x32x128xf32, #tpu.memory_space<vmem>>, vector<1x32x128xf32>,
    %c7_i32 = arith.constant 7 : i32
    %288 = arith.index_cast %c7_i32 : i32 to index
    %c0_88 = arith.constant 0 : index
    %c0_89 = arith.constant 0 : index
    %289 = vector.load %arg1[%288, %c0_88, %c0_89] : memref<8x16x128xbf16, #tpu.memory_space<vmem>>, vector<1x16x128xbf16>
    %290 = vector.shape_cast %289 : vector<1x16x128xbf16> to vector<16x128xbf16>
    %cst_90 = arith.constant dense<0.000000e+00> : vector<128x128xf32>
    %291 = tpu.matmul %0, %290, %cst_90 {dimension_numbers = #tpu.dot_dimension_numbers<[1], [0], [0], [1], [0, 0, 1, 1], [], []>} : vector<128x16xbf16>, vector<16x128xbf16>, vector<128x128xf32> -> vector<128x128xf32>
    %cst_91 = arith.constant dense<0.000000e+00> : vector<128x128xf32>
    %292 = tpu.matmul %1, %281, %cst_91 {dimension_numbers = #tpu.dot_dimension_numbers<[1], [0], [0], [1], [0, 0, 1, 1], [], []>} : vector<128x32xf32>, vector<32x128xf32>, vector<128x128xf32> -> vector<128x128xf32>
    %293 = arith.addf %291, %292 : vector<128x128xf32>
    %294 = arith.addf %293, %7 : vector<128x128xf32>
    %295 = vector.extract_strided_slice %294 {offsets = [0, 0], sizes = [32, 128], strides = [1, 1]} : vector<128x128xf32> to vector<32x128xf32>
    %296 = arith.negf %295 : vector<32x128xf32>
    %297 = math.exp %296 : vector<32x128xf32>
    %cst_92 = arith.constant 1.000000e+00 : f32
    %298 = vector.broadcast %cst_92 : f32 to vector<32x128xf32>
    %299 = arith.addf %298, %297 : vector<32x128xf32>
    %300 = arith.divf %298, %299 : vector<32x128xf32>
    %301 = vector.extract_strided_slice %294 {offsets = [32, 0], sizes = [32, 128], strides = [1, 1]} : vector<128x128xf32> to vector<32x128xf32>
    %302 = arith.negf %301 : vector<32x128xf32>
    %303 = math.exp %302 : vector<32x128xf32>
    %cst_93 = arith.constant 1.000000e+00 : f32
    %304 = vector.broadcast %cst_93 : f32 to vector<32x128xf32>
    %305 = arith.addf %304, %303 : vector<32x128xf32>
    %306 = arith.divf %304, %305 : vector<32x128xf32>
    %307 = vector.extract_strided_slice %294 {offsets = [64, 0], sizes = [32, 128], strides = [1, 1]} : vector<128x128xf32> to vector<32x128xf32>
    %308 = math.tanh %307 : vector<32x128xf32>
    %309 = vector.extract_strided_slice %294 {offsets = [96, 0], sizes = [32, 128], strides = [1, 1]} : vector<128x128xf32> to vector<32x128xf32>
    %310 = arith.negf %309 : vector<32x128xf32>
    %311 = math.exp %310 : vector<32x128xf32>
    %cst_94 = arith.constant 1.000000e+00 : f32
    %312 = vector.broadcast %cst_94 : f32 to vector<32x128xf32>
    %313 = arith.addf %312, %311 : vector<32x128xf32>
    %314 = arith.divf %312, %313 : vector<32x128xf32>
    %315 = arith.mulf %306, %279 : vector<32x128xf32>
    %316 = arith.mulf %300, %308 : vector<32x128xf32>
    %317 = arith.addf %315, %316 : vector<32x128xf32>
    %318 = math.tanh %317 : vector<32x128xf32>
    %319 = arith.mulf %314, %318 : vector<32x128xf32>
    %cst_95 = arith.constant dense<0.000000e+00> : vector<32x128xf32>
    %320 = tpu.matmul %3, %319, %cst_95 {dimension_numbers = #tpu.dot_dimension_numbers<[1], [0], [0], [1], [0, 0, 1, 1], [], []>} : vector<32x32xf32>, vector<32x128xf32>, vector<32x128xf32> -> vector<32x128xf32>
    %321 = arith.addf %320, %13 : vector<32x128xf32>
    %322 = arith.index_cast %c7_i32 : i32 to index
    %c0_96 = arith.constant 0 : index
    %c0_97 = arith.constant 0 : index
    %323 = vector.load %arg6[%322, %c0_96, %c0_97] : memref<8x32x128xf32, #tpu.memory_space<vmem>>, vector<1x32x128xf32>
    %324 = vector.shape_cast %323 : vector<1x32x128xf32> to vector<32x128xf32>
    %325 = vector.shape_cast %321 : vector<32x128xf32> to vector<1x32x128xf32>
    tpu.vector_store %arg6[%322, %c0_96, %c0_97], %325 {strides = array<i32>} : memref<8x32x128xf32, #tpu.memory_space<vmem>>, vector<1x32x128xf32>,
    %c8_i32 = arith.constant 8 : i32
    %c0_98 = arith.constant 0 : index
    %c0_99 = arith.constant 0 : index
    %c0_100 = arith.constant 0 : index
    %326 = vector.load %arg6[%c0_98, %c0_99, %c0_100] : memref<8x32x128xf32, #tpu.memory_space<vmem>>, vector<8x32x128xf32>
    %cst_101 = arith.constant dense<0.000000e+00> : vector<32x128xf32>
    %327 = tpu.matmul %2, %319, %cst_101 {dimension_numbers = #tpu.dot_dimension_numbers<[1], [0], [0], [1], [0, 0, 1, 1], [], []>} : vector<32x32xf32>, vector<32x128xf32>, vector<32x128xf32> -> vector<32x128xf32>
    %328 = arith.addf %327, %10 : vector<32x128xf32>
    %329 = vector.shape_cast %328 : vector<32x128xf32> to vector<1x32x128xf32>
    %330 = vector.broadcast %329 : vector<1x32x128xf32> to vector<8x32x128xf32>
    %331 = arith.addf %330, %326 : vector<8x32x128xf32>
    %332 = math.tanh %331 : vector<8x32x128xf32>
    %333 = vector.shape_cast %16 : vector<32x128xf32> to vector<1x32x128xf32>
    %334 = vector.broadcast %333 : vector<1x32x128xf32> to vector<8x32x128xf32>
    %335 = arith.mulf %332, %334 : vector<8x32x128xf32>
    %cst_102 = arith.constant dense<0.000000e+00> : vector<8x128xf32>
    %336 = vector.multi_reduction <add>, %335, %cst_102 [1] : vector<8x32x128xf32> to vector<8x128xf32>
    %337 = vector.shape_cast %336 : vector<8x128xf32> to vector<8x1x128xf32>
    %338 = math.tanh %337 : vector<8x1x128xf32>
    %cst_103 = arith.constant 1.000000e+01 : f32
    %339 = vector.broadcast %cst_103 : f32 to vector<8x1x128xf32>
    %340 = arith.mulf %339, %338 : vector<8x1x128xf32>
    %cst_104 = arith.constant dense<0xFF800000> : vector<1x128xf32>
    %341 = vector.multi_reduction <maximumf>, %340, %cst_104 [0] : vector<8x1x128xf32> to vector<1x128xf32>
    %342 = vector.shape_cast %341 : vector<1x128xf32> to vector<1x1x128xf32>
    %343 = vector.broadcast %342 : vector<1x1x128xf32> to vector<8x1x128xf32>
    %344 = arith.subf %340, %343 : vector<8x1x128xf32>
    %345 = math.exp %344 : vector<8x1x128xf32>
    %cst_105 = arith.constant dense<0.000000e+00> : vector<1x128xf32>
    %346 = vector.multi_reduction <add>, %345, %cst_105 [0] : vector<8x1x128xf32> to vector<1x128xf32>
    %347 = vector.broadcast %345 : vector<8x1x128xf32> to vector<8x32x128xf32>
    %348 = arith.mulf %326, %347 : vector<8x32x128xf32>
    %cst_106 = arith.constant dense<0.000000e+00> : vector<32x128xf32>
    %349 = vector.multi_reduction <add>, %348, %cst_106 [0] : vector<8x32x128xf32> to vector<32x128xf32>
    %350 = vector.broadcast %346 : vector<1x128xf32> to vector<32x128xf32>
    %351 = arith.divf %349, %350 : vector<32x128xf32>
    %c0_107 = arith.constant 0 : index
    %c0_108 = arith.constant 0 : index
    %c0_109 = arith.constant 0 : index
    %352 = vector.load %arg6[%c0_107, %c0_108, %c0_109] : memref<8x32x128xf32, #tpu.memory_space<vmem>>, vector<8x32x128xf32>
    %cst_110 = arith.constant dense<0.000000e+00> : vector<32x128xf32>
    %353 = tpu.matmul %2, %351, %cst_110 {dimension_numbers = #tpu.dot_dimension_numbers<[1], [0], [0], [1], [0, 0, 1, 1], [], []>} : vector<32x32xf32>, vector<32x128xf32>, vector<32x128xf32> -> vector<32x128xf32>
    %354 = arith.addf %353, %10 : vector<32x128xf32>
    %355 = vector.shape_cast %354 : vector<32x128xf32> to vector<1x32x128xf32>
    %356 = vector.broadcast %355 : vector<1x32x128xf32> to vector<8x32x128xf32>
    %357 = arith.addf %356, %352 : vector<8x32x128xf32>
    %358 = math.tanh %357 : vector<8x32x128xf32>
    %359 = vector.shape_cast %16 : vector<32x128xf32> to vector<1x32x128xf32>
    %360 = vector.broadcast %359 : vector<1x32x128xf32> to vector<8x32x128xf32>
    %361 = arith.mulf %358, %360 : vector<8x32x128xf32>
    %cst_111 = arith.constant dense<0.000000e+00> : vector<8x128xf32>
    %362 = vector.multi_reduction <add>, %361, %cst_111 [1] : vector<8x32x128xf32> to vector<8x128xf32>
    %363 = vector.shape_cast %362 : vector<8x128xf32> to vector<8x1x128xf32>
    %364 = math.tanh %363 : vector<8x1x128xf32>
    %cst_112 = arith.constant 1.000000e+01 : f32
    %365 = vector.broadcast %cst_112 : f32 to vector<8x1x128xf32>
    %366 = arith.mulf %365, %364 : vector<8x1x128xf32>
    %cst_113 = arith.constant dense<0xFF800000> : vector<1x128xf32>
    %367 = vector.multi_reduction <maximumf>, %366, %cst_113 [0] : vector<8x1x128xf32> to vector<1x128xf32>
    %368 = vector.shape_cast %367 : vector<1x128xf32> to vector<1x1x128xf32>
    %369 = vector.broadcast %368 : vector<1x1x128xf32> to vector<8x1x128xf32>
    %370 = arith.subf %366, %369 : vector<8x1x128xf32>
    %371 = math.exp %370 : vector<8x1x128xf32>
    %cst_114 = arith.constant dense<0.000000e+00> : vector<1x128xf32>
    %372 = vector.multi_reduction <add>, %371, %cst_114 [0] : vector<8x1x128xf32> to vector<1x128xf32>
    %373 = vector.broadcast %371 : vector<8x1x128xf32> to vector<8x32x128xf32>
    %374 = arith.mulf %352, %373 : vector<8x32x128xf32>
    %cst_115 = arith.constant dense<0.000000e+00> : vector<32x128xf32>
    %375 = vector.multi_reduction <add>, %374, %cst_115 [0] : vector<8x32x128xf32> to vector<32x128xf32>
    %376 = vector.broadcast %372 : vector<1x128xf32> to vector<32x128xf32>
    %377 = arith.divf %375, %376 : vector<32x128xf32>
    %c0_116 = arith.constant 0 : index
    %c0_117 = arith.constant 0 : index
    %c0_118 = arith.constant 0 : index
    %378 = vector.load %arg6[%c0_116, %c0_117, %c0_118] : memref<8x32x128xf32, #tpu.memory_space<vmem>>, vector<8x32x128xf32>
    %cst_119 = arith.constant dense<0.000000e+00> : vector<32x128xf32>
    %379 = tpu.matmul %2, %377, %cst_119 {dimension_numbers = #tpu.dot_dimension_numbers<[1], [0], [0], [1], [0, 0, 1, 1], [], []>} : vector<32x32xf32>, vector<32x128xf32>, vector<32x128xf32> -> vector<32x128xf32>
    %380 = arith.addf %379, %10 : vector<32x128xf32>
    %381 = vector.shape_cast %380 : vector<32x128xf32> to vector<1x32x128xf32>
    %382 = vector.broadcast %381 : vector<1x32x128xf32> to vector<8x32x128xf32>
    %383 = arith.addf %382, %378 : vector<8x32x128xf32>
    %384 = math.tanh %383 : vector<8x32x128xf32>
    %385 = vector.shape_cast %16 : vector<32x128xf32> to vector<1x32x128xf32>
    %386 = vector.broadcast %385 : vector<1x32x128xf32> to vector<8x32x128xf32>
    %387 = arith.mulf %384, %386 : vector<8x32x128xf32>
    %cst_120 = arith.constant dense<0.000000e+00> : vector<8x128xf32>
    %388 = vector.multi_reduction <add>, %387, %cst_120 [1] : vector<8x32x128xf32> to vector<8x128xf32>
    %389 = vector.shape_cast %388 : vector<8x128xf32> to vector<8x1x128xf32>
    %390 = math.tanh %389 : vector<8x1x128xf32>
    %cst_121 = arith.constant 1.000000e+01 : f32
    %391 = vector.broadcast %cst_121 : f32 to vector<8x1x128xf32>
    %392 = arith.mulf %391, %390 : vector<8x1x128xf32>
    %cst_122 = arith.constant dense<0xFF800000> : vector<1x128xf32>
    %393 = vector.multi_reduction <maximumf>, %392, %cst_122 [0] : vector<8x1x128xf32> to vector<1x128xf32>
    %394 = vector.shape_cast %393 : vector<1x128xf32> to vector<1x1x128xf32>
    %395 = vector.broadcast %394 : vector<1x1x128xf32> to vector<8x1x128xf32>
    %396 = arith.subf %392, %395 : vector<8x1x128xf32>
    %397 = math.exp %396 : vector<8x1x128xf32>
    %cst_123 = arith.constant dense<0.000000e+00> : vector<1x128xf32>
    %398 = vector.multi_reduction <add>, %397, %cst_123 [0] : vector<8x1x128xf32> to vector<1x128xf32>
    %399 = vector.broadcast %397 : vector<8x1x128xf32> to vector<8x32x128xf32>
    %400 = arith.mulf %378, %399 : vector<8x32x128xf32>
    %cst_124 = arith.constant dense<0.000000e+00> : vector<32x128xf32>
    %401 = vector.multi_reduction <add>, %400, %cst_124 [0] : vector<8x32x128xf32> to vector<32x128xf32>
    %402 = vector.broadcast %398 : vector<1x128xf32> to vector<32x128xf32>
    %403 = arith.divf %401, %402 : vector<32x128xf32>
    %cst_125 = arith.constant dense<0.000000e+00> : vector<32x128xf32>
    %404 = tpu.matmul %4, %403, %cst_125 {dimension_numbers = #tpu.dot_dimension_numbers<[1], [0], [0], [1], [0, 0, 1, 1], [], []>} : vector<32x32xf32>, vector<32x128xf32>, vector<32x128xf32> -> vector<32x128xf32>
    %405 = vector.broadcast %17 : vector<32x1xf32> to vector<32x128xf32>
    %406 = arith.addf %404, %405 : vector<32x128xf32>
    %cst_126 = arith.constant 0.000000e+00 : f32
    %407 = vector.broadcast %cst_126 : f32 to vector<32x128xf32>
    %408 = arith.maximumf %406, %407 : vector<32x128xf32>
    %409 = vector.broadcast %18 : vector<32x1xf32> to vector<32x128xf32>
    %410 = arith.mulf %408, %409 : vector<32x128xf32>
    %cst_127 = arith.constant dense<0.000000e+00> : vector<128xf32>
    %411 = vector.multi_reduction <add>, %410, %cst_127 [0] : vector<32x128xf32> to vector<128xf32>
    %412 = vector.shape_cast %411 : vector<128xf32> to vector<1x128xf32>
    %413 = vector.broadcast %19 : vector<1x1xf32> to vector<1x128xf32>
    %414 = arith.addf %412, %413 : vector<1x128xf32>
    %c0_128 = arith.constant 0 : index
    %c0_129 = arith.constant 0 : index
    %415 = vector.load %arg5[%c0_128, %c0_129] : memref<1x128xf32, #tpu.memory_space<vmem>>, vector<1x128xf32>
    tpu.vector_store %arg5[%c0_128, %c0_129], %414 {strides = array<i32>} : memref<1x128xf32, #tpu.memory_space<vmem>>, vector<1x128xf32>,
    return
  }
  func.func @transform_0(%arg0: i32) -> (i32, i32, i32) {
    %c0_i32 = arith.constant 0 : i32
    %c0_i32_0 = arith.constant 0 : i32
    %c0_i32_1 = arith.constant 0 : i32
    return %c0_i32, %c0_i32_0, %arg0 : i32, i32, i32
  }
  func.func @transform_1(%arg0: i32) -> (i32, i32) {
    %c0_i32 = arith.constant 0 : i32
    %c0_i32_0 = arith.constant 0 : i32
    %c0_i32_1 = arith.constant 0 : i32
    return %c0_i32, %c0_i32_0 : i32, i32
  }
  func.func @transform_2(%arg0: i32) -> (i32, i32) {
    %c0_i32 = arith.constant 0 : i32
    %c0_i32_0 = arith.constant 0 : i32
    %c0_i32_1 = arith.constant 0 : i32
    return %c0_i32, %c0_i32_0 : i32, i32
  }
  func.func @transform_3(%arg0: i32) -> (i32, i32) {
    %c0_i32 = arith.constant 0 : i32
    %c0_i32_0 = arith.constant 0 : i32
    %c0_i32_1 = arith.constant 0 : i32
    return %c0_i32, %c0_i32_0 : i32, i32
  }
  func.func @transform_4(%arg0: i32) -> (i32, i32) {
    %c0_i32 = arith.constant 0 : i32
    %c0_i32_0 = arith.constant 0 : i32
    return %c0_i32, %arg0 : i32, i32
  }
}

</mosaic_0001>

<llo_original>
// kernel: tpu_custom_call.1
$region0: #{tpu_custom_call.1}
  #allocation0 [shape = 'u32[]', space=smem, size = 0x4, offset = 0x4, fixed_abs, tag = 'smem constant byte address 0x4 - core index']
  #allocation1 [shape = 'u32[144,128]{1,0:T(1,128)}', space=vmem, size = 0x12000, scoped, tag = 'internal scratch']
  #allocation2 [shape = 'f32[8,32,128]{2,1,0:T(8,128)}', space=vmem, size = 0x20000, scoped, tag = 'scratch operand']
  %s0 = inlined_call_operand.vmem [shape: bf16[8,16,128], index: 0, kind: input, shape index: {}]
  %s1 = inlined_call_operand.vmem [shape: bf16[128,16], index: 1, kind: input, shape index: {}]
  %s2 = inlined_call_operand.vmem [shape: f32[224,32], index: 2, kind: input, shape index: {}]
  %s3 = inlined_call_operand.vmem [shape: f32[296,1], index: 3, kind: input, shape index: {}]
  %s4 = inlined_call_operand.hbm [shape: f32[1,128], index: 4, kind: output, shape index: {}]
  %s5 = sld [smem:[#allocation0]]
  $region26: #{tpu_custom_call.1} parent=0
    _
  %s7 = ssub.s32 1, %s5
  %s8 = scalar_select 0, %s7, %s5
  $region1: #{tpu_custom_call.1} parent=0
    #allocation3 [shape = 'u8[512]{0}', space=vmem, size = 0x400, scoped, tag = 'output window, operand 0, single buffered']
    #allocation4 [shape = 's32[1]{0}', space=sflag, size = 0x4, scoped, tag = 'scoped memory for tpu_custom_call.1']
    %9 = vsyncpa [#allocation4], 0
    // Predicated region
    $region2: #{tpu_custom_call.1} parent=1 // pred_check
      _
    $region3: #{tpu_custom_call.1} parent=1 // pred_check_branch
      %11 = sbr.rel (0) target = $region5
    $region4: #{tpu_custom_call.1} parent=1 // pred_region
      _
    $region5: #{tpu_custom_call.1} parent=1 // pred_fallthru
      _
    // Predicated region
    $region6: #{tpu_custom_call.1} parent=1 // pred_check
      _
    $region7: #{tpu_custom_call.1} parent=1 // pred_check_branch
      %13 = sbr.rel (0) target = $region9
    $region8: #{tpu_custom_call.1} parent=1 // pred_region
      _
    $region9: #{tpu_custom_call.1} parent=1 // pred_fallthru
      _
    // Predicated region
    $region10: #{tpu_custom_call.1} parent=1 // pred_check
      _
    $region11: #{tpu_custom_call.1} parent=1 // pred_check_branch
      %15 = sbr.rel (0) target = $region13
    $region12: #{tpu_custom_call.1} parent=1 // pred_region
      _
    $region13: #{tpu_custom_call.1} parent=1 // pred_fallthru
      _
    // Predicated region
    $region14: #{tpu_custom_call.1} parent=1 // pred_check
      _
    $region15: #{tpu_custom_call.1} parent=1 // pred_check_branch
      %17 = sbr.rel (0) target = $region17
    $region16: #{tpu_custom_call.1} parent=1 // pred_region
      _
    $region17: #{tpu_custom_call.1} parent=1 // pred_fallthru
      _
    %v19 = vld [vmem:[%s1] sm:$0xf]
    %v20 = vld [vmem:[%s1 + $0x4] sm:$0xf]
    %v21 = vld [vmem:[%s1 + $0x8] sm:$0xf]
    %v22 = vld [vmem:[%s1 + $0xc] sm:$0xf]
    %v23 = vld [vmem:[%s1 + $0x10] sm:$0xf]
    %v24 = vld [vmem:[%s1 + $0x14] sm:$0xf]
    %v25 = vld [vmem:[%s1 + $0x18] sm:$0xf]
    %v26 = vld [vmem:[%s1 + $0x1c] sm:$0xf]
    %v27 = vld [vmem:[%s1 + $0x20] sm:$0xf]
    %v28 = vld [vmem:[%s1 + $0x24] sm:$0xf]
    %v29 = vld [vmem:[%s1 + $0x28] sm:$0xf]
    %v30 = vld [vmem:[%s1 + $0x2c] sm:$0xf]
    %v31 = vld [vmem:[%s1 + $0x30] sm:$0xf]
    %v32 = vld [vmem:[%s1 + $0x34] sm:$0xf]
    %v33 = vld [vmem:[%s1 + $0x38] sm:$0xf]
    %v34 = vld [vmem:[%s1 + $0x3c] sm:$0xf]
    %v35 = vld [vmem:[%s2] sm:$0xff]
    %v36 = vld [vmem:[%s2 + $0x8] sm:$0xff]
    %v37 = vld [vmem:[%s2 + $0x10] sm:$0xff]
    %v38 = vld [vmem:[%s2 + $0x18] sm:$0xff]
    %v39 = vld [vmem:[%s2 + $0x20] sm:$0xff]
    %v40 = vld [vmem:[%s2 + $0x28] sm:$0xff]
    %v41 = vld [vmem:[%s2 + $0x30] sm:$0xff]
    %v42 = vld [vmem:[%s2 + $0x38] sm:$0xff]
    %v43 = vld [vmem:[%s2 + $0x40] sm:$0xff]
    %v44 = vld [vmem:[%s2 + $0x48] sm:$0xff]
    %v45 = vld [vmem:[%s2 + $0x50] sm:$0xff]
    %v46 = vld [vmem:[%s2 + $0x58] sm:$0xff]
    %v47 = vld [vmem:[%s2 + $0x60] sm:$0xff]
    %v48 = vld [vmem:[%s2 + $0x68] sm:$0xff]
    %v49 = vld [vmem:[%s2 + $0x70] sm:$0xff]
    %v50 = vld [vmem:[%s2 + $0x78] sm:$0xff]
    %v51 = vld [vmem:[%s2 + $0x80] sm:$0xff]
    %v52 = vld [vmem:[%s2 + $0x88] sm:$0xff]
    %v53 = vld [vmem:[%s2 + $0x90] sm:$0xff]
    %v54 = vld [vmem:[%s2 + $0x98] sm:$0xff]
    %v55 = vld [vmem:[%s2 + $0xa0] sm:$0xff]
    %v56 = vld [vmem:[%s2 + $0xa8] sm:$0xff]
    %v57 = vld [vmem:[%s2 + $0xb0] sm:$0xff]
    %v58 = vld [vmem:[%s2 + $0xb8] sm:$0xff]
    %v59 = vld [vmem:[%s2 + $0xc0] sm:$0xff]
    %v60 = vld [vmem:[%s2 + $0xc8] sm:$0xff]
    %v61 = vld [vmem:[%s2 + $0xd0] sm:$0xff]
    %v62 = vld [vmem:[%s2 + $0xd8] sm:$0xff]
    %v63 = vld [vmem:[%s3] sm:$0xff]
    %v64 = vld [vmem:[%s3 + $0x8] sm:$0xff]
    %v65 = vld [vmem:[%s3 + $0x10] sm:$0xff]
    %v66 = vld [vmem:[%s3 + $0x18] sm:$0xff]
    %v67 = vld [vmem:[%s3 + $0x20] sm:$0xff]
    %v68 = vld [vmem:[%s3 + $0x28] sm:$0xff]
    %v69 = vld [vmem:[%s3 + $0x30] sm:$0xff]
    %v70 = vld [vmem:[%s3 + $0x38] sm:$0xff]
    %v71 = vld [vmem:[%s3 + $0x40] sm:$0xff]
    %v72 = vld [vmem:[%s3 + $0x48] sm:$0xff]
    %v73 = vld [vmem:[%s3 + $0x50] sm:$0xff]
    %v74 = vld [vmem:[%s3 + $0x58] sm:$0xff]
    %v75 = vld [vmem:[%s3 + $0x60] sm:$0xff]
    %v76 = vld [vmem:[%s3 + $0x68] sm:$0xff]
    %v77 = vld [vmem:[%s3 + $0x70] sm:$0xff]
    %v78 = vld [vmem:[%s3 + $0x78] sm:$0xff]
    %80 = vset.pattern.permute.xlu0 0
    %81 = vperm.xlu0 %80, %v63
    %v82 = vpop.permute.xlu0 %81
    %85 = vset.pattern.permute.xlu0 0
    %86 = vperm.xlu0 %85, %v64
    %v87 = vpop.permute.xlu0 %86
    %90 = vset.pattern.permute.xlu0 0
    %91 = vperm.xlu0 %90, %v65
    %v92 = vpop.permute.xlu0 %91
    %95 = vset.pattern.permute.xlu0 0
    %96 = vperm.xlu0 %95, %v66
    %v97 = vpop.permute.xlu0 %96
    %100 = vset.pattern.permute.xlu0 0
    %101 = vperm.xlu0 %100, %v67
    %v102 = vpop.permute.xlu0 %101
    %105 = vset.pattern.permute.xlu0 0
    %106 = vperm.xlu0 %105, %v68
    %v107 = vpop.permute.xlu0 %106
    %110 = vset.pattern.permute.xlu0 0
    %111 = vperm.xlu0 %110, %v69
    %v112 = vpop.permute.xlu0 %111
    %115 = vset.pattern.permute.xlu0 0
    %116 = vperm.xlu0 %115, %v70
    %v117 = vpop.permute.xlu0 %116
    %120 = vset.pattern.permute.xlu0 0
    %121 = vperm.xlu0 %120, %v71
    %v122 = vpop.permute.xlu0 %121
    %125 = vset.pattern.permute.xlu0 0
    %126 = vperm.xlu0 %125, %v72
    %v127 = vpop.permute.xlu0 %126
    %130 = vset.pattern.permute.xlu0 0
    %131 = vperm.xlu0 %130, %v73
    %v132 = vpop.permute.xlu0 %131
    %135 = vset.pattern.permute.xlu0 0
    %136 = vperm.xlu0 %135, %v74
    %v137 = vpop.permute.xlu0 %136
    %140 = vset.pattern.permute.xlu0 0
    %141 = vperm.xlu0 %140, %v75
    %v142 = vpop.permute.xlu0 %141
    %145 = vset.pattern.permute.xlu0 0
    %146 = vperm.xlu0 %145, %v76
    %v147 = vpop.permute.xlu0 %146
    %150 = vset.pattern.permute.xlu0 0
    %151 = vperm.xlu0 %150, %v77
    %v152 = vpop.permute.xlu0 %151
    %155 = vset.pattern.permute.xlu0 0
    %156 = vperm.xlu0 %155, %v78
    %v157 = vpop.permute.xlu0 %156
    %v159 = vld [vmem:[%s3 + $0x80] sm:$0xff]
    %v160 = vld [vmem:[%s3 + $0x88] sm:$0xff]
    %v161 = vld [vmem:[%s3 + $0x90] sm:$0xff]
    %v162 = vld [vmem:[%s3 + $0x98] sm:$0xff]
    %164 = vset.pattern.permute.xlu0 0
    %165 = vperm.xlu0 %164, %v159
    %v166 = vpop.permute.xlu0 %165
    %169 = vset.pattern.permute.xlu0 0
    %170 = vperm.xlu0 %169, %v160
    %v171 = vpop.permute.xlu0 %170
    %174 = vset.pattern.permute.xlu0 0
    %175 = vperm.xlu0 %174, %v161
    %v176 = vpop.permute.xlu0 %175
    %179 = vset.pattern.permute.xlu0 0
    %180 = vperm.xlu0 %179, %v162
    %v181 = vpop.permute.xlu0 %180
    %v183 = vld [vmem:[%s3 + $0xa0] sm:$0xff]
    %v184 = vld [vmem:[%s3 + $0xa8] sm:$0xff]
    %v185 = vld [vmem:[%s3 + $0xb0] sm:$0xff]
    %v186 = vld [vmem:[%s3 + $0xb8] sm:$0xff]
    %188 = vset.pattern.permute.xlu0 0
    %189 = vperm.xlu0 %188, %v183
    %v190 = vpop.permute.xlu0 %189
    %193 = vset.pattern.permute.xlu0 0
    %194 = vperm.xlu0 %193, %v184
    %v195 = vpop.permute.xlu0 %194
    %198 = vset.pattern.permute.xlu0 0
    %199 = vperm.xlu0 %198, %v185
    %v200 = vpop.permute.xlu0 %199
    %203 = vset.pattern.permute.xlu0 0
    %204 = vperm.xlu0 %203, %v186
    %v205 = vpop.permute.xlu0 %204
    %v207 = vld [vmem:[%s3 + $0xe0] sm:$0xff]
    %v208 = vld [vmem:[%s3 + $0xe8] sm:$0xff]
    %v209 = vld [vmem:[%s3 + $0xf0] sm:$0xff]
    %v210 = vld [vmem:[%s3 + $0xf8] sm:$0xff]
    %v211 = vld [vmem:[%s3 + $0xc0] sm:$0xff]
    %v212 = vld [vmem:[%s3 + $0xc8] sm:$0xff]
    %v213 = vld [vmem:[%s3 + $0xd0] sm:$0xff]
    %v214 = vld [vmem:[%s3 + $0xd8] sm:$0xff]
    %v215 = vld [vmem:[%s3 + $0x100] sm:$0xff]
    %v216 = vld [vmem:[%s3 + $0x108] sm:$0xff]
    %v217 = vld [vmem:[%s3 + $0x110] sm:$0xff]
    %v218 = vld [vmem:[%s3 + $0x118] sm:$0xff]
    %v219 = vld [vmem:[%s3 + $0x120] sm:$0x1]
    %v220 = vld [vmem:[%s0] sm:$0xf]
    %v221 = vld [vmem:[%s0 + $0x4] sm:$0xf]
    %vm222 = vcmask 261120
    %v224 = vsel %vm222, %v35, 0
    %v227 = vsel %vm222, %v36, 0
    %v230 = vsel %vm222, %v37, 0
    %v233 = vsel %vm222, %v38, 0
    %v236 = vsel %vm222, %v39, 0
    %v239 = vsel %vm222, %v40, 0
    %v242 = vsel %vm222, %v41, 0
    %v245 = vsel %vm222, %v42, 0
    %v248 = vsel %vm222, %v43, 0
    %v251 = vsel %vm222, %v44, 0
    %v254 = vsel %vm222, %v45, 0
    %v257 = vsel %vm222, %v46, 0
    %v260 = vsel %vm222, %v47, 0
    %v263 = vsel %vm222, %v48, 0
    %v266 = vsel %vm222, %v49, 0
    %v269 = vsel %vm222, %v50, 0
    %271 = vmatprep.subr.mxu0 0.0
    %272 = vmatpush1.msra.mxu0 0.0
    %273 = vmatprep.subr.mxu0 0.0
    %274 = vmatpush1.msra.mxu0 0.0
    %275 = vmatprep.subr.mxu0 0.0
    %276 = vmatpush1.msra.mxu0 0.0
    %277 = vmatprep.subr.mxu0 0.0
    %278 = vmatpush1.msra.mxu0 0.0
    %279 = vmatprep.subr.mxu0 0.0
    %280 = vmatpush1.msra.mxu0 0.0
    %281 = vmatprep.subr.mxu0 0.0
    %282 = vmatpush1.msra.mxu0 0.0
    %283 = vmatprep.subr.mxu0 0.0
    %284 = vmatpush1.msra.mxu0 0.0
    %285 = vmatprep.subr.mxu0 0.0
    %286 = vmatpush1.msra.mxu0 0.0
    %287 = vmatprep.subr.mxu0 0.0
    %288 = vmatpush1.msra.mxu0 0.0
    %289 = vmatprep.subr.mxu0 0.0
    %290 = vmatpush1.msra.mxu0 0.0
    %291 = vmatprep.subr.mxu0 0.0
    %292 = vmatpush1.msra.mxu0 0.0
    %293 = vmatprep.subr.mxu0 0.0
    %294 = vmatpush1.msra.mxu0 0.0
    %295 = vmatprep.subr.mxu0 0.0
    %296 = vmatpush1.msra.mxu0 0.0
    %297 = vmatprep.subr.mxu0 0.0
    %298 = vmatpush1.msra.mxu0 0.0
    %299 = vmatprep.subr.mxu0 0.0
    %300 = vmatpush1.msra.mxu0 0.0
    %301 = vmatprep.subr.mxu0 0.0
    %302 = vmatpush1.msra.mxu0 0.0
    %303 = vmatprep.subr.mxu0 0.0
    %304 = vmatpush1.msra.mxu0 0.0
    %305 = vmatprep.subr.mxu0 0.0
    %306 = vmatpush1.msra.mxu0 0.0
    %307 = vmatprep.subr.mxu0 0.0
    %308 = vmatpush1.msra.mxu0 0.0
    %309 = vmatprep.subr.mxu0 0.0
    %310 = vmatpush1.msra.mxu0 0.0
    %311 = vmatprep.subr.mxu0 0.0
    %312 = vmatpush1.msra.mxu0 0.0
    %313 = vmatprep.subr.mxu0 0.0
    %314 = vmatpush1.msra.mxu0 0.0
    %315 = vmatprep.subr.mxu0 0.0
    %316 = vmatpush1.msra.mxu0 0.0
    %317 = vmatprep.subr.mxu0 0.0
    %318 = vmatpush1.msra.mxu0 0.0
    %319 = vmatprep.subr.mxu0 0.0
    %320 = vmatpush1.msra.mxu0 0.0
    %321 = vmatprep.subr.mxu0 0.0
    %322 = vmatpush1.msra.mxu0 0.0
    %323 = vmatprep.subr.mxu0 0.0
    %324 = vmatpush1.msra.mxu0 0.0
    %325 = vmatprep.subr.mxu0 0.0
    %326 = vmatpush1.msra.mxu0 0.0
    %327 = vmatprep.subr.mxu0 0.0
    %328 = vmatpush1.msra.mxu0 0.0
    %329 = vmatprep.subr.mxu0 0.0
    %330 = vmatpush1.msra.mxu0 0.0
    %331 = vmatprep.subr.mxu0 0.0
    %332 = vmatpush1.msra.mxu0 0.0
    %333 = vmatprep.subr.mxu0 0.0
    %334 = vmatpush1.msra.mxu0 0.0
    %335 = vmatprep.mubr.f32.mxu0 0.0
    %336 = vmatmul.mubr.f32.gmra.mrb[0].mxu0 %v224
    %v337 = vpop.f32.mrb[0].mxu0
    %v338 = vadd.f32 0.0, %v337
    %v339 = vpop.f32.mrb[0].mxu0
    %340 = vmatprep.mubr.f32.mxu0 0.0
    %341 = vmatmul.mubr.f32.gmra.mrb[0].mxu0 %v227
    %v342 = vpop.f32.mrb[0].mxu0
    %v343 = vadd.f32 0.0, %v342
    %v344 = vpop.f32.mrb[0].mxu0
    %345 = vmatprep.mubr.f32.mxu0 0.0
    %346 = vmatmul.mubr.f32.gmra.mrb[0].mxu0 %v230
    %v347 = vpop.f32.mrb[0].mxu0
    %v348 = vadd.f32 0.0, %v347
    %v349 = vpop.f32.mrb[0].mxu0
    %350 = vmatprep.mubr.f32.mxu0 0.0
    %351 = vmatmul.mubr.f32.gmra.mrb[0].mxu0 %v233
    %v352 = vpop.f32.mrb[0].mxu0
    %v353 = vadd.f32 0.0, %v352
    %v354 = vpop.f32.mrb[0].mxu0
    %355 = vmatprep.mubr.f32.mxu0 0.0
    %356 = vmatmul.mubr.f32.gmra.mrb[0].mxu0 %v236
    %v357 = vpop.f32.mrb[0].mxu0
    %v358 = vadd.f32 0.0, %v357
    %v359 = vpop.f32.mrb[0].mxu0
    %360 = vmatprep.mubr.f32.mxu0 0.0
    %361 = vmatmul.mubr.f32.gmra.mrb[0].mxu0 %v239
    %v362 = vpop.f32.mrb[0].mxu0
    %v363 = vadd.f32 0.0, %v362
    %v364 = vpop.f32.mrb[0].mxu0
    %365 = vmatprep.mubr.f32.mxu0 0.0
    %366 = vmatmul.mubr.f32.gmra.mrb[0].mxu0 %v242
    %v367 = vpop.f32.mrb[0].mxu0
    %v368 = vadd.f32 0.0, %v367
    %v369 = vpop.f32.mrb[0].mxu0
    %370 = vmatprep.mubr.f32.mxu0 0.0
    %371 = vmatmul.mubr.f32.gmra.mrb[0].mxu0 %v245
    %v372 = vpop.f32.mrb[0].mxu0
    %v373 = vadd.f32 0.0, %v372
    %v374 = vpop.f32.mrb[0].mxu0
    %375 = vmatprep.mubr.f32.mxu0 0.0
    %376 = vmatmul.mubr.f32.gmra.mrb[0].mxu0 %v248
    %v377 = vpop.f32.mrb[0].mxu0
    %v378 = vadd.f32 0.0, %v377
    %v379 = vpop.f32.mrb[0].mxu0
    %380 = vmatprep.mubr.f32.mxu0 0.0
    %381 = vmatmul.mubr.f32.gmra.mrb[0].mxu0 %v251
    %v382 = vpop.f32.mrb[0].mxu0
    %v383 = vadd.f32 0.0, %v382
    %v384 = vpop.f32.mrb[0].mxu0
    %385 = vmatprep.mubr.f32.mxu0 0.0
    %386 = vmatmul.mubr.f32.gmra.mrb[0].mxu0 %v254
    %v387 = vpop.f32.mrb[0].mxu0
    %v388 = vadd.f32 0.0, %v387
    %v389 = vpop.f32.mrb[0].mxu0
    %390 = vmatprep.mubr.f32.mxu0 0.0
    %391 = vmatmul.mubr.f32.gmra.mrb[0].mxu0 %v257
    %v392 = vpop.f32.mrb[0].mxu0
    %v393 = vadd.f32 0.0, %v392
    %v394 = vpop.f32.mrb[0].mxu0
    %395 = vmatprep.mubr.f32.mxu0 0.0
    %396 = vmatmul.mubr.f32.gmra.mrb[0].mxu0 %v260
    %v397 = vpop.f32.mrb[0].mxu0
    %v398 = vadd.f32 0.0, %v397
    %v399 = vpop.f32.mrb[0].mxu0
    %400 = vmatprep.mubr.f32.mxu0 0.0
    %401 = vmatmul.mubr.f32.gmra.mrb[0].mxu0 %v263
    %v402 = vpop.f32.mrb[0].mxu0
    %v403 = vadd.f32 0.0, %v402
    %v404 = vpop.f32.mrb[0].mxu0
    %405 = vmatprep.mubr.f32.mxu0 0.0
    %406 = vmatmul.mubr.f32.gmra.mrb[0].mxu0 %v266
    %v407 = vpop.f32.mrb[0].mxu0
    %v408 = vadd.f32 0.0, %v407
    %v409 = vpop.f32.mrb[0].mxu0
    %410 = vmatprep.mubr.f32.mxu0 0.0
    %411 = vmatmul.mubr.f32.gmra.mrb[0].mxu0 %v269
    %v412 = vpop.f32.mrb[0].mxu0
    %v413 = vadd.f32 0.0, %v412
    %v414 = vpop.f32.mrb[0].mxu0
    %415 = vdwg.mxu0
    %v432 = vunpack.c.l.b16 %v19
    %v433 = vunpack.c.l.b16 %v20
    %v434 = vunpack.c.l.b16 %v21
    %v435 = vunpack.c.l.b16 %v22
    %v436 = vunpack.c.l.b16 %v23
    %v437 = vunpack.c.l.b16 %v24
    %v438 = vunpack.c.l.b16 %v25
    %v439 = vunpack.c.l.b16 %v26
    %v440 = vunpack.c.l.b16 %v27
    %v441 = vunpack.c.l.b16 %v28
    %v442 = vunpack.c.l.b16 %v29
    %v443 = vunpack.c.l.b16 %v30
    %v444 = vunpack.c.l.b16 %v31
    %v445 = vunpack.c.l.b16 %v32
    %v446 = vunpack.c.l.b16 %v33
    %v447 = vunpack.c.l.b16 %v34
    %v448 = vpack.c.b16 %v433, %v432
    %v449 = vpack.c.b16 %v435, %v434
    %v450 = vpack.c.b16 %v437, %v436
    %v451 = vpack.c.b16 %v439, %v438
    %v452 = vpack.c.b16 %v441, %v440
    %v453 = vpack.c.b16 %v443, %v442
    %v454 = vpack.c.b16 %v445, %v444
    %v455 = vpack.c.b16 %v447, %v446
    %v458 = vunpack.c.l.b16 %v220
    %v459 = vunpack.c.l.b16 %v221
    %v460 = vpack.c.b16 %v459, %v458
    %vm462 = vcmask 130048
    %v464 = vsel %vm462, %v448, 0
    %v467 = vsel %vm462, %v449, 0
    %v470 = vsel %vm462, %v450, 0
    %v473 = vsel %vm462, %v451, 0
    %v476 = vsel %vm462, %v452, 0
    %v479 = vsel %vm462, %v453, 0
    %v482 = vsel %vm462, %v454, 0
    %v485 = vsel %vm462, %v455, 0
    %487 = vmatprep.subr.bf16.mxu0 0
    %488 = vmatpush1.bf16.msra.mxu0 %v460
    %489 = vmatprep.subr.bf16.mxu0 0
    %490 = vmatpush1.bf16.msra.mxu0 0
    %491 = vmatprep.subr.bf16.mxu0 0
    %492 = vmatpush1.bf16.msra.mxu0 0
    %493 = vmatprep.subr.bf16.mxu0 0
    %494 = vmatpush1.bf16.msra.mxu0 0
    %495 = vmatprep.subr.bf16.mxu0 0
    %496 = vmatpush1.bf16.msra.mxu0 0
    %497 = vmatprep.subr.bf16.mxu0 0
    %498 = vmatpush1.bf16.msra.mxu0 0
    %499 = vmatprep.subr.bf16.mxu0 0
    %500 = vmatpush1.bf16.msra.mxu0 0
    %501 = vmatprep.subr.bf16.mxu0 0
    %502 = vmatpush1.bf16.msra.mxu0 0
    %503 = vmatprep.subr.bf16.mxu0 0
    %504 = vmatpush1.bf16.msra.mxu0 0
    %505 = vmatprep.subr.bf16.mxu0 0
    %506 = vmatpush1.bf16.msra.mxu0 0
    %507 = vmatprep.subr.bf16.mxu0 0
    %508 = vmatpush1.bf16.msra.mxu0 0
    %509 = vmatprep.subr.bf16.mxu0 0
    %510 = vmatpush1.bf16.msra.mxu0 0
    %511 = vmatprep.subr.bf16.mxu0 0
    %512 = vmatpush1.bf16.msra.mxu0 0
    %513 = vmatprep.subr.bf16.mxu0 0
    %514 = vmatpush1.bf16.msra.mxu0 0
    %515 = vmatprep.subr.bf16.mxu0 0
    %516 = vmatpush1.bf16.msra.mxu0 0
    %517 = vmatprep.subr.bf16.mxu0 0
    %518 = vmatpush1.bf16.msra.mxu0 0
    %519 = vmatprep.mubr.bf16.mxu0 0
    %520 = vmatmul.mubr.bf16.gmra.mrb[0].mxu0 %v464
    %v521 = vpop.f32.mrb[0].mxu0
    %v522 = vadd.f32 %v338, %v521
    %v523 = vpop.f32.mrb[0].mxu0
    %v524 = vpop.f32.mrb[0].mxu0
    %v525 = vadd.f32 %v343, %v524
    %v526 = vpop.f32.mrb[0].mxu0
    %527 = vmatprep.mubr.bf16.mxu0 0
    %528 = vmatmul.mubr.bf16.gmra.mrb[0].mxu0 %v467
    %v529 = vpop.f32.mrb[0].mxu0
    %v530 = vadd.f32 %v348, %v529
    %v531 = vpop.f32.mrb[0].mxu0
    %v532 = vpop.f32.mrb[0].mxu0
    %v533 = vadd.f32 %v353, %v532
    %v534 = vpop.f32.mrb[0].mxu0
    %535 = vmatprep.mubr.bf16.mxu0 0
    %536 = vmatmul.mubr.bf16.gmra.mrb[0].mxu0 %v470
    %v537 = vpop.f32.mrb[0].mxu0
    %v538 = vadd.f32 %v358, %v537
    %v539 = vpop.f32.mrb[0].mxu0
    %v540 = vpop.f32.mrb[0].mxu0
    %v541 = vadd.f32 %v363, %v540
    %v542 = vpop.f32.mrb[0].mxu0
    %543 = vmatprep.mubr.bf16.mxu0 0
    %544 = vmatmul.mubr.bf16.gmra.mrb[0].mxu0 %v473
    %v545 = vpop.f32.mrb[0].mxu0
    %v546 = vadd.f32 %v368, %v545
    %v547 = vpop.f32.mrb[0].mxu0
    %v548 = vpop.f32.mrb[0].mxu0
    %v549 = vadd.f32 %v373, %v548
    %v550 = vpop.f32.mrb[0].mxu0
    %551 = vmatprep.mubr.bf16.mxu0 0
    %552 = vmatmul.mubr.bf16.gmra.mrb[0].mxu0 %v476
    %v553 = vpop.f32.mrb[0].mxu0
    %v554 = vadd.f32 %v378, %v553
    %v555 = vpop.f32.mrb[0].mxu0
    %v556 = vpop.f32.mrb[0].mxu0
    %v557 = vadd.f32 %v383, %v556
    %v558 = vpop.f32.mrb[0].mxu0
    %559 = vmatprep.mubr.bf16.mxu0 0
    %560 = vmatmul.mubr.bf16.gmra.mrb[0].mxu0 %v479
    %v561 = vpop.f32.mrb[0].mxu0
    %v562 = vadd.f32 %v388, %v561
    %v563 = vpop.f32.mrb[0].mxu0
    %v564 = vpop.f32.mrb[0].mxu0
    %v565 = vadd.f32 %v393, %v564
    %v566 = vpop.f32.mrb[0].mxu0
    %567 = vmatprep.mubr.bf16.mxu0 0
    %568 = vmatmul.mubr.bf16.gmra.mrb[0].mxu0 %v482
    %v569 = vpop.f32.mrb[0].mxu0
    %v570 = vadd.f32 %v398, %v569
    %v571 = vpop.f32.mrb[0].mxu0
    %v572 = vpop.f32.mrb[0].mxu0
    %v573 = vadd.f32 %v403, %v572
    %v574 = vpop.f32.mrb[0].mxu0
    %575 = vmatprep.mubr.bf16.mxu0 0
    %576 = vmatmul.mubr.bf16.gmra.mrb[0].mxu0 %v485
    %v577 = vpop.f32.mrb[0].mxu0
    %v578 = vadd.f32 %v408, %v577
    %v579 = vpop.f32.mrb[0].mxu0
    %v580 = vpop.f32.mrb[0].mxu0
    %v581 = vadd.f32 %v413, %v580
    %v582 = vpop.f32.mrb[0].mxu0
    %583 = vdwg.mxu0
    %v584 = vadd.f32 %v522, %v82
    %v585 = vadd.f32 %v525, %v87
    %v586 = vadd.f32 %v530, %v92
    %v587 = vadd.f32 %v533, %v97
    %v588 = vadd.f32 %v538, %v102
    %v589 = vadd.f32 %v541, %v107
    %v590 = vadd.f32 %v546, %v112
    %v591 = vadd.f32 %v549, %v117
    %v592 = vadd.f32 %v554, %v122
    %v593 = vadd.f32 %v557, %v127
    %v594 = vadd.f32 %v562, %v132
    %v595 = vadd.f32 %v565, %v137
    %v596 = vadd.f32 %v570, %v142
    %v597 = vadd.f32 %v573, %v147
    %v598 = vadd.f32 %v578, %v152
    %v599 = vadd.f32 %v581, %v157
    %v600 = vxor.u32 %v584, 2147483648
    %v601 = vxor.u32 %v585, 2147483648
    %v602 = vxor.u32 %v586, 2147483648
    %v603 = vxor.u32 %v587, 2147483648
    %v604 = vmul.f32 %v600, 1.442695
    %v605 = vpow.pop %v604
    %v606 = vmul.f32 %v601, 1.442695
    %v607 = vpow.pop %v606
    %v608 = vmul.f32 %v602, 1.442695
    %v609 = vpow.pop %v608
    %v610 = vmul.f32 %v603, 1.442695
    %v611 = vpow.pop %v610
    %v612 = vadd.f32 %v605, 1.0
    %v613 = vadd.f32 %v607, 1.0
    %v614 = vadd.f32 %v609, 1.0
    %v615 = vadd.f32 %v611, 1.0
    %v616 = vrcp.pop %v612
    %v617 = vmul.f32 1.0, %v616
    %v618 = vrcp.pop %v613
    %v619 = vmul.f32 1.0, %v618
    %v620 = vrcp.pop %v614
    %v621 = vmul.f32 1.0, %v620
    %v622 = vrcp.pop %v615
    %v623 = vmul.f32 1.0, %v622
    %v624 = vxor.u32 %v588, 2147483648
    %v625 = vxor.u32 %v589, 2147483648
    %v626 = vxor.u32 %v590, 2147483648
    %v627 = vxor.u32 %v591, 2147483648
    %v628 = vmul.f32 %v624, 1.442695
    %v629 = vpow.pop %v628
    %v630 = vmul.f32 %v625, 1.442695
    %v631 = vpow.pop %v630
    %v632 = vmul.f32 %v626, 1.442695
    %v633 = vpow.pop %v632
    %v634 = vmul.f32 %v627, 1.442695
    %v635 = vpow.pop %v634
    %v636 = vadd.f32 %v629, 1.0
    %v637 = vadd.f32 %v631, 1.0
    %v638 = vadd.f32 %v633, 1.0
    %v639 = vadd.f32 %v635, 1.0
    %v640 = vrcp.pop %v636
    %v641 = vmul.f32 1.0, %v640
    %v642 = vrcp.pop %v637
    %v643 = vmul.f32 1.0, %v642
    %v644 = vrcp.pop %v638
    %v645 = vmul.f32 1.0, %v644
    %v646 = vrcp.pop %v639
    %v647 = vmul.f32 1.0, %v646
    %v648 = vtanh.pop %v592
    %v649 = vtanh.pop %v593
    %v650 = vtanh.pop %v594
    %v651 = vtanh.pop %v595
    %v652 = vxor.u32 %v596, 2147483648
    %v653 = vxor.u32 %v597, 2147483648
    %v654 = vxor.u32 %v598, 2147483648
    %v655 = vxor.u32 %v599, 2147483648
    %v656 = vmul.f32 %v652, 1.442695
    %v657 = vpow.pop %v656
    %v658 = vmul.f32 %v653, 1.442695
    %v659 = vpow.pop %v658
    %v660 = vmul.f32 %v654, 1.442695
    %v661 = vpow.pop %v660
    %v662 = vmul.f32 %v655, 1.442695
    %v663 = vpow.pop %v662
    %v664 = vadd.f32 %v657, 1.0
    %v665 = vadd.f32 %v659, 1.0
    %v666 = vadd.f32 %v661, 1.0
    %v667 = vadd.f32 %v663, 1.0
    %v668 = vrcp.pop %v664
    %v669 = vmul.f32 1.0, %v668
    %v670 = vrcp.pop %v665
    %v671 = vmul.f32 1.0, %v670
    %v672 = vrcp.pop %v666
    %v673 = vmul.f32 1.0, %v672
    %v674 = vrcp.pop %v667
    %v675 = vmul.f32 1.0, %v674
    %v676 = vmul.f32 %v641, 0.0
    %v677 = vmul.f32 %v643, 0.0
    %v678 = vmul.f32 %v645, 0.0
    %v679 = vmul.f32 %v647, 0.0
    %v680 = vmul.f32 %v617, %v648
    %v681 = vmul.f32 %v619, %v649
    %v682 = vmul.f32 %v621, %v650
    %v683 = vmul.f32 %v623, %v651
    %v684 = vadd.f32 %v676, %v680
    %v685 = vadd.f32 %v677, %v681
    %v686 = vadd.f32 %v678, %v682
    %v687 = vadd.f32 %v679, %v683
    %v688 = vtanh.pop %v684
    %v689 = vtanh.pop %v685
    %v690 = vtanh.pop %v686
    %v691 = vtanh.pop %v687
    %v692 = vmul.f32 %v669, %v688
    %v693 = vmul.f32 %v671, %v689
    %v694 = vmul.f32 %v673, %v690
    %v695 = vmul.f32 %v675, %v691
    %v697 = vsel %vm222, %v55, 0
    %v700 = vsel %vm222, %v56, 0
    %v703 = vsel %vm222, %v57, 0
    %v706 = vsel %vm222, %v58, 0
    %708 = vmatprep.subr.mxu0 0.0
    %709 = vmatpush1.msra.mxu0 %v692
    %710 = vmatprep.subr.mxu0 0.0
    %711 = vmatpush1.msra.mxu0 %v693
    %712 = vmatprep.subr.mxu0 0.0
    %713 = vmatpush1.msra.mxu0 %v694
    %714 = vmatprep.subr.mxu0 0.0
    %715 = vmatpush1.msra.mxu0 %v695
    %716 = vmatprep.subr.mxu0 0.0
    %717 = vmatpush1.msra.mxu0 0.0
    %718 = vmatprep.subr.mxu0 0.0
    %719 = vmatpush1.msra.mxu0 0.0
    %720 = vmatprep.subr.mxu0 0.0
    %721 = vmatpush1.msra.mxu0 0.0
    %722 = vmatprep.subr.mxu0 0.0
    %723 = vmatpush1.msra.mxu0 0.0
    %724 = vmatprep.subr.mxu0 0.0
    %725 = vmatpush1.msra.mxu0 0.0
    %726 = vmatprep.subr.mxu0 0.0
    %727 = vmatpush1.msra.mxu0 0.0
    %728 = vmatprep.subr.mxu0 0.0
    %729 = vmatpush1.msra.mxu0 0.0
    %730 = vmatprep.subr.mxu0 0.0
    %731 = vmatpush1.msra.mxu0 0.0
    %732 = vmatprep.subr.mxu0 0.0
    %733 = vmatpush1.msra.mxu0 0.0
    %734 = vmatprep.subr.mxu0 0.0
    %735 = vmatpush1.msra.mxu0 0.0
    %736 = vmatprep.subr.mxu0 0.0
    %737 = vmatpush1.msra.mxu0 0.0
    %738 = vmatprep.subr.mxu0 0.0
    %739 = vmatpush1.msra.mxu0 0.0
    %740 = vmatprep.subr.mxu0 0.0
    %741 = vmatpush1.msra.mxu0 0.0
    %742 = vmatprep.subr.mxu0 0.0
    %743 = vmatpush1.msra.mxu0 0.0
    %744 = vmatprep.subr.mxu0 0.0
    %745 = vmatpush1.msra.mxu0 0.0
    %746 = vmatprep.subr.mxu0 0.0
    %747 = vmatpush1.msra.mxu0 0.0
    %748 = vmatprep.subr.mxu0 0.0
    %749 = vmatpush1.msra.mxu0 0.0
    %750 = vmatprep.subr.mxu0 0.0
    %751 = vmatpush1.msra.mxu0 0.0
    %752 = vmatprep.subr.mxu0 0.0
    %753 = vmatpush1.msra.mxu0 0.0
    %754 = vmatprep.subr.mxu0 0.0
    %755 = vmatpush1.msra.mxu0 0.0
    %756 = vmatprep.subr.mxu0 0.0
    %757 = vmatpush1.msra.mxu0 0.0
    %758 = vmatprep.subr.mxu0 0.0
    %759 = vmatpush1.msra.mxu0 0.0
    %760 = vmatprep.subr.mxu0 0.0
    %761 = vmatpush1.msra.mxu0 0.0
    %762 = vmatprep.subr.mxu0 0.0
    %763 = vmatpush1.msra.mxu0 0.0
    %764 = vmatprep.subr.mxu0 0.0
    %765 = vmatpush1.msra.mxu0 0.0
    %766 = vmatprep.subr.mxu0 0.0
    %767 = vmatpush1.msra.mxu0 0.0
    %768 = vmatprep.subr.mxu0 0.0
    %769 = vmatpush1.msra.mxu0 0.0
    %770 = vmatprep.subr.mxu0 0.0
    %771 = vmatpush1.msra.mxu0 0.0
    %772 = vmatprep.mubr.f32.mxu0 0.0
    %773 = vmatmul.mubr.f32.gmra.mrb[0].mxu0 %v697
    %v774 = vpop.f32.mrb[0].mxu0
    %v775 = vadd.f32 %v190, %v774
    %v776 = vpop.f32.mrb[0].mxu0
    %777 = vmatprep.mubr.f32.mxu0 0.0
    %778 = vmatmul.mubr.f32.gmra.mrb[0].mxu0 %v700
    %v779 = vpop.f32.mrb[0].mxu0
    %v780 = vadd.f32 %v195, %v779
    %v781 = vpop.f32.mrb[0].mxu0
    %782 = vmatprep.mubr.f32.mxu0 0.0
    %783 = vmatmul.mubr.f32.gmra.mrb[0].mxu0 %v703
    %v784 = vpop.f32.mrb[0].mxu0
    %v785 = vadd.f32 %v200, %v784
    %v786 = vpop.f32.mrb[0].mxu0
    %787 = vmatprep.mubr.f32.mxu0 0.0
    %788 = vmatmul.mubr.f32.gmra.mrb[0].mxu0 %v706
    %v789 = vpop.f32.mrb[0].mxu0
    %v790 = vadd.f32 %v205, %v789
    %v791 = vpop.f32.mrb[0].mxu0
    %792 = vdwg.mxu0
    %793 = vst [vmem:[#allocation2] sm:$0xff] %v775
    %794 = vst [vmem:[#allocation2 + $0x8] sm:$0xff] %v780
    %795 = vst [vmem:[#allocation2 + $0x10] sm:$0xff] %v785
    %796 = vst [vmem:[#allocation2 + $0x18] sm:$0xff] %v790
    %s797 = scalar_lea.vmem %s0, 8
    %v798 = vld [vmem:[%s797] sm:$0xf]
    %v799 = vld [vmem:[%s797 + $0x4] sm:$0xf]
    %800 = vmatprep.subr.mxu0 0.0
    %801 = vmatpush1.msra.mxu0 %v692
    %802 = vmatprep.subr.mxu0 0.0
    %803 = vmatpush1.msra.mxu0 %v693
    %804 = vmatprep.subr.mxu0 0.0
    %805 = vmatpush1.msra.mxu0 %v694
    %806 = vmatprep.subr.mxu0 0.0
    %807 = vmatpush1.msra.mxu0 %v695
    %808 = vmatprep.subr.mxu0 0.0
    %809 = vmatpush1.msra.mxu0 0.0
    %810 = vmatprep.subr.mxu0 0.0
    %811 = vmatpush1.msra.mxu0 0.0
    %812 = vmatprep.subr.mxu0 0.0
    %813 = vmatpush1.msra.mxu0 0.0
    %814 = vmatprep.subr.mxu0 0.0
    %815 = vmatpush1.msra.mxu0 0.0
    %816 = vmatprep.subr.mxu0 0.0
    %817 = vmatpush1.msra.mxu0 0.0
    %818 = vmatprep.subr.mxu0 0.0
    %819 = vmatpush1.msra.mxu0 0.0
    %820 = vmatprep.subr.mxu0 0.0
    %821 = vmatpush1.msra.mxu0 0.0
    %822 = vmatprep.subr.mxu0 0.0
    %823 = vmatpush1.msra.mxu0 0.0
    %824 = vmatprep.subr.mxu0 0.0
    %825 = vmatpush1.msra.mxu0 0.0
    %826 = vmatprep.subr.mxu0 0.0
    %827 = vmatpush1.msra.mxu0 0.0
    %828 = vmatprep.subr.mxu0 0.0
    %829 = vmatpush1.msra.mxu0 0.0
    %830 = vmatprep.subr.mxu0 0.0
    %831 = vmatpush1.msra.mxu0 0.0
    %832 = vmatprep.subr.mxu0 0.0
    %833 = vmatpush1.msra.mxu0 0.0
    %834 = vmatprep.subr.mxu0 0.0
    %835 = vmatpush1.msra.mxu0 0.0
    %836 = vmatprep.subr.mxu0 0.0
    %837 = vmatpush1.msra.mxu0 0.0
    %838 = vmatprep.subr.mxu0 0.0
    %839 = vmatpush1.msra.mxu0 0.0
    %840 = vmatprep.subr.mxu0 0.0
    %841 = vmatpush1.msra.mxu0 0.0
    %842 = vmatprep.subr.mxu0 0.0
    %843 = vmatpush1.msra.mxu0 0.0
    %844 = vmatprep.subr.mxu0 0.0
    %845 = vmatpush1.msra.mxu0 0.0
    %846 = vmatprep.subr.mxu0 0.0
    %847 = vmatpush1.msra.mxu0 0.0
    %848 = vmatprep.subr.mxu0 0.0
    %849 = vmatpush1.msra.mxu0 0.0
    %850 = vmatprep.subr.mxu0 0.0
    %851 = vmatpush1.msra.mxu0 0.0
    %852 = vmatprep.subr.mxu0 0.0
    %853 = vmatpush1.msra.mxu0 0.0
    %854 = vmatprep.subr.mxu0 0.0
    %855 = vmatpush1.msra.mxu0 0.0
    %856 = vmatprep.subr.mxu0 0.0
    %857 = vmatpush1.msra.mxu0 0.0
    %858 = vmatprep.subr.mxu0 0.0
    %859 = vmatpush1.msra.mxu0 0.0
    %860 = vmatprep.subr.mxu0 0.0
    %861 = vmatpush1.msra.mxu0 0.0
    %862 = vmatprep.subr.mxu0 0.0
    %863 = vmatpush1.msra.mxu0 0.0
    %864 = vmatprep.mubr.f32.mxu0 0.0
    %865 = vmatmul.mubr.f32.gmra.mrb[0].mxu0 %v224
    %v866 = vpop.f32.mrb[0].mxu0
    %v867 = vadd.f32 0.0, %v866
    %v868 = vpop.f32.mrb[0].mxu0
    %869 = vmatprep.mubr.f32.mxu0 0.0
    %870 = vmatmul.mubr.f32.gmra.mrb[0].mxu0 %v227
    %v871 = vpop.f32.mrb[0].mxu0
    %v872 = vadd.f32 0.0, %v871
    %v873 = vpop.f32.mrb[0].mxu0
    %874 = vmatprep.mubr.f32.mxu0 0.0
    %875 = vmatmul.mubr.f32.gmra.mrb[0].mxu0 %v230
    %v876 = vpop.f32.mrb[0].mxu0
    %v877 = vadd.f32 0.0, %v876
    %v878 = vpop.f32.mrb[0].mxu0
    %879 = vmatprep.mubr.f32.mxu0 0.0
    %880 = vmatmul.mubr.f32.gmra.mrb[0].mxu0 %v233
    %v881 = vpop.f32.mrb[0].mxu0
    %v882 = vadd.f32 0.0, %v881
    %v883 = vpop.f32.mrb[0].mxu0
    %884 = vmatprep.mubr.f32.mxu0 0.0
    %885 = vmatmul.mubr.f32.gmra.mrb[0].mxu0 %v236
    %v886 = vpop.f32.mrb[0].mxu0
    %v887 = vadd.f32 0.0, %v886
    %v888 = vpop.f32.mrb[0].mxu0
    %889 = vmatprep.mubr.f32.mxu0 0.0
    %890 = vmatmul.mubr.f32.gmra.mrb[0].mxu0 %v239
    %v891 = vpop.f32.mrb[0].mxu0
    %v892 = vadd.f32 0.0, %v891
    %v893 = vpop.f32.mrb[0].mxu0
    %894 = vmatprep.mubr.f32.mxu0 0.0
    %895 = vmatmul.mubr.f32.gmra.mrb[0].mxu0 %v242
    %v896 = vpop.f32.mrb[0].mxu0
    %v897 = vadd.f32 0.0, %v896
    %v898 = vpop.f32.mrb[0].mxu0
    %899 = vmatprep.mubr.f32.mxu0 0.0
    %900 = vmatmul.mubr.f32.gmra.mrb[0].mxu0 %v245
    %v901 = vpop.f32.mrb[0].mxu0
    %v902 = vadd.f32 0.0, %v901
    %v903 = vpop.f32.mrb[0].mxu0
    %904 = vmatprep.mubr.f32.mxu0 0.0
    %905 = vmatmul.mubr.f32.gmra.mrb[0].mxu0 %v248
    %v906 = vpop.f32.mrb[0].mxu0
    %v907 = vadd.f32 0.0, %v906
    %v908 = vpop.f32.mrb[0].mxu0
    %909 = vmatprep.mubr.f32.mxu0 0.0
    %910 = vmatmul.mubr.f32.gmra.mrb[0].mxu0 %v251
    %v911 = vpop.f32.mrb[0].mxu0
    %v912 = vadd.f32 0.0, %v911
    %v913 = vpop.f32.mrb[0].mxu0
    %914 = vmatprep.mubr.f32.mxu0 0.0
    %915 = vmatmul.mubr.f32.gmra.mrb[0].mxu0 %v254
    %v916 = vpop.f32.mrb[0].mxu0
    %v917 = vadd.f32 0.0, %v916
    %v918 = vpop.f32.mrb[0].mxu0
    %919 = vmatprep.mubr.f32.mxu0 0.0
    %920 = vmatmul.mubr.f32.gmra.mrb[0].mxu0 %v257
    %v921 = vpop.f32.mrb[0].mxu0
    %v922 = vadd.f32 0.0, %v921
    %v923 = vpop.f32.mrb[0].mxu0
    %924 = vmatprep.mubr.f32.mxu0 0.0
    %925 = vmatmul.mubr.f32.gmra.mrb[0].mxu0 %v260
    %v926 = vpop.f32.mrb[0].mxu0
    %v927 = vadd.f32 0.0, %v926
    %v928 = vpop.f32.mrb[0].mxu0
    %929 = vmatprep.mubr.f32.mxu0 0.0
    %930 = vmatmul.mubr.f32.gmra.mrb[0].mxu0 %v263
    %v931 = vpop.f32.mrb[0].mxu0
    %v932 = vadd.f32 0.0, %v931
    %v933 = vpop.f32.mrb[0].mxu0
    %934 = vmatprep.mubr.f32.mxu0 0.0
    %935 = vmatmul.mubr.f32.gmra.mrb[0].mxu0 %v266
    %v936 = vpop.f32.mrb[0].mxu0
    %v937 = vadd.f32 0.0, %v936
    %v938 = vpop.f32.mrb[0].mxu0
    %939 = vmatprep.mubr.f32.mxu0 0.0
    %940 = vmatmul.mubr.f32.gmra.mrb[0].mxu0 %v269
    %v941 = vpop.f32.mrb[0].mxu0
    %v942 = vadd.f32 0.0, %v941
    %v943 = vpop.f32.mrb[0].mxu0
    %944 = vdwg.mxu0
    %v947 = vunpack.c.l.b16 %v798
    %v948 = vunpack.c.l.b16 %v799
    %v949 = vpack.c.b16 %v948, %v947
    %951 = vmatprep.subr.bf16.mxu0 0
    %952 = vmatpush1.bf16.msra.mxu0 %v949
    %953 = vmatprep.subr.bf16.mxu0 0
    %954 = vmatpush1.bf16.msra.mxu0 0
    %955 = vmatprep.subr.bf16.mxu0 0
    %956 = vmatpush1.bf16.msra.mxu0 0
    %957 = vmatprep.subr.bf16.mxu0 0
    %958 = vmatpush1.bf16.msra.mxu0 0
    %959 = vmatprep.subr.bf16.mxu0 0
    %960 = vmatpush1.bf16.msra.mxu0 0
    %961 = vmatprep.subr.bf16.mxu0 0
    %962 = vmatpush1.bf16.msra.mxu0 0
    %963 = vmatprep.subr.bf16.mxu0 0
    %964 = vmatpush1.bf16.msra.mxu0 0
    %965 = vmatprep.subr.bf16.mxu0 0
    %966 = vmatpush1.bf16.msra.mxu0 0
    %967 = vmatprep.subr.bf16.mxu0 0
    %968 = vmatpush1.bf16.msra.mxu0 0
    %969 = vmatprep.subr.bf16.mxu0 0
    %970 = vmatpush1.bf16.msra.mxu0 0
    %971 = vmatprep.subr.bf16.mxu0 0
    %972 = vmatpush1.bf16.msra.mxu0 0
    %973 = vmatprep.subr.bf16.mxu0 0
    %974 = vmatpush1.bf16.msra.mxu0 0
    %975 = vmatprep.subr.bf16.mxu0 0
    %976 = vmatpush1.bf16.msra.mxu0 0
    %977 = vmatprep.subr.bf16.mxu0 0
    %978 = vmatpush1.bf16.msra.mxu0 0
    %979 = vmatprep.subr.bf16.mxu0 0
    %980 = vmatpush1.bf16.msra.mxu0 0
    %981 = vmatprep.subr.bf16.mxu0 0
    %982 = vmatpush1.bf16.msra.mxu0 0
    %983 = vmatprep.mubr.bf16.mxu0 0
    %984 = vmatmul.mubr.bf16.gmra.mrb[0].mxu0 %v464
    %v985 = vpop.f32.mrb[0].mxu0
    %v986 = vadd.f32 %v867, %v985
    %v987 = vpop.f32.mrb[0].mxu0
    %v988 = vpop.f32.mrb[0].mxu0
    %v989 = vadd.f32 %v872, %v988
    %v990 = vpop.f32.mrb[0].mxu0
    %991 = vmatprep.mubr.bf16.mxu0 0
    %992 = vmatmul.mubr.bf16.gmra.mrb[0].mxu0 %v467
    %v993 = vpop.f32.mrb[0].mxu0
    %v994 = vadd.f32 %v877, %v993
    %v995 = vpop.f32.mrb[0].mxu0
    %v996 = vpop.f32.mrb[0].mxu0
    %v997 = vadd.f32 %v882, %v996
    %v998 = vpop.f32.mrb[0].mxu0
    %999 = vmatprep.mubr.bf16.mxu0 0
    %1000 = vmatmul.mubr.bf16.gmra.mrb[0].mxu0 %v470
    %v1001 = vpop.f32.mrb[0].mxu0
    %v1002 = vadd.f32 %v887, %v1001
    %v1003 = vpop.f32.mrb[0].mxu0
    %v1004 = vpop.f32.mrb[0].mxu0
    %v1005 = vadd.f32 %v892, %v1004
    %v1006 = vpop.f32.mrb[0].mxu0
    %1007 = vmatprep.mubr.bf16.mxu0 0
    %1008 = vmatmul.mubr.bf16.gmra.mrb[0].mxu0 %v473
    %v1009 = vpop.f32.mrb[0].mxu0
    %v1010 = vadd.f32 %v897, %v1009
    %v1011 = vpop.f32.mrb[0].mxu0
    %v1012 = vpop.f32.mrb[0].mxu0
    %v1013 = vadd.f32 %v902, %v1012
    %v1014 = vpop.f32.mrb[0].mxu0
    %1015 = vmatprep.mubr.bf16.mxu0 0
    %1016 = vmatmul.mubr.bf16.gmra.mrb[0].mxu0 %v476
    %v1017 = vpop.f32.mrb[0].mxu0
    %v1018 = vadd.f32 %v907, %v1017
    %v1019 = vpop.f32.mrb[0].mxu0
    %v1020 = vpop.f32.mrb[0].mxu0
    %v1021 = vadd.f32 %v912, %v1020
    %v1022 = vpop.f32.mrb[0].mxu0
    %1023 = vmatprep.mubr.bf16.mxu0 0
    %1024 = vmatmul.mubr.bf16.gmra.mrb[0].mxu0 %v479
    %v1025 = vpop.f32.mrb[0].mxu0
    %v1026 = vadd.f32 %v917, %v1025
    %v1027 = vpop.f32.mrb[0].mxu0
    %v1028 = vpop.f32.mrb[0].mxu0
    %v1029 = vadd.f32 %v922, %v1028
    %v1030 = vpop.f32.mrb[0].mxu0
    %1031 = vmatprep.mubr.bf16.mxu0 0
    %1032 = vmatmul.mubr.bf16.gmra.mrb[0].mxu0 %v482
    %v1033 = vpop.f32.mrb[0].mxu0
    %v1034 = vadd.f32 %v927, %v1033
    %v1035 = vpop.f32.mrb[0].mxu0
    %v1036 = vpop.f32.mrb[0].mxu0
    %v1037 = vadd.f32 %v932, %v1036
    %v1038 = vpop.f32.mrb[0].mxu0
    %1039 = vmatprep.mubr.bf16.mxu0 0
    %1040 = vmatmul.mubr.bf16.gmra.mrb[0].mxu0 %v485
    %v1041 = vpop.f32.mrb[0].mxu0
    %v1042 = vadd.f32 %v937, %v1041
    %v1043 = vpop.f32.mrb[0].mxu0
    %v1044 = vpop.f32.mrb[0].mxu0
    %v1045 = vadd.f32 %v942, %v1044
    %v1046 = vpop.f32.mrb[0].mxu0
    %1047 = vdwg.mxu0
    %v1048 = vadd.f32 %v986, %v82
    %v1049 = vadd.f32 %v989, %v87
    %v1050 = vadd.f32 %v994, %v92
    %v1051 = vadd.f32 %v997, %v97
    %v1052 = vadd.f32 %v1002, %v102
    %v1053 = vadd.f32 %v1005, %v107
    %v1054 = vadd.f32 %v1010, %v112
    %v1055 = vadd.f32 %v1013, %v117
    %v1056 = vadd.f32 %v1018, %v122
    %v1057 = vadd.f32 %v1021, %v127
    %v1058 = vadd.f32 %v1026, %v132
    %v1059 = vadd.f32 %v1029, %v137
    %v1060 = vadd.f32 %v1034, %v142
    %v1061 = vadd.f32 %v1037, %v147
    %v1062 = vadd.f32 %v1042, %v152
    %v1063 = vadd.f32 %v1045, %v157
    %v1064 = vxor.u32 %v1048, 2147483648
    %v1065 = vxor.u32 %v1049, 2147483648
    %v1066 = vxor.u32 %v1050, 2147483648
    %v1067 = vxor.u32 %v1051, 2147483648
    %v1068 = vmul.f32 %v1064, 1.442695
    %v1069 = vpow.pop %v1068
    %v1070 = vmul.f32 %v1065, 1.442695
    %v1071 = vpow.pop %v1070
    %v1072 = vmul.f32 %v1066, 1.442695
    %v1073 = vpow.pop %v1072
    %v1074 = vmul.f32 %v1067, 1.442695
    %v1075 = vpow.pop %v1074
    %v1076 = vadd.f32 %v1069, 1.0
    %v1077 = vadd.f32 %v1071, 1.0
    %v1078 = vadd.f32 %v1073, 1.0
    %v1079 = vadd.f32 %v1075, 1.0
    %v1080 = vrcp.pop %v1076
    %v1081 = vmul.f32 1.0, %v1080
    %v1082 = vrcp.pop %v1077
    %v1083 = vmul.f32 1.0, %v1082
    %v1084 = vrcp.pop %v1078
    %v1085 = vmul.f32 1.0, %v1084
    %v1086 = vrcp.pop %v1079
    %v1087 = vmul.f32 1.0, %v1086
    %v1088 = vxor.u32 %v1052, 2147483648
    %v1089 = vxor.u32 %v1053, 2147483648
    %v1090 = vxor.u32 %v1054, 2147483648
    %v1091 = vxor.u32 %v1055, 2147483648
    %v1092 = vmul.f32 %v1088, 1.442695
    %v1093 = vpow.pop %v1092
    %v1094 = vmul.f32 %v1089, 1.442695
    %v1095 = vpow.pop %v1094
    %v1096 = vmul.f32 %v1090, 1.442695
    %v1097 = vpow.pop %v1096
    %v1098 = vmul.f32 %v1091, 1.442695
    %v1099 = vpow.pop %v1098
    %v1100 = vadd.f32 %v1093, 1.0
    %v1101 = vadd.f32 %v1095, 1.0
    %v1102 = vadd.f32 %v1097, 1.0
    %v1103 = vadd.f32 %v1099, 1.0
    %v1104 = vrcp.pop %v1100
    %v1105 = vmul.f32 1.0, %v1104
    %v1106 = vrcp.pop %v1101
    %v1107 = vmul.f32 1.0, %v1106
    %v1108 = vrcp.pop %v1102
    %v1109 = vmul.f32 1.0, %v1108
    %v1110 = vrcp.pop %v1103
    %v1111 = vmul.f32 1.0, %v1110
    %v1112 = vtanh.pop %v1056
    %v1113 = vtanh.pop %v1057
    %v1114 = vtanh.pop %v1058
    %v1115 = vtanh.pop %v1059
    %v1116 = vxor.u32 %v1060, 2147483648
    %v1117 = vxor.u32 %v1061, 2147483648
    %v1118 = vxor.u32 %v1062, 2147483648
    %v1119 = vxor.u32 %v1063, 2147483648
    %v1120 = vmul.f32 %v1116, 1.442695
    %v1121 = vpow.pop %v1120
    %v1122 = vmul.f32 %v1117, 1.442695
    %v1123 = vpow.pop %v1122
    %v1124 = vmul.f32 %v1118, 1.442695
    %v1125 = vpow.pop %v1124
    %v1126 = vmul.f32 %v1119, 1.442695
    %v1127 = vpow.pop %v1126
    %v1128 = vadd.f32 %v1121, 1.0
    %v1129 = vadd.f32 %v1123, 1.0
    %v1130 = vadd.f32 %v1125, 1.0
    %v1131 = vadd.f32 %v1127, 1.0
    %v1132 = vrcp.pop %v1128
    %v1133 = vmul.f32 1.0, %v1132
    %v1134 = vrcp.pop %v1129
    %v1135 = vmul.f32 1.0, %v1134
    %v1136 = vrcp.pop %v1130
    %v1137 = vmul.f32 1.0, %v1136
    %v1138 = vrcp.pop %v1131
    %v1139 = vmul.f32 1.0, %v1138
    %v1140 = vmul.f32 %v1105, %v684
    %v1141 = vmul.f32 %v1107, %v685
    %v1142 = vmul.f32 %v1109, %v686
    %v1143 = vmul.f32 %v1111, %v687
    %v1144 = vmul.f32 %v1081, %v1112
    %v1145 = vmul.f32 %v1083, %v1113
    %v1146 = vmul.f32 %v1085, %v1114
    %v1147 = vmul.f32 %v1087, %v1115
    %v1148 = vadd.f32 %v1140, %v1144
    %v1149 = vadd.f32 %v1141, %v1145
    %v1150 = vadd.f32 %v1142, %v1146
    %v1151 = vadd.f32 %v1143, %v1147
    %v1152 = vtanh.pop %v1148
    %v1153 = vtanh.pop %v1149
    %v1154 = vtanh.pop %v1150
    %v1155 = vtanh.pop %v1151
    %v1156 = vmul.f32 %v1133, %v1152
    %v1157 = vmul.f32 %v1135, %v1153
    %v1158 = vmul.f32 %v1137, %v1154
    %v1159 = vmul.f32 %v1139, %v1155
    %1160 = vmatprep.subr.mxu0 0.0
    %1161 = vmatpush1.msra.mxu0 %v1156
    %1162 = vmatprep.subr.mxu0 0.0
    %1163 = vmatpush1.msra.mxu0 %v1157
    %1164 = vmatprep.subr.mxu0 0.0
    %1165 = vmatpush1.msra.mxu0 %v1158
    %1166 = vmatprep.subr.mxu0 0.0
    %1167 = vmatpush1.msra.mxu0 %v1159
    %1168 = vmatprep.subr.mxu0 0.0
    %1169 = vmatpush1.msra.mxu0 0.0
    %1170 = vmatprep.subr.mxu0 0.0
    %1171 = vmatpush1.msra.mxu0 0.0
    %1172 = vmatprep.subr.mxu0 0.0
    %1173 = vmatpush1.msra.mxu0 0.0
    %1174 = vmatprep.subr.mxu0 0.0
    %1175 = vmatpush1.msra.mxu0 0.0
    %1176 = vmatprep.subr.mxu0 0.0
    %1177 = vmatpush1.msra.mxu0 0.0
    %1178 = vmatprep.subr.mxu0 0.0
    %1179 = vmatpush1.msra.mxu0 0.0
    %1180 = vmatprep.subr.mxu0 0.0
    %1181 = vmatpush1.msra.mxu0 0.0
    %1182 = vmatprep.subr.mxu0 0.0
    %1183 = vmatpush1.msra.mxu0 0.0
    %1184 = vmatprep.subr.mxu0 0.0
    %1185 = vmatpush1.msra.mxu0 0.0
    %1186 = vmatprep.subr.mxu0 0.0
    %1187 = vmatpush1.msra.mxu0 0.0
    %1188 = vmatprep.subr.mxu0 0.0
    %1189 = vmatpush1.msra.mxu0 0.0
    %1190 = vmatprep.subr.mxu0 0.0
    %1191 = vmatpush1.msra.mxu0 0.0
    %1192 = vmatprep.subr.mxu0 0.0
    %1193 = vmatpush1.msra.mxu0 0.0
    %1194 = vmatprep.subr.mxu0 0.0
    %1195 = vmatpush1.msra.mxu0 0.0
    %1196 = vmatprep.subr.mxu0 0.0
    %1197 = vmatpush1.msra.mxu0 0.0
    %1198 = vmatprep.subr.mxu0 0.0
    %1199 = vmatpush1.msra.mxu0 0.0
    %1200 = vmatprep.subr.mxu0 0.0
    %1201 = vmatpush1.msra.mxu0 0.0
    %1202 = vmatprep.subr.mxu0 0.0
    %1203 = vmatpush1.msra.mxu0 0.0
    %1204 = vmatprep.subr.mxu0 0.0
    %1205 = vmatpush1.msra.mxu0 0.0
    %1206 = vmatprep.subr.mxu0 0.0
    %1207 = vmatpush1.msra.mxu0 0.0
    %1208 = vmatprep.subr.mxu0 0.0
    %1209 = vmatpush1.msra.mxu0 0.0
    %1210 = vmatprep.subr.mxu0 0.0
    %1211 = vmatpush1.msra.mxu0 0.0
    %1212 = vmatprep.subr.mxu0 0.0
    %1213 = vmatpush1.msra.mxu0 0.0
    %1214 = vmatprep.subr.mxu0 0.0
    %1215 = vmatpush1.msra.mxu0 0.0
    %1216 = vmatprep.subr.mxu0 0.0
    %1217 = vmatpush1.msra.mxu0 0.0
    %1218 = vmatprep.subr.mxu0 0.0
    %1219 = vmatpush1.msra.mxu0 0.0
    %1220 = vmatprep.subr.mxu0 0.0
    %1221 = vmatpush1.msra.mxu0 0.0
    %1222 = vmatprep.subr.mxu0 0.0
    %1223 = vmatpush1.msra.mxu0 0.0
    %1224 = vmatprep.mubr.f32.mxu0 0.0
    %1225 = vmatmul.mubr.f32.gmra.mrb[0].mxu0 %v697
    %v1226 = vpop.f32.mrb[0].mxu0
    %v1227 = vadd.f32 %v190, %v1226
    %v1228 = vpop.f32.mrb[0].mxu0
    %1229 = vmatprep.mubr.f32.mxu0 0.0
    %1230 = vmatmul.mubr.f32.gmra.mrb[0].mxu0 %v700
    %v1231 = vpop.f32.mrb[0].mxu0
    %v1232 = vadd.f32 %v195, %v1231
    %v1233 = vpop.f32.mrb[0].mxu0
    %1234 = vmatprep.mubr.f32.mxu0 0.0
    %1235 = vmatmul.mubr.f32.gmra.mrb[0].mxu0 %v703
    %v1236 = vpop.f32.mrb[0].mxu0
    %v1237 = vadd.f32 %v200, %v1236
    %v1238 = vpop.f32.mrb[0].mxu0
    %1239 = vmatprep.mubr.f32.mxu0 0.0
    %1240 = vmatmul.mubr.f32.gmra.mrb[0].mxu0 %v706
    %v1241 = vpop.f32.mrb[0].mxu0
    %v1242 = vadd.f32 %v205, %v1241
    %v1243 = vpop.f32.mrb[0].mxu0
    %1244 = vdwg.mxu0
    %s1245 = scalar_lea.vmem [#allocation2], 32
    %1246 = vst [vmem:[%s1245] sm:$0xff] %v1227
    %1247 = vst [vmem:[%s1245 + $0x8] sm:$0xff] %v1232
    %1248 = vst [vmem:[%s1245 + $0x10] sm:$0xff] %v1237
    %1249 = vst [vmem:[%s1245 + $0x18] sm:$0xff] %v1242
    %s1250 = scalar_lea.vmem %s0, 16
    %v1251 = vld [vmem:[%s1250] sm:$0xf]
    %v1252 = vld [vmem:[%s1250 + $0x4] sm:$0xf]
    %1253 = vmatprep.subr.mxu0 0.0
    %1254 = vmatpush1.msra.mxu0 %v1156
    %1255 = vmatprep.subr.mxu0 0.0
    %1256 = vmatpush1.msra.mxu0 %v1157
    %1257 = vmatprep.subr.mxu0 0.0
    %1258 = vmatpush1.msra.mxu0 %v1158
    %1259 = vmatprep.subr.mxu0 0.0
    %1260 = vmatpush1.msra.mxu0 %v1159
    %1261 = vmatprep.subr.mxu0 0.0
    %1262 = vmatpush1.msra.mxu0 0.0
    %1263 = vmatprep.subr.mxu0 0.0
    %1264 = vmatpush1.msra.mxu0 0.0
    %1265 = vmatprep.subr.mxu0 0.0
    %1266 = vmatpush1.msra.mxu0 0.0
    %1267 = vmatprep.subr.mxu0 0.0
    %1268 = vmatpush1.msra.mxu0 0.0
    %1269 = vmatprep.subr.mxu0 0.0
    %1270 = vmatpush1.msra.mxu0 0.0
    %1271 = vmatprep.subr.mxu0 0.0
    %1272 = vmatpush1.msra.mxu0 0.0
    %1273 = vmatprep.subr.mxu0 0.0
    %1274 = vmatpush1.msra.mxu0 0.0
    %1275 = vmatprep.subr.mxu0 0.0
    %1276 = vmatpush1.msra.mxu0 0.0
    %1277 = vmatprep.subr.mxu0 0.0
    %1278 = vmatpush1.msra.mxu0 0.0
    %1279 = vmatprep.subr.mxu0 0.0
    %1280 = vmatpush1.msra.mxu0 0.0
    %1281 = vmatprep.subr.mxu0 0.0
    %1282 = vmatpush1.msra.mxu0 0.0
    %1283 = vmatprep.subr.mxu0 0.0
    %1284 = vmatpush1.msra.mxu0 0.0
    %1285 = vmatprep.subr.mxu0 0.0
    %1286 = vmatpush1.msra.mxu0 0.0
    %1287 = vmatprep.subr.mxu0 0.0
    %1288 = vmatpush1.msra.mxu0 0.0
    %1289 = vmatprep.subr.mxu0 0.0
    %1290 = vmatpush1.msra.mxu0 0.0
    %1291 = vmatprep.subr.mxu0 0.0
    %1292 = vmatpush1.msra.mxu0 0.0
    %1293 = vmatprep.subr.mxu0 0.0
    %1294 = vmatpush1.msra.mxu0 0.0
    %1295 = vmatprep.subr.mxu0 0.0
    %1296 = vmatpush1.msra.mxu0 0.0
    %1297 = vmatprep.subr.mxu0 0.0
    %1298 = vmatpush1.msra.mxu0 0.0
    %1299 = vmatprep.subr.mxu0 0.0
    %1300 = vmatpush1.msra.mxu0 0.0
    %1301 = vmatprep.subr.mxu0 0.0
    %1302 = vmatpush1.msra.mxu0 0.0
    %1303 = vmatprep.subr.mxu0 0.0
    %1304 = vmatpush1.msra.mxu0 0.0
    %1305 = vmatprep.subr.mxu0 0.0
    %1306 = vmatpush1.msra.mxu0 0.0
    %1307 = vmatprep.subr.mxu0 0.0
    %1308 = vmatpush1.msra.mxu0 0.0
    %1309 = vmatprep.subr.mxu0 0.0
    %1310 = vmatpush1.msra.mxu0 0.0
    %1311 = vmatprep.subr.mxu0 0.0
    %1312 = vmatpush1.msra.mxu0 0.0
    %1313 = vmatprep.subr.mxu0 0.0
    %1314 = vmatpush1.msra.mxu0 0.0
    %1315 = vmatprep.subr.mxu0 0.0
    %1316 = vmatpush1.msra.mxu0 0.0
    %1317 = vmatprep.mubr.f32.mxu0 0.0
    %1318 = vmatmul.mubr.f32.gmra.mrb[0].mxu0 %v224
    %v1319 = vpop.f32.mrb[0].mxu0
    %v1320 = vadd.f32 0.0, %v1319
    %v1321 = vpop.f32.mrb[0].mxu0
    %1322 = vmatprep.mubr.f32.mxu0 0.0
    %1323 = vmatmul.mubr.f32.gmra.mrb[0].mxu0 %v227
    %v1324 = vpop.f32.mrb[0].mxu0
    %v1325 = vadd.f32 0.0, %v1324
    %v1326 = vpop.f32.mrb[0].mxu0
    %1327 = vmatprep.mubr.f32.mxu0 0.0
    %1328 = vmatmul.mubr.f32.gmra.mrb[0].mxu0 %v230
    %v1329 = vpop.f32.mrb[0].mxu0
    %v1330 = vadd.f32 0.0, %v1329
    %v1331 = vpop.f32.mrb[0].mxu0
    %1332 = vmatprep.mubr.f32.mxu0 0.0
    %1333 = vmatmul.mubr.f32.gmra.mrb[0].mxu0 %v233
    %v1334 = vpop.f32.mrb[0].mxu0
    %v1335 = vadd.f32 0.0, %v1334
    %v1336 = vpop.f32.mrb[0].mxu0
    %1337 = vmatprep.mubr.f32.mxu0 0.0
    %1338 = vmatmul.mubr.f32.gmra.mrb[0].mxu0 %v236
    %v1339 = vpop.f32.mrb[0].mxu0
    %v1340 = vadd.f32 0.0, %v1339
    %v1341 = vpop.f32.mrb[0].mxu0
    %1342 = vmatprep.mubr.f32.mxu0 0.0
    %1343 = vmatmul.mubr.f32.gmra.mrb[0].mxu0 %v239
    %v1344 = vpop.f32.mrb[0].mxu0
    %v1345 = vadd.f32 0.0, %v1344
    %v1346 = vpop.f32.mrb[0].mxu0
    %1347 = vmatprep.mubr.f32.mxu0 0.0
    %1348 = vmatmul.mubr.f32.gmra.mrb[0].mxu0 %v242
    %v1349 = vpop.f32.mrb[0].mxu0
    %v1350 = vadd.f32 0.0, %v1349
    %v1351 = vpop.f32.mrb[0].mxu0
    %1352 = vmatprep.mubr.f32.mxu0 0.0
    %1353 = vmatmul.mubr.f32.gmra.mrb[0].mxu0 %v245
    %v1354 = vpop.f32.mrb[0].mxu0
    %v1355 = vadd.f32 0.0, %v1354
    %v1356 = vpop.f32.mrb[0].mxu0
    %1357 = vmatprep.mubr.f32.mxu0 0.0
    %1358 = vmatmul.mubr.f32.gmra.mrb[0].mxu0 %v248
    %v1359 = vpop.f32.mrb[0].mxu0
    %v1360 = vadd.f32 0.0, %v1359
    %v1361 = vpop.f32.mrb[0].mxu0
    %1362 = vmatprep.mubr.f32.mxu0 0.0
    %1363 = vmatmul.mubr.f32.gmra.mrb[0].mxu0 %v251
    %v1364 = vpop.f32.mrb[0].mxu0
    %v1365 = vadd.f32 0.0, %v1364
    %v1366 = vpop.f32.mrb[0].mxu0
    %1367 = vmatprep.mubr.f32.mxu0 0.0
    %1368 = vmatmul.mubr.f32.gmra.mrb[0].mxu0 %v254
    %v1369 = vpop.f32.mrb[0].mxu0
    %v1370 = vadd.f32 0.0, %v1369
    %v1371 = vpop.f32.mrb[0].mxu0
    %1372 = vmatprep.mubr.f32.mxu0 0.0
    %1373 = vmatmul.mubr.f32.gmra.mrb[0].mxu0 %v257
    %v1374 = vpop.f32.mrb[0].mxu0
    %v1375 = vadd.f32 0.0, %v1374
    %v1376 = vpop.f32.mrb[0].mxu0
    %1377 = vmatprep.mubr.f32.mxu0 0.0
    %1378 = vmatmul.mubr.f32.gmra.mrb[0].mxu0 %v260
    %v1379 = vpop.f32.mrb[0].mxu0
    %v1380 = vadd.f32 0.0, %v1379
    %v1381 = vpop.f32.mrb[0].mxu0
    %1382 = vmatprep.mubr.f32.mxu0 0.0
    %1383 = vmatmul.mubr.f32.gmra.mrb[0].mxu0 %v263
    %v1384 = vpop.f32.mrb[0].mxu0
    %v1385 = vadd.f32 0.0, %v1384
    %v1386 = vpop.f32.mrb[0].mxu0
    %1387 = vmatprep.mubr.f32.mxu0 0.0
    %1388 = vmatmul.mubr.f32.gmra.mrb[0].mxu0 %v266
    %v1389 = vpop.f32.mrb[0].mxu0
    %v1390 = vadd.f32 0.0, %v1389
    %v1391 = vpop.f32.mrb[0].mxu0
    %1392 = vmatprep.mubr.f32.mxu0 0.0
    %1393 = vmatmul.mubr.f32.gmra.mrb[0].mxu0 %v269
    %v1394 = vpop.f32.mrb[0].mxu0
    %v1395 = vadd.f32 0.0, %v1394
    %v1396 = vpop.f32.mrb[0].mxu0
    %1397 = vdwg.mxu0
    %v1400 = vunpack.c.l.b16 %v1251
    %v1401 = vunpack.c.l.b16 %v1252
    %v1402 = vpack.c.b16 %v1401, %v1400
    %1404 = vmatprep.subr.bf16.mxu0 0
    %1405 = vmatpush1.bf16.msra.mxu0 %v1402
    %1406 = vmatprep.subr.bf16.mxu0 0
    %1407 = vmatpush1.bf16.msra.mxu0 0
    %1408 = vmatprep.subr.bf16.mxu0 0
    %1409 = vmatpush1.bf16.msra.mxu0 0
    %1410 = vmatprep.subr.bf16.mxu0 0
    %1411 = vmatpush1.bf16.msra.mxu0 0
    %1412 = vmatprep.subr.bf16.mxu0 0
    %1413 = vmatpush1.bf16.msra.mxu0 0
    %1414 = vmatprep.subr.bf16.mxu0 0
    %1415 = vmatpush1.bf16.msra.mxu0 0
    %1416 = vmatprep.subr.bf16.mxu0 0
    %1417 = vmatpush1.bf16.msra.mxu0 0
    %1418 = vmatprep.subr.bf16.mxu0 0
    %1419 = vmatpush1.bf16.msra.mxu0 0
    %1420 = vmatprep.subr.bf16.mxu0 0
    %1421 = vmatpush1.bf16.msra.mxu0 0
    %1422 = vmatprep.subr.bf16.mxu0 0
    %1423 = vmatpush1.bf16.msra.mxu0 0
    %1424 = vmatprep.subr.bf16.mxu0 0
    %1425 = vmatpush1.bf16.msra.mxu0 0
    %1426 = vmatprep.subr.bf16.mxu0 0
    %1427 = vmatpush1.bf16.msra.mxu0 0
    %1428 = vmatprep.subr.bf16.mxu0 0
    %1429 = vmatpush1.bf16.msra.mxu0 0
    %1430 = vmatprep.subr.bf16.mxu0 0
    %1431 = vmatpush1.bf16.msra.mxu0 0
    %1432 = vmatprep.subr.bf16.mxu0 0
    %1433 = vmatpush1.bf16.msra.mxu0 0
    %1434 = vmatprep.subr.bf16.mxu0 0
    %1435 = vmatpush1.bf16.msra.mxu0 0
    %1436 = vmatprep.mubr.bf16.mxu0 0
    %1437 = vmatmul.mubr.bf16.gmra.mrb[0].mxu0 %v464
    %v1438 = vpop.f32.mrb[0].mxu0
    %v1439 = vadd.f32 %v1320, %v1438
    %v1440 = vpop.f32.mrb[0].mxu0
    %v1441 = vpop.f32.mrb[0].mxu0
    %v1442 = vadd.f32 %v1325, %v1441
    %v1443 = vpop.f32.mrb[0].mxu0
    %1444 = vmatprep.mubr.bf16.mxu0 0
    %1445 = vmatmul.mubr.bf16.gmra.mrb[0].mxu0 %v467
    %v1446 = vpop.f32.mrb[0].mxu0
    %v1447 = vadd.f32 %v1330, %v1446
    %v1448 = vpop.f32.mrb[0].mxu0
    %v1449 = vpop.f32.mrb[0].mxu0
    %v1450 = vadd.f32 %v1335, %v1449
    %v1451 = vpop.f32.mrb[0].mxu0
    %1452 = vmatprep.mubr.bf16.mxu0 0
    %1453 = vmatmul.mubr.bf16.gmra.mrb[0].mxu0 %v470
    %v1454 = vpop.f32.mrb[0].mxu0
    %v1455 = vadd.f32 %v1340, %v1454
    %v1456 = vpop.f32.mrb[0].mxu0
    %v1457 = vpop.f32.mrb[0].mxu0
    %v1458 = vadd.f32 %v1345, %v1457
    %v1459 = vpop.f32.mrb[0].mxu0
    %1460 = vmatprep.mubr.bf16.mxu0 0
    %1461 = vmatmul.mubr.bf16.gmra.mrb[0].mxu0 %v473
    %v1462 = vpop.f32.mrb[0].mxu0
    %v1463 = vadd.f32 %v1350, %v1462
    %v1464 = vpop.f32.mrb[0].mxu0
    %v1465 = vpop.f32.mrb[0].mxu0
    %v1466 = vadd.f32 %v1355, %v1465
    %v1467 = vpop.f32.mrb[0].mxu0
    %1468 = vmatprep.mubr.bf16.mxu0 0
    %1469 = vmatmul.mubr.bf16.gmra.mrb[0].mxu0 %v476
    %v1470 = vpop.f32.mrb[0].mxu0
    %v1471 = vadd.f32 %v1360, %v1470
    %v1472 = vpop.f32.mrb[0].mxu0
    %v1473 = vpop.f32.mrb[0].mxu0
    %v1474 = vadd.f32 %v1365, %v1473
    %v1475 = vpop.f32.mrb[0].mxu0
    %1476 = vmatprep.mubr.bf16.mxu0 0
    %1477 = vmatmul.mubr.bf16.gmra.mrb[0].mxu0 %v479
    %v1478 = vpop.f32.mrb[0].mxu0
    %v1479 = vadd.f32 %v1370, %v1478
    %v1480 = vpop.f32.mrb[0].mxu0
    %v1481 = vpop.f32.mrb[0].mxu0
    %v1482 = vadd.f32 %v1375, %v1481
    %v1483 = vpop.f32.mrb[0].mxu0
    %1484 = vmatprep.mubr.bf16.mxu0 0
    %1485 = vmatmul.mubr.bf16.gmra.mrb[0].mxu0 %v482
    %v1486 = vpop.f32.mrb[0].mxu0
    %v1487 = vadd.f32 %v1380, %v1486
    %v1488 = vpop.f32.mrb[0].mxu0
    %v1489 = vpop.f32.mrb[0].mxu0
    %v1490 = vadd.f32 %v1385, %v1489
    %v1491 = vpop.f32.mrb[0].mxu0
    %1492 = vmatprep.mubr.bf16.mxu0 0
    %1493 = vmatmul.mubr.bf16.gmra.mrb[0].mxu0 %v485
    %v1494 = vpop.f32.mrb[0].mxu0
    %v1495 = vadd.f32 %v1390, %v1494
    %v1496 = vpop.f32.mrb[0].mxu0
    %v1497 = vpop.f32.mrb[0].mxu0
    %v1498 = vadd.f32 %v1395, %v1497
    %v1499 = vpop.f32.mrb[0].mxu0
    %1500 = vdwg.mxu0
    %v1501 = vadd.f32 %v1439, %v82
    %v1502 = vadd.f32 %v1442, %v87
    %v1503 = vadd.f32 %v1447, %v92
    %v1504 = vadd.f32 %v1450, %v97
    %v1505 = vadd.f32 %v1455, %v102
    %v1506 = vadd.f32 %v1458, %v107
    %v1507 = vadd.f32 %v1463, %v112
    %v1508 = vadd.f32 %v1466, %v117
    %v1509 = vadd.f32 %v1471, %v122
    %v1510 = vadd.f32 %v1474, %v127
    %v1511 = vadd.f32 %v1479, %v132
    %v1512 = vadd.f32 %v1482, %v137
    %v1513 = vadd.f32 %v1487, %v142
    %v1514 = vadd.f32 %v1490, %v147
    %v1515 = vadd.f32 %v1495, %v152
    %v1516 = vadd.f32 %v1498, %v157
    %v1517 = vxor.u32 %v1501, 2147483648
    %v1518 = vxor.u32 %v1502, 2147483648
    %v1519 = vxor.u32 %v1503, 2147483648
    %v1520 = vxor.u32 %v1504, 2147483648
    %v1521 = vmul.f32 %v1517, 1.442695
    %v1522 = vpow.pop %v1521
    %v1523 = vmul.f32 %v1518, 1.442695
    %v1524 = vpow.pop %v1523
    %v1525 = vmul.f32 %v1519, 1.442695
    %v1526 = vpow.pop %v1525
    %v1527 = vmul.f32 %v1520, 1.442695
    %v1528 = vpow.pop %v1527
    %v1529 = vadd.f32 %v1522, 1.0
    %v1530 = vadd.f32 %v1524, 1.0
    %v1531 = vadd.f32 %v1526, 1.0
    %v1532 = vadd.f32 %v1528, 1.0
    %v1533 = vrcp.pop %v1529
    %v1534 = vmul.f32 1.0, %v1533
    %v1535 = vrcp.pop %v1530
    %v1536 = vmul.f32 1.0, %v1535
    %v1537 = vrcp.pop %v1531
    %v1538 = vmul.f32 1.0, %v1537
    %v1539 = vrcp.pop %v1532
    %v1540 = vmul.f32 1.0, %v1539
    %v1541 = vxor.u32 %v1505, 2147483648
    %v1542 = vxor.u32 %v1506, 2147483648
    %v1543 = vxor.u32 %v1507, 2147483648
    %v1544 = vxor.u32 %v1508, 2147483648
    %v1545 = vmul.f32 %v1541, 1.442695
    %v1546 = vpow.pop %v1545
    %v1547 = vmul.f32 %v1542, 1.442695
    %v1548 = vpow.pop %v1547
    %v1549 = vmul.f32 %v1543, 1.442695
    %v1550 = vpow.pop %v1549
    %v1551 = vmul.f32 %v1544, 1.442695
    %v1552 = vpow.pop %v1551
    %v1553 = vadd.f32 %v1546, 1.0
    %v1554 = vadd.f32 %v1548, 1.0
    %v1555 = vadd.f32 %v1550, 1.0
    %v1556 = vadd.f32 %v1552, 1.0
    %v1557 = vrcp.pop %v1553
    %v1558 = vmul.f32 1.0, %v1557
    %v1559 = vrcp.pop %v1554
    %v1560 = vmul.f32 1.0, %v1559
    %v1561 = vrcp.pop %v1555
    %v1562 = vmul.f32 1.0, %v1561
    %v1563 = vrcp.pop %v1556
    %v1564 = vmul.f32 1.0, %v1563
    %v1565 = vtanh.pop %v1509
    %v1566 = vtanh.pop %v1510
    %v1567 = vtanh.pop %v1511
    %v1568 = vtanh.pop %v1512
    %v1569 = vxor.u32 %v1513, 2147483648
    %v1570 = vxor.u32 %v1514, 2147483648
    %v1571 = vxor.u32 %v1515, 2147483648
    %v1572 = vxor.u32 %v1516, 2147483648
    %v1573 = vmul.f32 %v1569, 1.442695
    %v1574 = vpow.pop %v1573
    %v1575 = vmul.f32 %v1570, 1.442695
    %v1576 = vpow.pop %v1575
    %v1577 = vmul.f32 %v1571, 1.442695
    %v1578 = vpow.pop %v1577
    %v1579 = vmul.f32 %v1572, 1.442695
    %v1580 = vpow.pop %v1579
    %v1581 = vadd.f32 %v1574, 1.0
    %v1582 = vadd.f32 %v1576, 1.0
    %v1583 = vadd.f32 %v1578, 1.0
    %v1584 = vadd.f32 %v1580, 1.0
    %v1585 = vrcp.pop %v1581
    %v1586 = vmul.f32 1.0, %v1585
    %v1587 = vrcp.pop %v1582
    %v1588 = vmul.f32 1.0, %v1587
    %v1589 = vrcp.pop %v1583
    %v1590 = vmul.f32 1.0, %v1589
    %v1591 = vrcp.pop %v1584
    %v1592 = vmul.f32 1.0, %v1591
    %v1593 = vmul.f32 %v1558, %v1148
    %v1594 = vmul.f32 %v1560, %v1149
    %v1595 = vmul.f32 %v1562, %v1150
    %v1596 = vmul.f32 %v1564, %v1151
    %v1597 = vmul.f32 %v1534, %v1565
    %v1598 = vmul.f32 %v1536, %v1566
    %v1599 = vmul.f32 %v1538, %v1567
    %v1600 = vmul.f32 %v1540, %v1568
    %v1601 = vadd.f32 %v1593, %v1597
    %v1602 = vadd.f32 %v1594, %v1598
    %v1603 = vadd.f32 %v1595, %v1599
    %v1604 = vadd.f32 %v1596, %v1600
    %v1605 = vtanh.pop %v1601
    %v1606 = vtanh.pop %v1602
    %v1607 = vtanh.pop %v1603
    %v1608 = vtanh.pop %v1604
    %v1609 = vmul.f32 %v1586, %v1605
    %v1610 = vmul.f32 %v1588, %v1606
    %v1611 = vmul.f32 %v1590, %v1607
    %v1612 = vmul.f32 %v1592, %v1608
    %1613 = vmatprep.subr.mxu0 0.0
    %1614 = vmatpush1.msra.mxu0 %v1609
    %1615 = vmatprep.subr.mxu0 0.0
    %1616 = vmatpush1.msra.mxu0 %v1610
    %1617 = vmatprep.subr.mxu0 0.0
    %1618 = vmatpush1.msra.mxu0 %v1611
    %1619 = vmatprep.subr.mxu0 0.0
    %1620 = vmatpush1.msra.mxu0 %v1612
    %1621 = vmatprep.subr.mxu0 0.0
    %1622 = vmatpush1.msra.mxu0 0.0
    %1623 = vmatprep.subr.mxu0 0.0
    %1624 = vmatpush1.msra.mxu0 0.0
    %1625 = vmatprep.subr.mxu0 0.0
    %1626 = vmatpush1.msra.mxu0 0.0
    %1627 = vmatprep.subr.mxu0 0.0
    %1628 = vmatpush1.msra.mxu0 0.0
    %1629 = vmatprep.subr.mxu0 0.0
    %1630 = vmatpush1.msra.mxu0 0.0
    %1631 = vmatprep.subr.mxu0 0.0
    %1632 = vmatpush1.msra.mxu0 0.0
    %1633 = vmatprep.subr.mxu0 0.0
    %1634 = vmatpush1.msra.mxu0 0.0
    %1635 = vmatprep.subr.mxu0 0.0
    %1636 = vmatpush1.msra.mxu0 0.0
    %1637 = vmatprep.subr.mxu0 0.0
    %1638 = vmatpush1.msra.mxu0 0.0
    %1639 = vmatprep.subr.mxu0 0.0
    %1640 = vmatpush1.msra.mxu0 0.0
    %1641 = vmatprep.subr.mxu0 0.0
    %1642 = vmatpush1.msra.mxu0 0.0
    %1643 = vmatprep.subr.mxu0 0.0
    %1644 = vmatpush1.msra.mxu0 0.0
    %1645 = vmatprep.subr.mxu0 0.0
    %1646 = vmatpush1.msra.mxu0 0.0
    %1647 = vmatprep.subr.mxu0 0.0
    %1648 = vmatpush1.msra.mxu0 0.0
    %1649 = vmatprep.subr.mxu0 0.0
    %1650 = vmatpush1.msra.mxu0 0.0
    %1651 = vmatprep.subr.mxu0 0.0
    %1652 = vmatpush1.msra.mxu0 0.0
    %1653 = vmatprep.subr.mxu0 0.0
    %1654 = vmatpush1.msra.mxu0 0.0
    %1655 = vmatprep.subr.mxu0 0.0
    %1656 = vmatpush1.msra.mxu0 0.0
    %1657 = vmatprep.subr.mxu0 0.0
    %1658 = vmatpush1.msra.mxu0 0.0
    %1659 = vmatprep.subr.mxu0 0.0
    %1660 = vmatpush1.msra.mxu0 0.0
    %1661 = vmatprep.subr.mxu0 0.0
    %1662 = vmatpush1.msra.mxu0 0.0
    %1663 = vmatprep.subr.mxu0 0.0
    %1664 = vmatpush1.msra.mxu0 0.0
    %1665 = vmatprep.subr.mxu0 0.0
    %1666 = vmatpush1.msra.mxu0 0.0
    %1667 = vmatprep.subr.mxu0 0.0
    %1668 = vmatpush1.msra.mxu0 0.0
    %1669 = vmatprep.subr.mxu0 0.0
    %1670 = vmatpush1.msra.mxu0 0.0
    %1671 = vmatprep.subr.mxu0 0.0
    %1672 = vmatpush1.msra.mxu0 0.0
    %1673 = vmatprep.subr.mxu0 0.0
    %1674 = vmatpush1.msra.mxu0 0.0
    %1675 = vmatprep.subr.mxu0 0.0
    %1676 = vmatpush1.msra.mxu0 0.0
    %1677 = vmatprep.mubr.f32.mxu0 0.0
    %1678 = vmatmul.mubr.f32.gmra.mrb[0].mxu0 %v697
    %v1679 = vpop.f32.mrb[0].mxu0
    %v1680 = vadd.f32 %v190, %v1679
    %v1681 = vpop.f32.mrb[0].mxu0
    %1682 = vmatprep.mubr.f32.mxu0 0.0
    %1683 = vmatmul.mubr.f32.gmra.mrb[0].mxu0 %v700
    %v1684 = vpop.f32.mrb[0].mxu0
    %v1685 = vadd.f32 %v195, %v1684
    %v1686 = vpop.f32.mrb[0].mxu0
    %1687 = vmatprep.mubr.f32.mxu0 0.0
    %1688 = vmatmul.mubr.f32.gmra.mrb[0].mxu0 %v703
    %v1689 = vpop.f32.mrb[0].mxu0
    %v1690 = vadd.f32 %v200, %v1689
    %v1691 = vpop.f32.mrb[0].mxu0
    %1692 = vmatprep.mubr.f32.mxu0 0.0
    %1693 = vmatmul.mubr.f32.gmra.mrb[0].mxu0 %v706
    %v1694 = vpop.f32.mrb[0].mxu0
    %v1695 = vadd.f32 %v205, %v1694
    %v1696 = vpop.f32.mrb[0].mxu0
    %1697 = vdwg.mxu0
    %s1698 = scalar_lea.vmem [#allocation2], 64
    %1699 = vst [vmem:[%s1698] sm:$0xff] %v1680
    %1700 = vst [vmem:[%s1698 + $0x8] sm:$0xff] %v1685
    %1701 = vst [vmem:[%s1698 + $0x10] sm:$0xff] %v1690
    %1702 = vst [vmem:[%s1698 + $0x18] sm:$0xff] %v1695
    %s1703 = scalar_lea.vmem %s0, 24
    %v1704 = vld [vmem:[%s1703] sm:$0xf]
    %v1705 = vld [vmem:[%s1703 + $0x4] sm:$0xf]
    %1706 = vmatprep.subr.mxu0 0.0
    %1707 = vmatpush1.msra.mxu0 %v1609
    %1708 = vmatprep.subr.mxu0 0.0
    %1709 = vmatpush1.msra.mxu0 %v1610
    %1710 = vmatprep.subr.mxu0 0.0
    %1711 = vmatpush1.msra.mxu0 %v1611
    %1712 = vmatprep.subr.mxu0 0.0
    %1713 = vmatpush1.msra.mxu0 %v1612
    %1714 = vmatprep.subr.mxu0 0.0
    %1715 = vmatpush1.msra.mxu0 0.0
    %1716 = vmatprep.subr.mxu0 0.0
    %1717 = vmatpush1.msra.mxu0 0.0
    %1718 = vmatprep.subr.mxu0 0.0
    %1719 = vmatpush1.msra.mxu0 0.0
    %1720 = vmatprep.subr.mxu0 0.0
    %1721 = vmatpush1.msra.mxu0 0.0
    %1722 = vmatprep.subr.mxu0 0.0
    %1723 = vmatpush1.msra.mxu0 0.0
    %1724 = vmatprep.subr.mxu0 0.0
    %1725 = vmatpush1.msra.mxu0 0.0
    %1726 = vmatprep.subr.mxu0 0.0
    %1727 = vmatpush1.msra.mxu0 0.0
    %1728 = vmatprep.subr.mxu0 0.0
    %1729 = vmatpush1.msra.mxu0 0.0
    %1730 = vmatprep.subr.mxu0 0.0
    %1731 = vmatpush1.msra.mxu0 0.0
    %1732 = vmatprep.subr.mxu0 0.0
    %1733 = vmatpush1.msra.mxu0 0.0
    %1734 = vmatprep.subr.mxu0 0.0
    %1735 = vmatpush1.msra.mxu0 0.0
    %1736 = vmatprep.subr.mxu0 0.0
    %1737 = vmatpush1.msra.mxu0 0.0
    %1738 = vmatprep.subr.mxu0 0.0
    %1739 = vmatpush1.msra.mxu0 0.0
    %1740 = vmatprep.subr.mxu0 0.0
    %1741 = vmatpush1.msra.mxu0 0.0
    %1742 = vmatprep.subr.mxu0 0.0
    %1743 = vmatpush1.msra.mxu0 0.0
    %1744 = vmatprep.subr.mxu0 0.0
    %1745 = vmatpush1.msra.mxu0 0.0
    %1746 = vmatprep.subr.mxu0 0.0
    %1747 = vmatpush1.msra.mxu0 0.0
    %1748 = vmatprep.subr.mxu0 0.0
    %1749 = vmatpush1.msra.mxu0 0.0
    %1750 = vmatprep.subr.mxu0 0.0
    %1751 = vmatpush1.msra.mxu0 0.0
    %1752 = vmatprep.subr.mxu0 0.0
    %1753 = vmatpush1.msra.mxu0 0.0
    %1754 = vmatprep.subr.mxu0 0.0
    %1755 = vmatpush1.msra.mxu0 0.0
    %1756 = vmatprep.subr.mxu0 0.0
    %1757 = vmatpush1.msra.mxu0 0.0
    %1758 = vmatprep.subr.mxu0 0.0
    %1759 = vmatpush1.msra.mxu0 0.0
    %1760 = vmatprep.subr.mxu0 0.0
    %1761 = vmatpush1.msra.mxu0 0.0
    %1762 = vmatprep.subr.mxu0 0.0
    %1763 = vmatpush1.msra.mxu0 0.0
    %1764 = vmatprep.subr.mxu0 0.0
    %1765 = vmatpush1.msra.mxu0 0.0
    %1766 = vmatprep.subr.mxu0 0.0
    %1767 = vmatpush1.msra.mxu0 0.0
    %1768 = vmatprep.subr.mxu0 0.0
    %1769 = vmatpush1.msra.mxu0 0.0
    %1770 = vmatprep.mubr.f32.mxu0 0.0
    %1771 = vmatmul.mubr.f32.gmra.mrb[0].mxu0 %v224
    %v1772 = vpop.f32.mrb[0].mxu0
    %v1773 = vadd.f32 0.0, %v1772
    %v1774 = vpop.f32.mrb[0].mxu0
    %1775 = vmatprep.mubr.f32.mxu0 0.0
    %1776 = vmatmul.mubr.f32.gmra.mrb[0].mxu0 %v227
    %v1777 = vpop.f32.mrb[0].mxu0
    %v1778 = vadd.f32 0.0, %v1777
    %v1779 = vpop.f32.mrb[0].mxu0
    %1780 = vmatprep.mubr.f32.mxu0 0.0
    %1781 = vmatmul.mubr.f32.gmra.mrb[0].mxu0 %v230
    %v1782 = vpop.f32.mrb[0].mxu0
    %v1783 = vadd.f32 0.0, %v1782
    %v1784 = vpop.f32.mrb[0].mxu0
    %1785 = vmatprep.mubr.f32.mxu0 0.0
    %1786 = vmatmul.mubr.f32.gmra.mrb[0].mxu0 %v233
    %v1787 = vpop.f32.mrb[0].mxu0
    %v1788 = vadd.f32 0.0, %v1787
    %v1789 = vpop.f32.mrb[0].mxu0
    %1790 = vmatprep.mubr.f32.mxu0 0.0
    %1791 = vmatmul.mubr.f32.gmra.mrb[0].mxu0 %v236
    %v1792 = vpop.f32.mrb[0].mxu0
    %v1793 = vadd.f32 0.0, %v1792
    %v1794 = vpop.f32.mrb[0].mxu0
    %1795 = vmatprep.mubr.f32.mxu0 0.0
    %1796 = vmatmul.mubr.f32.gmra.mrb[0].mxu0 %v239
    %v1797 = vpop.f32.mrb[0].mxu0
    %v1798 = vadd.f32 0.0, %v1797
    %v1799 = vpop.f32.mrb[0].mxu0
    %1800 = vmatprep.mubr.f32.mxu0 0.0
    %1801 = vmatmul.mubr.f32.gmra.mrb[0].mxu0 %v242
    %v1802 = vpop.f32.mrb[0].mxu0
    %v1803 = vadd.f32 0.0, %v1802
    %v1804 = vpop.f32.mrb[0].mxu0
    %1805 = vmatprep.mubr.f32.mxu0 0.0
    %1806 = vmatmul.mubr.f32.gmra.mrb[0].mxu0 %v245
    %v1807 = vpop.f32.mrb[0].mxu0
    %v1808 = vadd.f32 0.0, %v1807
    %v1809 = vpop.f32.mrb[0].mxu0
    %1810 = vmatprep.mubr.f32.mxu0 0.0
    %1811 = vmatmul.mubr.f32.gmra.mrb[0].mxu0 %v248
    %v1812 = vpop.f32.mrb[0].mxu0
    %v1813 = vadd.f32 0.0, %v1812
    %v1814 = vpop.f32.mrb[0].mxu0
    %1815 = vmatprep.mubr.f32.mxu0 0.0
    %1816 = vmatmul.mubr.f32.gmra.mrb[0].mxu0 %v251
    %v1817 = vpop.f32.mrb[0].mxu0
    %v1818 = vadd.f32 0.0, %v1817
    %v1819 = vpop.f32.mrb[0].mxu0
    %1820 = vmatprep.mubr.f32.mxu0 0.0
    %1821 = vmatmul.mubr.f32.gmra.mrb[0].mxu0 %v254
    %v1822 = vpop.f32.mrb[0].mxu0
    %v1823 = vadd.f32 0.0, %v1822
    %v1824 = vpop.f32.mrb[0].mxu0
    %1825 = vmatprep.mubr.f32.mxu0 0.0
    %1826 = vmatmul.mubr.f32.gmra.mrb[0].mxu0 %v257
    %v1827 = vpop.f32.mrb[0].mxu0
    %v1828 = vadd.f32 0.0, %v1827
    %v1829 = vpop.f32.mrb[0].mxu0
    %1830 = vmatprep.mubr.f32.mxu0 0.0
    %1831 = vmatmul.mubr.f32.gmra.mrb[0].mxu0 %v260
    %v1832 = vpop.f32.mrb[0].mxu0
    %v1833 = vadd.f32 0.0, %v1832
    %v1834 = vpop.f32.mrb[0].mxu0
    %1835 = vmatprep.mubr.f32.mxu0 0.0
    %1836 = vmatmul.mubr.f32.gmra.mrb[0].mxu0 %v263
    %v1837 = vpop.f32.mrb[0].mxu0
    %v1838 = vadd.f32 0.0, %v1837
    %v1839 = vpop.f32.mrb[0].mxu0
    %1840 = vmatprep.mubr.f32.mxu0 0.0
    %1841 = vmatmul.mubr.f32.gmra.mrb[0].mxu0 %v266
    %v1842 = vpop.f32.mrb[0].mxu0
    %v1843 = vadd.f32 0.0, %v1842
    %v1844 = vpop.f32.mrb[0].mxu0
    %1845 = vmatprep.mubr.f32.mxu0 0.0
    %1846 = vmatmul.mubr.f32.gmra.mrb[0].mxu0 %v269
    %v1847 = vpop.f32.mrb[0].mxu0
    %v1848 = vadd.f32 0.0, %v1847
    %v1849 = vpop.f32.mrb[0].mxu0
    %1850 = vdwg.mxu0
    %v1853 = vunpack.c.l.b16 %v1704
    %v1854 = vunpack.c.l.b16 %v1705
    %v1855 = vpack.c.b16 %v1854, %v1853
    %1857 = vmatprep.subr.bf16.mxu0 0
    %1858 = vmatpush1.bf16.msra.mxu0 %v1855
    %1859 = vmatprep.subr.bf16.mxu0 0
    %1860 = vmatpush1.bf16.msra.mxu0 0
    %1861 = vmatprep.subr.bf16.mxu0 0
    %1862 = vmatpush1.bf16.msra.mxu0 0
    %1863 = vmatprep.subr.bf16.mxu0 0
    %1864 = vmatpush1.bf16.msra.mxu0 0
    %1865 = vmatprep.subr.bf16.mxu0 0
    %1866 = vmatpush1.bf16.msra.mxu0 0
    %1867 = vmatprep.subr.bf16.mxu0 0
    %1868 = vmatpush1.bf16.msra.mxu0 0
    %1869 = vmatprep.subr.bf16.mxu0 0
    %1870 = vmatpush1.bf16.msra.mxu0 0
    %1871 = vmatprep.subr.bf16.mxu0 0
    %1872 = vmatpush1.bf16.msra.mxu0 0
    %1873 = vmatprep.subr.bf16.mxu0 0
    %1874 = vmatpush1.bf16.msra.mxu0 0
    %1875 = vmatprep.subr.bf16.mxu0 0
    %1876 = vmatpush1.bf16.msra.mxu0 0
    %1877 = vmatprep.subr.bf16.mxu0 0
    %1878 = vmatpush1.bf16.msra.mxu0 0
    %1879 = vmatprep.subr.bf16.mxu0 0
    %1880 = vmatpush1.bf16.msra.mxu0 0
    %1881 = vmatprep.subr.bf16.mxu0 0
    %1882 = vmatpush1.bf16.msra.mxu0 0
    %1883 = vmatprep.subr.bf16.mxu0 0
    %1884 = vmatpush1.bf16.msra.mxu0 0
    %1885 = vmatprep.subr.bf16.mxu0 0
    %1886 = vmatpush1.bf16.msra.mxu0 0
    %1887 = vmatprep.subr.bf16.mxu0 0
    %1888 = vmatpush1.bf16.msra.mxu0 0
    %1889 = vmatprep.mubr.bf16.mxu0 0
    %1890 = vmatmul.mubr.bf16.gmra.mrb[0].mxu0 %v464
    %v1891 = vpop.f32.mrb[0].mxu0
    %v1892 = vadd.f32 %v1773, %v1891
    %v1893 = vpop.f32.mrb[0].mxu0
    %v1894 = vpop.f32.mrb[0].mxu0
    %v1895 = vadd.f32 %v1778, %v1894
    %v1896 = vpop.f32.mrb[0].mxu0
    %1897 = vmatprep.mubr.bf16.mxu0 0
    %1898 = vmatmul.mubr.bf16.gmra.mrb[0].mxu0 %v467
    %v1899 = vpop.f32.mrb[0].mxu0
    %v1900 = vadd.f32 %v1783, %v1899
    %v1901 = vpop.f32.mrb[0].mxu0
    %v1902 = vpop.f32.mrb[0].mxu0
    %v1903 = vadd.f32 %v1788, %v1902
    %v1904 = vpop.f32.mrb[0].mxu0
    %1905 = vmatprep.mubr.bf16.mxu0 0
    %1906 = vmatmul.mubr.bf16.gmra.mrb[0].mxu0 %v470
    %v1907 = vpop.f32.mrb[0].mxu0
    %v1908 = vadd.f32 %v1793, %v1907
    %v1909 = vpop.f32.mrb[0].mxu0
    %v1910 = vpop.f32.mrb[0].mxu0
    %v1911 = vadd.f32 %v1798, %v1910
    %v1912 = vpop.f32.mrb[0].mxu0
    %1913 = vmatprep.mubr.bf16.mxu0 0
    %1914 = vmatmul.mubr.bf16.gmra.mrb[0].mxu0 %v473
    %v1915 = vpop.f32.mrb[0].mxu0
    %v1916 = vadd.f32 %v1803, %v1915
    %v1917 = vpop.f32.mrb[0].mxu0
    %v1918 = vpop.f32.mrb[0].mxu0
    %v1919 = vadd.f32 %v1808, %v1918
    %v1920 = vpop.f32.mrb[0].mxu0
    %1921 = vmatprep.mubr.bf16.mxu0 0
    %1922 = vmatmul.mubr.bf16.gmra.mrb[0].mxu0 %v476
    %v1923 = vpop.f32.mrb[0].mxu0
    %v1924 = vadd.f32 %v1813, %v1923
    %v1925 = vpop.f32.mrb[0].mxu0
    %v1926 = vpop.f32.mrb[0].mxu0
    %v1927 = vadd.f32 %v1818, %v1926
    %v1928 = vpop.f32.mrb[0].mxu0
    %1929 = vmatprep.mubr.bf16.mxu0 0
    %1930 = vmatmul.mubr.bf16.gmra.mrb[0].mxu0 %v479
    %v1931 = vpop.f32.mrb[0].mxu0
    %v1932 = vadd.f32 %v1823, %v1931
    %v1933 = vpop.f32.mrb[0].mxu0
    %v1934 = vpop.f32.mrb[0].mxu0
    %v1935 = vadd.f32 %v1828, %v1934
    %v1936 = vpop.f32.mrb[0].mxu0
    %1937 = vmatprep.mubr.bf16.mxu0 0
    %1938 = vmatmul.mubr.bf16.gmra.mrb[0].mxu0 %v482
    %v1939 = vpop.f32.mrb[0].mxu0
    %v1940 = vadd.f32 %v1833, %v1939
    %v1941 = vpop.f32.mrb[0].mxu0
    %v1942 = vpop.f32.mrb[0].mxu0
    %v1943 = vadd.f32 %v1838, %v1942
    %v1944 = vpop.f32.mrb[0].mxu0
    %1945 = vmatprep.mubr.bf16.mxu0 0
    %1946 = vmatmul.mubr.bf16.gmra.mrb[0].mxu0 %v485
    %v1947 = vpop.f32.mrb[0].mxu0
    %v1948 = vadd.f32 %v1843, %v1947
    %v1949 = vpop.f32.mrb[0].mxu0
    %v1950 = vpop.f32.mrb[0].mxu0
    %v1951 = vadd.f32 %v1848, %v1950
    %v1952 = vpop.f32.mrb[0].mxu0
    %1953 = vdwg.mxu0
    %v1954 = vadd.f32 %v1892, %v82
    %v1955 = vadd.f32 %v1895, %v87
    %v1956 = vadd.f32 %v1900, %v92
    %v1957 = vadd.f32 %v1903, %v97
    %v1958 = vadd.f32 %v1908, %v102
    %v1959 = vadd.f32 %v1911, %v107
    %v1960 = vadd.f32 %v1916, %v112
    %v1961 = vadd.f32 %v1919, %v117
    %v1962 = vadd.f32 %v1924, %v122
    %v1963 = vadd.f32 %v1927, %v127
    %v1964 = vadd.f32 %v1932, %v132
    %v1965 = vadd.f32 %v1935, %v137
    %v1966 = vadd.f32 %v1940, %v142
    %v1967 = vadd.f32 %v1943, %v147
    %v1968 = vadd.f32 %v1948, %v152
    %v1969 = vadd.f32 %v1951, %v157
    %v1970 = vxor.u32 %v1954, 2147483648
    %v1971 = vxor.u32 %v1955, 2147483648
    %v1972 = vxor.u32 %v1956, 2147483648
    %v1973 = vxor.u32 %v1957, 2147483648
    %v1974 = vmul.f32 %v1970, 1.442695
    %v1975 = vpow.pop %v1974
    %v1976 = vmul.f32 %v1971, 1.442695
    %v1977 = vpow.pop %v1976
    %v1978 = vmul.f32 %v1972, 1.442695
    %v1979 = vpow.pop %v1978
    %v1980 = vmul.f32 %v1973, 1.442695
    %v1981 = vpow.pop %v1980
    %v1982 = vadd.f32 %v1975, 1.0
    %v1983 = vadd.f32 %v1977, 1.0
    %v1984 = vadd.f32 %v1979, 1.0
    %v1985 = vadd.f32 %v1981, 1.0
    %v1986 = vrcp.pop %v1982
    %v1987 = vmul.f32 1.0, %v1986
    %v1988 = vrcp.pop %v1983
    %v1989 = vmul.f32 1.0, %v1988
    %v1990 = vrcp.pop %v1984
    %v1991 = vmul.f32 1.0, %v1990
    %v1992 = vrcp.pop %v1985
    %v1993 = vmul.f32 1.0, %v1992
    %v1994 = vxor.u32 %v1958, 2147483648
    %v1995 = vxor.u32 %v1959, 2147483648
    %v1996 = vxor.u32 %v1960, 2147483648
    %v1997 = vxor.u32 %v1961, 2147483648
    %v1998 = vmul.f32 %v1994, 1.442695
    %v1999 = vpow.pop %v1998
    %v2000 = vmul.f32 %v1995, 1.442695
    %v2001 = vpow.pop %v2000
    %v2002 = vmul.f32 %v1996, 1.442695
    %v2003 = vpow.pop %v2002
    %v2004 = vmul.f32 %v1997, 1.442695
    %v2005 = vpow.pop %v2004
    %v2006 = vadd.f32 %v1999, 1.0
    %v2007 = vadd.f32 %v2001, 1.0
    %v2008 = vadd.f32 %v2003, 1.0
    %v2009 = vadd.f32 %v2005, 1.0
    %v2010 = vrcp.pop %v2006
    %v2011 = vmul.f32 1.0, %v2010
    %v2012 = vrcp.pop %v2007
    %v2013 = vmul.f32 1.0, %v2012
    %v2014 = vrcp.pop %v2008
    %v2015 = vmul.f32 1.0, %v2014
    %v2016 = vrcp.pop %v2009
    %v2017 = vmul.f32 1.0, %v2016
    %v2018 = vtanh.pop %v1962
    %v2019 = vtanh.pop %v1963
    %v2020 = vtanh.pop %v1964
    %v2021 = vtanh.pop %v1965
    %v2022 = vxor.u32 %v1966, 2147483648
    %v2023 = vxor.u32 %v1967, 2147483648
    %v2024 = vxor.u32 %v1968, 2147483648
    %v2025 = vxor.u32 %v1969, 2147483648
    %v2026 = vmul.f32 %v2022, 1.442695
    %v2027 = vpow.pop %v2026
    %v2028 = vmul.f32 %v2023, 1.442695
    %v2029 = vpow.pop %v2028
    %v2030 = vmul.f32 %v2024, 1.442695
    %v2031 = vpow.pop %v2030
    %v2032 = vmul.f32 %v2025, 1.442695
    %v2033 = vpow.pop %v2032
    %v2034 = vadd.f32 %v2027, 1.0
    %v2035 = vadd.f32 %v2029, 1.0
    %v2036 = vadd.f32 %v2031, 1.0
    %v2037 = vadd.f32 %v2033, 1.0
    %v2038 = vrcp.pop %v2034
    %v2039 = vmul.f32 1.0, %v2038
    %v2040 = vrcp.pop %v2035
    %v2041 = vmul.f32 1.0, %v2040
    %v2042 = vrcp.pop %v2036
    %v2043 = vmul.f32 1.0, %v2042
    %v2044 = vrcp.pop %v2037
    %v2045 = vmul.f32 1.0, %v2044
    %v2046 = vmul.f32 %v2011, %v1601
    %v2047 = vmul.f32 %v2013, %v1602
    %v2048 = vmul.f32 %v2015, %v1603
    %v2049 = vmul.f32 %v2017, %v1604
    %v2050 = vmul.f32 %v1987, %v2018
    %v2051 = vmul.f32 %v1989, %v2019
    %v2052 = vmul.f32 %v1991, %v2020
    %v2053 = vmul.f32 %v1993, %v2021
    %v2054 = vadd.f32 %v2046, %v2050
    %v2055 = vadd.f32 %v2047, %v2051
    %v2056 = vadd.f32 %v2048, %v2052
    %v2057 = vadd.f32 %v2049, %v2053
    %v2058 = vtanh.pop %v2054
    %v2059 = vtanh.pop %v2055
    %v2060 = vtanh.pop %v2056
    %v2061 = vtanh.pop %v2057
    %v2062 = vmul.f32 %v2039, %v2058
    %v2063 = vmul.f32 %v2041, %v2059
    %v2064 = vmul.f32 %v2043, %v2060
    %v2065 = vmul.f32 %v2045, %v2061
    %2066 = vmatprep.subr.mxu0 0.0
    %2067 = vmatpush1.msra.mxu0 %v2062
    %2068 = vmatprep.subr.mxu0 0.0
    %2069 = vmatpush1.msra.mxu0 %v2063
    %2070 = vmatprep.subr.mxu0 0.0
    %2071 = vmatpush1.msra.mxu0 %v2064
    %2072 = vmatprep.subr.mxu0 0.0
    %2073 = vmatpush1.msra.mxu0 %v2065
    %2074 = vmatprep.subr.mxu0 0.0
    %2075 = vmatpush1.msra.mxu0 0.0
    %2076 = vmatprep.subr.mxu0 0.0
    %2077 = vmatpush1.msra.mxu0 0.0
    %2078 = vmatprep.subr.mxu0 0.0
    %2079 = vmatpush1.msra.mxu0 0.0
    %2080 = vmatprep.subr.mxu0 0.0
    %2081 = vmatpush1.msra.mxu0 0.0
    %2082 = vmatprep.subr.mxu0 0.0
    %2083 = vmatpush1.msra.mxu0 0.0
    %2084 = vmatprep.subr.mxu0 0.0
    %2085 = vmatpush1.msra.mxu0 0.0
    %2086 = vmatprep.subr.mxu0 0.0
    %2087 = vmatpush1.msra.mxu0 0.0
    %2088 = vmatprep.subr.mxu0 0.0
    %2089 = vmatpush1.msra.mxu0 0.0
    %2090 = vmatprep.subr.mxu0 0.0
    %2091 = vmatpush1.msra.mxu0 0.0
    %2092 = vmatprep.subr.mxu0 0.0
    %2093 = vmatpush1.msra.mxu0 0.0
    %2094 = vmatprep.subr.mxu0 0.0
    %2095 = vmatpush1.msra.mxu0 0.0
    %2096 = vmatprep.subr.mxu0 0.0
    %2097 = vmatpush1.msra.mxu0 0.0
    %2098 = vmatprep.subr.mxu0 0.0
    %2099 = vmatpush1.msra.mxu0 0.0
    %2100 = vmatprep.subr.mxu0 0.0
    %2101 = vmatpush1.msra.mxu0 0.0
    %2102 = vmatprep.subr.mxu0 0.0
    %2103 = vmatpush1.msra.mxu0 0.0
    %2104 = vmatprep.subr.mxu0 0.0
    %2105 = vmatpush1.msra.mxu0 0.0
    %2106 = vmatprep.subr.mxu0 0.0
    %2107 = vmatpush1.msra.mxu0 0.0
    %2108 = vmatprep.subr.mxu0 0.0
    %2109 = vmatpush1.msra.mxu0 0.0
    %2110 = vmatprep.subr.mxu0 0.0
    %2111 = vmatpush1.msra.mxu0 0.0
    %2112 = vmatprep.subr.mxu0 0.0
    %2113 = vmatpush1.msra.mxu0 0.0
    %2114 = vmatprep.subr.mxu0 0.0
    %2115 = vmatpush1.msra.mxu0 0.0
    %2116 = vmatprep.subr.mxu0 0.0
    %2117 = vmatpush1.msra.mxu0 0.0
    %2118 = vmatprep.subr.mxu0 0.0
    %2119 = vmatpush1.msra.mxu0 0.0
    %2120 = vmatprep.subr.mxu0 0.0
    %2121 = vmatpush1.msra.mxu0 0.0
    %2122 = vmatprep.subr.mxu0 0.0
    %2123 = vmatpush1.msra.mxu0 0.0
    %2124 = vmatprep.subr.mxu0 0.0
    %2125 = vmatpush1.msra.mxu0 0.0
    %2126 = vmatprep.subr.mxu0 0.0
    %2127 = vmatpush1.msra.mxu0 0.0
    %2128 = vmatprep.subr.mxu0 0.0
    %2129 = vmatpush1.msra.mxu0 0.0
    %2130 = vmatprep.mubr.f32.mxu0 0.0
    %2131 = vmatmul.mubr.f32.gmra.mrb[0].mxu0 %v697
    %v2132 = vpop.f32.mrb[0].mxu0
    %v2133 = vadd.f32 %v190, %v2132
    %v2134 = vpop.f32.mrb[0].mxu0
    %2135 = vmatprep.mubr.f32.mxu0 0.0
    %2136 = vmatmul.mubr.f32.gmra.mrb[0].mxu0 %v700
    %v2137 = vpop.f32.mrb[0].mxu0
    %v2138 = vadd.f32 %v195, %v2137
    %v2139 = vpop.f32.mrb[0].mxu0
    %2140 = vmatprep.mubr.f32.mxu0 0.0
    %2141 = vmatmul.mubr.f32.gmra.mrb[0].mxu0 %v703
    %v2142 = vpop.f32.mrb[0].mxu0
    %v2143 = vadd.f32 %v200, %v2142
    %v2144 = vpop.f32.mrb[0].mxu0
    %2145 = vmatprep.mubr.f32.mxu0 0.0
    %2146 = vmatmul.mubr.f32.gmra.mrb[0].mxu0 %v706
    %v2147 = vpop.f32.mrb[0].mxu0
    %v2148 = vadd.f32 %v205, %v2147
    %v2149 = vpop.f32.mrb[0].mxu0
    %2150 = vdwg.mxu0
    %s2151 = scalar_lea.vmem [#allocation2], 96
    %2152 = vst [vmem:[%s2151] sm:$0xff] %v2133
    %2153 = vst [vmem:[%s2151 + $0x8] sm:$0xff] %v2138
    %2154 = vst [vmem:[%s2151 + $0x10] sm:$0xff] %v2143
    %2155 = vst [vmem:[%s2151 + $0x18] sm:$0xff] %v2148
    %s2156 = scalar_lea.vmem %s0, 32
    %v2157 = vld [vmem:[%s2156] sm:$0xf]
    %v2158 = vld [vmem:[%s2156 + $0x4] sm:$0xf]
    %2159 = vmatprep.subr.mxu0 0.0
    %2160 = vmatpush1.msra.mxu0 %v2062
    %2161 = vmatprep.subr.mxu0 0.0
    %2162 = vmatpush1.msra.mxu0 %v2063
    %2163 = vmatprep.subr.mxu0 0.0
    %2164 = vmatpush1.msra.mxu0 %v2064
    %2165 = vmatprep.subr.mxu0 0.0
    %2166 = vmatpush1.msra.mxu0 %v2065
    %2167 = vmatprep.subr.mxu0 0.0
    %2168 = vmatpush1.msra.mxu0 0.0
    %2169 = vmatprep.subr.mxu0 0.0
    %2170 = vmatpush1.msra.mxu0 0.0
    %2171 = vmatprep.subr.mxu0 0.0
    %2172 = vmatpush1.msra.mxu0 0.0
    %2173 = vmatprep.subr.mxu0 0.0
    %2174 = vmatpush1.msra.mxu0 0.0
    %2175 = vmatprep.subr.mxu0 0.0
    %2176 = vmatpush1.msra.mxu0 0.0
    %2177 = vmatprep.subr.mxu0 0.0
    %2178 = vmatpush1.msra.mxu0 0.0
    %2179 = vmatprep.subr.mxu0 0.0
    %2180 = vmatpush1.msra.mxu0 0.0
    %2181 = vmatprep.subr.mxu0 0.0
    %2182 = vmatpush1.msra.mxu0 0.0
    %2183 = vmatprep.subr.mxu0 0.0
    %2184 = vmatpush1.msra.mxu0 0.0
    %2185 = vmatprep.subr.mxu0 0.0
    %2186 = vmatpush1.msra.mxu0 0.0
    %2187 = vmatprep.subr.mxu0 0.0
    %2188 = vmatpush1.msra.mxu0 0.0
    %2189 = vmatprep.subr.mxu0 0.0
    %2190 = vmatpush1.msra.mxu0 0.0
    %2191 = vmatprep.subr.mxu0 0.0
    %2192 = vmatpush1.msra.mxu0 0.0
    %2193 = vmatprep.subr.mxu0 0.0
    %2194 = vmatpush1.msra.mxu0 0.0
    %2195 = vmatprep.subr.mxu0 0.0
    %2196 = vmatpush1.msra.mxu0 0.0
    %2197 = vmatprep.subr.mxu0 0.0
    %2198 = vmatpush1.msra.mxu0 0.0
    %2199 = vmatprep.subr.mxu0 0.0
    %2200 = vmatpush1.msra.mxu0 0.0
    %2201 = vmatprep.subr.mxu0 0.0
    %2202 = vmatpush1.msra.mxu0 0.0
    %2203 = vmatprep.subr.mxu0 0.0
    %2204 = vmatpush1.msra.mxu0 0.0
    %2205 = vmatprep.subr.mxu0 0.0
    %2206 = vmatpush1.msra.mxu0 0.0
    %2207 = vmatprep.subr.mxu0 0.0
    %2208 = vmatpush1.msra.mxu0 0.0
    %2209 = vmatprep.subr.mxu0 0.0
    %2210 = vmatpush1.msra.mxu0 0.0
    %2211 = vmatprep.subr.mxu0 0.0
    %2212 = vmatpush1.msra.mxu0 0.0
    %2213 = vmatprep.subr.mxu0 0.0
    %2214 = vmatpush1.msra.mxu0 0.0
    %2215 = vmatprep.subr.mxu0 0.0
    %2216 = vmatpush1.msra.mxu0 0.0
    %2217 = vmatprep.subr.mxu0 0.0
    %2218 = vmatpush1.msra.mxu0 0.0
    %2219 = vmatprep.subr.mxu0 0.0
    %2220 = vmatpush1.msra.mxu0 0.0
    %2221 = vmatprep.subr.mxu0 0.0
    %2222 = vmatpush1.msra.mxu0 0.0
    %2223 = vmatprep.mubr.f32.mxu0 0.0
    %2224 = vmatmul.mubr.f32.gmra.mrb[0].mxu0 %v224
    %v2225 = vpop.f32.mrb[0].mxu0
    %v2226 = vadd.f32 0.0, %v2225
    %v2227 = vpop.f32.mrb[0].mxu0
    %2228 = vmatprep.mubr.f32.mxu0 0.0
    %2229 = vmatmul.mubr.f32.gmra.mrb[0].mxu0 %v227
    %v2230 = vpop.f32.mrb[0].mxu0
    %v2231 = vadd.f32 0.0, %v2230
    %v2232 = vpop.f32.mrb[0].mxu0
    %2233 = vmatprep.mubr.f32.mxu0 0.0
    %2234 = vmatmul.mubr.f32.gmra.mrb[0].mxu0 %v230
    %v2235 = vpop.f32.mrb[0].mxu0
    %v2236 = vadd.f32 0.0, %v2235
    %v2237 = vpop.f32.mrb[0].mxu0
    %2238 = vmatprep.mubr.f32.mxu0 0.0
    %2239 = vmatmul.mubr.f32.gmra.mrb[0].mxu0 %v233
    %v2240 = vpop.f32.mrb[0].mxu0
    %v2241 = vadd.f32 0.0, %v2240
    %v2242 = vpop.f32.mrb[0].mxu0
    %2243 = vmatprep.mubr.f32.mxu0 0.0
    %2244 = vmatmul.mubr.f32.gmra.mrb[0].mxu0 %v236
    %v2245 = vpop.f32.mrb[0].mxu0
    %v2246 = vadd.f32 0.0, %v2245
    %v2247 = vpop.f32.mrb[0].mxu0
    %2248 = vmatprep.mubr.f32.mxu0 0.0
    %2249 = vmatmul.mubr.f32.gmra.mrb[0].mxu0 %v239
    %v2250 = vpop.f32.mrb[0].mxu0
    %v2251 = vadd.f32 0.0, %v2250
    %v2252 = vpop.f32.mrb[0].mxu0
    %2253 = vmatprep.mubr.f32.mxu0 0.0
    %2254 = vmatmul.mubr.f32.gmra.mrb[0].mxu0 %v242
    %v2255 = vpop.f32.mrb[0].mxu0
    %v2256 = vadd.f32 0.0, %v2255
    %v2257 = vpop.f32.mrb[0].mxu0
    %2258 = vmatprep.mubr.f32.mxu0 0.0
    %2259 = vmatmul.mubr.f32.gmra.mrb[0].mxu0 %v245
    %v2260 = vpop.f32.mrb[0].mxu0
    %v2261 = vadd.f32 0.0, %v2260
    %v2262 = vpop.f32.mrb[0].mxu0
    %2263 = vmatprep.mubr.f32.mxu0 0.0
    %2264 = vmatmul.mubr.f32.gmra.mrb[0].mxu0 %v248
    %v2265 = vpop.f32.mrb[0].mxu0
    %v2266 = vadd.f32 0.0, %v2265
    %v2267 = vpop.f32.mrb[0].mxu0
    %2268 = vmatprep.mubr.f32.mxu0 0.0
    %2269 = vmatmul.mubr.f32.gmra.mrb[0].mxu0 %v251
    %v2270 = vpop.f32.mrb[0].mxu0
    %v2271 = vadd.f32 0.0, %v2270
    %v2272 = vpop.f32.mrb[0].mxu0
    %2273 = vmatprep.mubr.f32.mxu0 0.0
    %2274 = vmatmul.mubr.f32.gmra.mrb[0].mxu0 %v254
    %v2275 = vpop.f32.mrb[0].mxu0
    %v2276 = vadd.f32 0.0, %v2275
    %v2277 = vpop.f32.mrb[0].mxu0
    %2278 = vmatprep.mubr.f32.mxu0 0.0
    %2279 = vmatmul.mubr.f32.gmra.mrb[0].mxu0 %v257
    %v2280 = vpop.f32.mrb[0].mxu0
    %v2281 = vadd.f32 0.0, %v2280
    %v2282 = vpop.f32.mrb[0].mxu0
    %2283 = vmatprep.mubr.f32.mxu0 0.0
    %2284 = vmatmul.mubr.f32.gmra.mrb[0].mxu0 %v260
    %v2285 = vpop.f32.mrb[0].mxu0
    %v2286 = vadd.f32 0.0, %v2285
    %v2287 = vpop.f32.mrb[0].mxu0
    %2288 = vmatprep.mubr.f32.mxu0 0.0
    %2289 = vmatmul.mubr.f32.gmra.mrb[0].mxu0 %v263
    %v2290 = vpop.f32.mrb[0].mxu0
    %v2291 = vadd.f32 0.0, %v2290
    %v2292 = vpop.f32.mrb[0].mxu0
    %2293 = vmatprep.mubr.f32.mxu0 0.0
    %2294 = vmatmul.mubr.f32.gmra.mrb[0].mxu0 %v266
    %v2295 = vpop.f32.mrb[0].mxu0
    %v2296 = vadd.f32 0.0, %v2295
    %v2297 = vpop.f32.mrb[0].mxu0
    %2298 = vmatprep.mubr.f32.mxu0 0.0
    %2299 = vmatmul.mubr.f32.gmra.mrb[0].mxu0 %v269
    %v2300 = vpop.f32.mrb[0].mxu0
    %v2301 = vadd.f32 0.0, %v2300
    %v2302 = vpop.f32.mrb[0].mxu0
    %2303 = vdwg.mxu0
    %v2306 = vunpack.c.l.b16 %v2157
    %v2307 = vunpack.c.l.b16 %v2158
    %v2308 = vpack.c.b16 %v2307, %v2306
    %2310 = vmatprep.subr.bf16.mxu0 0
    %2311 = vmatpush1.bf16.msra.mxu0 %v2308
    %2312 = vmatprep.subr.bf16.mxu0 0
    %2313 = vmatpush1.bf16.msra.mxu0 0
    %2314 = vmatprep.subr.bf16.mxu0 0
    %2315 = vmatpush1.bf16.msra.mxu0 0
    %2316 = vmatprep.subr.bf16.mxu0 0
    %2317 = vmatpush1.bf16.msra.mxu0 0
    %2318 = vmatprep.subr.bf16.mxu0 0
    %2319 = vmatpush1.bf16.msra.mxu0 0
    %2320 = vmatprep.subr.bf16.mxu0 0
    %2321 = vmatpush1.bf16.msra.mxu0 0
    %2322 = vmatprep.subr.bf16.mxu0 0
    %2323 = vmatpush1.bf16.msra.mxu0 0
    %2324 = vmatprep.subr.bf16.mxu0 0
    %2325 = vmatpush1.bf16.msra.mxu0 0
    %2326 = vmatprep.subr.bf16.mxu0 0
    %2327 = vmatpush1.bf16.msra.mxu0 0
    %2328 = vmatprep.subr.bf16.mxu0 0
    %2329 = vmatpush1.bf16.msra.mxu0 0
    %2330 = vmatprep.subr.bf16.mxu0 0
    %2331 = vmatpush1.bf16.msra.mxu0 0
    %2332 = vmatprep.subr.bf16.mxu0 0
    %2333 = vmatpush1.bf16.msra.mxu0 0
    %2334 = vmatprep.subr.bf16.mxu0 0
    %2335 = vmatpush1.bf16.msra.mxu0 0
    %2336 = vmatprep.subr.bf16.mxu0 0
    %2337 = vmatpush1.bf16.msra.mxu0 0
    %2338 = vmatprep.subr.bf16.mxu0 0
    %2339 = vmatpush1.bf16.msra.mxu0 0
    %2340 = vmatprep.subr.bf16.mxu0 0
    %2341 = vmatpush1.bf16.msra.mxu0 0
    %2342 = vmatprep.mubr.bf16.mxu0 0
    %2343 = vmatmul.mubr.bf16.gmra.mrb[0].mxu0 %v464
    %v2344 = vpop.f32.mrb[0].mxu0
    %v2345 = vadd.f32 %v2226, %v2344
    %v2346 = vpop.f32.mrb[0].mxu0
    %v2347 = vpop.f32.mrb[0].mxu0
    %v2348 = vadd.f32 %v2231, %v2347
    %v2349 = vpop.f32.mrb[0].mxu0
    %2350 = vmatprep.mubr.bf16.mxu0 0
    %2351 = vmatmul.mubr.bf16.gmra.mrb[0].mxu0 %v467
    %v2352 = vpop.f32.mrb[0].mxu0
    %v2353 = vadd.f32 %v2236, %v2352
    %v2354 = vpop.f32.mrb[0].mxu0
    %v2355 = vpop.f32.mrb[0].mxu0
    %v2356 = vadd.f32 %v2241, %v2355
    %v2357 = vpop.f32.mrb[0].mxu0
    %2358 = vmatprep.mubr.bf16.mxu0 0
    %2359 = vmatmul.mubr.bf16.gmra.mrb[0].mxu0 %v470
    %v2360 = vpop.f32.mrb[0].mxu0
    %v2361 = vadd.f32 %v2246, %v2360
    %v2362 = vpop.f32.mrb[0].mxu0
    %v2363 = vpop.f32.mrb[0].mxu0
    %v2364 = vadd.f32 %v2251, %v2363
    %v2365 = vpop.f32.mrb[0].mxu0
    %2366 = vmatprep.mubr.bf16.mxu0 0
    %2367 = vmatmul.mubr.bf16.gmra.mrb[0].mxu0 %v473
    %v2368 = vpop.f32.mrb[0].mxu0
    %v2369 = vadd.f32 %v2256, %v2368
    %v2370 = vpop.f32.mrb[0].mxu0
    %v2371 = vpop.f32.mrb[0].mxu0
    %v2372 = vadd.f32 %v2261, %v2371
    %v2373 = vpop.f32.mrb[0].mxu0
    %2374 = vmatprep.mubr.bf16.mxu0 0
    %2375 = vmatmul.mubr.bf16.gmra.mrb[0].mxu0 %v476
    %v2376 = vpop.f32.mrb[0].mxu0
    %v2377 = vadd.f32 %v2266, %v2376
    %v2378 = vpop.f32.mrb[0].mxu0
    %v2379 = vpop.f32.mrb[0].mxu0
    %v2380 = vadd.f32 %v2271, %v2379
    %v2381 = vpop.f32.mrb[0].mxu0
    %2382 = vmatprep.mubr.bf16.mxu0 0
    %2383 = vmatmul.mubr.bf16.gmra.mrb[0].mxu0 %v479
    %v2384 = vpop.f32.mrb[0].mxu0
    %v2385 = vadd.f32 %v2276, %v2384
    %v2386 = vpop.f32.mrb[0].mxu0
    %v2387 = vpop.f32.mrb[0].mxu0
    %v2388 = vadd.f32 %v2281, %v2387
    %v2389 = vpop.f32.mrb[0].mxu0
    %2390 = vmatprep.mubr.bf16.mxu0 0
    %2391 = vmatmul.mubr.bf16.gmra.mrb[0].mxu0 %v482
    %v2392 = vpop.f32.mrb[0].mxu0
    %v2393 = vadd.f32 %v2286, %v2392
    %v2394 = vpop.f32.mrb[0].mxu0
    %v2395 = vpop.f32.mrb[0].mxu0
    %v2396 = vadd.f32 %v2291, %v2395
    %v2397 = vpop.f32.mrb[0].mxu0
    %2398 = vmatprep.mubr.bf16.mxu0 0
    %2399 = vmatmul.mubr.bf16.gmra.mrb[0].mxu0 %v485
    %v2400 = vpop.f32.mrb[0].mxu0
    %v2401 = vadd.f32 %v2296, %v2400
    %v2402 = vpop.f32.mrb[0].mxu0
    %v2403 = vpop.f32.mrb[0].mxu0
    %v2404 = vadd.f32 %v2301, %v2403
    %v2405 = vpop.f32.mrb[0].mxu0
    %2406 = vdwg.mxu0
    %v2407 = vadd.f32 %v2345, %v82
    %v2408 = vadd.f32 %v2348, %v87
    %v2409 = vadd.f32 %v2353, %v92
    %v2410 = vadd.f32 %v2356, %v97
    %v2411 = vadd.f32 %v2361, %v102
    %v2412 = vadd.f32 %v2364, %v107
    %v2413 = vadd.f32 %v2369, %v112
    %v2414 = vadd.f32 %v2372, %v117
    %v2415 = vadd.f32 %v2377, %v122
    %v2416 = vadd.f32 %v2380, %v127
    %v2417 = vadd.f32 %v2385, %v132
    %v2418 = vadd.f32 %v2388, %v137
    %v2419 = vadd.f32 %v2393, %v142
    %v2420 = vadd.f32 %v2396, %v147
    %v2421 = vadd.f32 %v2401, %v152
    %v2422 = vadd.f32 %v2404, %v157
    %v2423 = vxor.u32 %v2407, 2147483648
    %v2424 = vxor.u32 %v2408, 2147483648
    %v2425 = vxor.u32 %v2409, 2147483648
    %v2426 = vxor.u32 %v2410, 2147483648
    %v2427 = vmul.f32 %v2423, 1.442695
    %v2428 = vpow.pop %v2427
    %v2429 = vmul.f32 %v2424, 1.442695
    %v2430 = vpow.pop %v2429
    %v2431 = vmul.f32 %v2425, 1.442695
    %v2432 = vpow.pop %v2431
    %v2433 = vmul.f32 %v2426, 1.442695
    %v2434 = vpow.pop %v2433
    %v2435 = vadd.f32 %v2428, 1.0
    %v2436 = vadd.f32 %v2430, 1.0
    %v2437 = vadd.f32 %v2432, 1.0
    %v2438 = vadd.f32 %v2434, 1.0
    %v2439 = vrcp.pop %v2435
    %v2440 = vmul.f32 1.0, %v2439
    %v2441 = vrcp.pop %v2436
    %v2442 = vmul.f32 1.0, %v2441
    %v2443 = vrcp.pop %v2437
    %v2444 = vmul.f32 1.0, %v2443
    %v2445 = vrcp.pop %v2438
    %v2446 = vmul.f32 1.0, %v2445
    %v2447 = vxor.u32 %v2411, 2147483648
    %v2448 = vxor.u32 %v2412, 2147483648
    %v2449 = vxor.u32 %v2413, 2147483648
    %v2450 = vxor.u32 %v2414, 2147483648
    %v2451 = vmul.f32 %v2447, 1.442695
    %v2452 = vpow.pop %v2451
    %v2453 = vmul.f32 %v2448, 1.442695
    %v2454 = vpow.pop %v2453
    %v2455 = vmul.f32 %v2449, 1.442695
    %v2456 = vpow.pop %v2455
    %v2457 = vmul.f32 %v2450, 1.442695
    %v2458 = vpow.pop %v2457
    %v2459 = vadd.f32 %v2452, 1.0
    %v2460 = vadd.f32 %v2454, 1.0
    %v2461 = vadd.f32 %v2456, 1.0
    %v2462 = vadd.f32 %v2458, 1.0
    %v2463 = vrcp.pop %v2459
    %v2464 = vmul.f32 1.0, %v2463
    %v2465 = vrcp.pop %v2460
    %v2466 = vmul.f32 1.0, %v2465
    %v2467 = vrcp.pop %v2461
    %v2468 = vmul.f32 1.0, %v2467
    %v2469 = vrcp.pop %v2462
    %v2470 = vmul.f32 1.0, %v2469
    %v2471 = vtanh.pop %v2415
    %v2472 = vtanh.pop %v2416
    %v2473 = vtanh.pop %v2417
    %v2474 = vtanh.pop %v2418
    %v2475 = vxor.u32 %v2419, 2147483648
    %v2476 = vxor.u32 %v2420, 2147483648
    %v2477 = vxor.u32 %v2421, 2147483648
    %v2478 = vxor.u32 %v2422, 2147483648
    %v2479 = vmul.f32 %v2475, 1.442695
    %v2480 = vpow.pop %v2479
    %v2481 = vmul.f32 %v2476, 1.442695
    %v2482 = vpow.pop %v2481
    %v2483 = vmul.f32 %v2477, 1.442695
    %v2484 = vpow.pop %v2483
    %v2485 = vmul.f32 %v2478, 1.442695
    %v2486 = vpow.pop %v2485
    %v2487 = vadd.f32 %v2480, 1.0
    %v2488 = vadd.f32 %v2482, 1.0
    %v2489 = vadd.f32 %v2484, 1.0
    %v2490 = vadd.f32 %v2486, 1.0
    %v2491 = vrcp.pop %v2487
    %v2492 = vmul.f32 1.0, %v2491
    %v2493 = vrcp.pop %v2488
    %v2494 = vmul.f32 1.0, %v2493
    %v2495 = vrcp.pop %v2489
    %v2496 = vmul.f32 1.0, %v2495
    %v2497 = vrcp.pop %v2490
    %v2498 = vmul.f32 1.0, %v2497
    %v2499 = vmul.f32 %v2464, %v2054
    %v2500 = vmul.f32 %v2466, %v2055
    %v2501 = vmul.f32 %v2468, %v2056
    %v2502 = vmul.f32 %v2470, %v2057
    %v2503 = vmul.f32 %v2440, %v2471
    %v2504 = vmul.f32 %v2442, %v2472
    %v2505 = vmul.f32 %v2444, %v2473
    %v2506 = vmul.f32 %v2446, %v2474
    %v2507 = vadd.f32 %v2499, %v2503
    %v2508 = vadd.f32 %v2500, %v2504
    %v2509 = vadd.f32 %v2501, %v2505
    %v2510 = vadd.f32 %v2502, %v2506
    %v2511 = vtanh.pop %v2507
    %v2512 = vtanh.pop %v2508
    %v2513 = vtanh.pop %v2509
    %v2514 = vtanh.pop %v2510
    %v2515 = vmul.f32 %v2492, %v2511
    %v2516 = vmul.f32 %v2494, %v2512
    %v2517 = vmul.f32 %v2496, %v2513
    %v2518 = vmul.f32 %v2498, %v2514
    %2519 = vmatprep.subr.mxu0 0.0
    %2520 = vmatpush1.msra.mxu0 %v2515
    %2521 = vmatprep.subr.mxu0 0.0
    %2522 = vmatpush1.msra.mxu0 %v2516
    %2523 = vmatprep.subr.mxu0 0.0
    %2524 = vmatpush1.msra.mxu0 %v2517
    %2525 = vmatprep.subr.mxu0 0.0
    %2526 = vmatpush1.msra.mxu0 %v2518
    %2527 = vmatprep.subr.mxu0 0.0
    %2528 = vmatpush1.msra.mxu0 0.0
    %2529 = vmatprep.subr.mxu0 0.0
    %2530 = vmatpush1.msra.mxu0 0.0
    %2531 = vmatprep.subr.mxu0 0.0
    %2532 = vmatpush1.msra.mxu0 0.0
    %2533 = vmatprep.subr.mxu0 0.0
    %2534 = vmatpush1.msra.mxu0 0.0
    %2535 = vmatprep.subr.mxu0 0.0
    %2536 = vmatpush1.msra.mxu0 0.0
    %2537 = vmatprep.subr.mxu0 0.0
    %2538 = vmatpush1.msra.mxu0 0.0
    %2539 = vmatprep.subr.mxu0 0.0
    %2540 = vmatpush1.msra.mxu0 0.0
    %2541 = vmatprep.subr.mxu0 0.0
    %2542 = vmatpush1.msra.mxu0 0.0
    %2543 = vmatprep.subr.mxu0 0.0
    %2544 = vmatpush1.msra.mxu0 0.0
    %2545 = vmatprep.subr.mxu0 0.0
    %2546 = vmatpush1.msra.mxu0 0.0
    %2547 = vmatprep.subr.mxu0 0.0
    %2548 = vmatpush1.msra.mxu0 0.0
    %2549 = vmatprep.subr.mxu0 0.0
    %2550 = vmatpush1.msra.mxu0 0.0
    %2551 = vmatprep.subr.mxu0 0.0
    %2552 = vmatpush1.msra.mxu0 0.0
    %2553 = vmatprep.subr.mxu0 0.0
    %2554 = vmatpush1.msra.mxu0 0.0
    %2555 = vmatprep.subr.mxu0 0.0
    %2556 = vmatpush1.msra.mxu0 0.0
    %2557 = vmatprep.subr.mxu0 0.0
    %2558 = vmatpush1.msra.mxu0 0.0
    %2559 = vmatprep.subr.mxu0 0.0
    %2560 = vmatpush1.msra.mxu0 0.0
    %2561 = vmatprep.subr.mxu0 0.0
    %2562 = vmatpush1.msra.mxu0 0.0
    %2563 = vmatprep.subr.mxu0 0.0
    %2564 = vmatpush1.msra.mxu0 0.0
    %2565 = vmatprep.subr.mxu0 0.0
    %2566 = vmatpush1.msra.mxu0 0.0
    %2567 = vmatprep.subr.mxu0 0.0
    %2568 = vmatpush1.msra.mxu0 0.0
    %2569 = vmatprep.subr.mxu0 0.0
    %2570 = vmatpush1.msra.mxu0 0.0
    %2571 = vmatprep.subr.mxu0 0.0
    %2572 = vmatpush1.msra.mxu0 0.0
    %2573 = vmatprep.subr.mxu0 0.0
    %2574 = vmatpush1.msra.mxu0 0.0
    %2575 = vmatprep.subr.mxu0 0.0
    %2576 = vmatpush1.msra.mxu0 0.0
    %2577 = vmatprep.subr.mxu0 0.0
    %2578 = vmatpush1.msra.mxu0 0.0
    %2579 = vmatprep.subr.mxu0 0.0
    %2580 = vmatpush1.msra.mxu0 0.0
    %2581 = vmatprep.subr.mxu0 0.0
    %2582 = vmatpush1.msra.mxu0 0.0
    %2583 = vmatprep.mubr.f32.mxu0 0.0
    %2584 = vmatmul.mubr.f32.gmra.mrb[0].mxu0 %v697
    %v2585 = vpop.f32.mrb[0].mxu0
    %v2586 = vadd.f32 %v190, %v2585
    %v2587 = vpop.f32.mrb[0].mxu0
    %2588 = vmatprep.mubr.f32.mxu0 0.0
    %2589 = vmatmul.mubr.f32.gmra.mrb[0].mxu0 %v700
    %v2590 = vpop.f32.mrb[0].mxu0
    %v2591 = vadd.f32 %v195, %v2590
    %v2592 = vpop.f32.mrb[0].mxu0
    %2593 = vmatprep.mubr.f32.mxu0 0.0
    %2594 = vmatmul.mubr.f32.gmra.mrb[0].mxu0 %v703
    %v2595 = vpop.f32.mrb[0].mxu0
    %v2596 = vadd.f32 %v200, %v2595
    %v2597 = vpop.f32.mrb[0].mxu0
    %2598 = vmatprep.mubr.f32.mxu0 0.0
    %2599 = vmatmul.mubr.f32.gmra.mrb[0].mxu0 %v706
    %v2600 = vpop.f32.mrb[0].mxu0
    %v2601 = vadd.f32 %v205, %v2600
    %v2602 = vpop.f32.mrb[0].mxu0
    %2603 = vdwg.mxu0
    %s2604 = scalar_lea.vmem [#allocation2], 128
    %2605 = vst [vmem:[%s2604] sm:$0xff] %v2586
    %2606 = vst [vmem:[%s2604 + $0x8] sm:$0xff] %v2591
    %2607 = vst [vmem:[%s2604 + $0x10] sm:$0xff] %v2596
    %2608 = vst [vmem:[%s2604 + $0x18] sm:$0xff] %v2601
    %s2609 = scalar_lea.vmem %s0, 40
    %v2610 = vld [vmem:[%s2609] sm:$0xf]
    %v2611 = vld [vmem:[%s2609 + $0x4] sm:$0xf]
    %2612 = vmatprep.subr.mxu0 0.0
    %2613 = vmatpush1.msra.mxu0 %v2515
    %2614 = vmatprep.subr.mxu0 0.0
    %2615 = vmatpush1.msra.mxu0 %v2516
    %2616 = vmatprep.subr.mxu0 0.0
    %2617 = vmatpush1.msra.mxu0 %v2517
    %2618 = vmatprep.subr.mxu0 0.0
    %2619 = vmatpush1.msra.mxu0 %v2518
    %2620 = vmatprep.subr.mxu0 0.0
    %2621 = vmatpush1.msra.mxu0 0.0
    %2622 = vmatprep.subr.mxu0 0.0
    %2623 = vmatpush1.msra.mxu0 0.0
    %2624 = vmatprep.subr.mxu0 0.0
    %2625 = vmatpush1.msra.mxu0 0.0
    %2626 = vmatprep.subr.mxu0 0.0
    %2627 = vmatpush1.msra.mxu0 0.0
    %2628 = vmatprep.subr.mxu0 0.0
    %2629 = vmatpush1.msra.mxu0 0.0
    %2630 = vmatprep.subr.mxu0 0.0
    %2631 = vmatpush1.msra.mxu0 0.0
    %2632 = vmatprep.subr.mxu0 0.0
    %2633 = vmatpush1.msra.mxu0 0.0
    %2634 = vmatprep.subr.mxu0 0.0
    %2635 = vmatpush1.msra.mxu0 0.0
    %2636 = vmatprep.subr.mxu0 0.0
    %2637 = vmatpush1.msra.mxu0 0.0
    %2638 = vmatprep.subr.mxu0 0.0
    %2639 = vmatpush1.msra.mxu0 0.0
    %2640 = vmatprep.subr.mxu0 0.0
    %2641 = vmatpush1.msra.mxu0 0.0
    %2642 = vmatprep.subr.mxu0 0.0
    %2643 = vmatpush1.msra.mxu0 0.0
    %2644 = vmatprep.subr.mxu0 0.0
    %2645 = vmatpush1.msra.mxu0 0.0
    %2646 = vmatprep.subr.mxu0 0.0
    %2647 = vmatpush1.msra.mxu0 0.0
    %2648 = vmatprep.subr.mxu0 0.0
    %2649 = vmatpush1.msra.mxu0 0.0
    %2650 = vmatprep.subr.mxu0 0.0
    %2651 = vmatpush1.msra.mxu0 0.0
    %2652 = vmatprep.subr.mxu0 0.0
    %2653 = vmatpush1.msra.mxu0 0.0
    %2654 = vmatprep.subr.mxu0 0.0
    %2655 = vmatpush1.msra.mxu0 0.0
    %2656 = vmatprep.subr.mxu0 0.0
    %2657 = vmatpush1.msra.mxu0 0.0
    %2658 = vmatprep.subr.mxu0 0.0
    %2659 = vmatpush1.msra.mxu0 0.0
    %2660 = vmatprep.subr.mxu0 0.0
    %2661 = vmatpush1.msra.mxu0 0.0
    %2662 = vmatprep.subr.mxu0 0.0
    %2663 = vmatpush1.msra.mxu0 0.0
    %2664 = vmatprep.subr.mxu0 0.0
    %2665 = vmatpush1.msra.mxu0 0.0
    %2666 = vmatprep.subr.mxu0 0.0
    %2667 = vmatpush1.msra.mxu0 0.0
    %2668 = vmatprep.subr.mxu0 0.0
    %2669 = vmatpush1.msra.mxu0 0.0
    %2670 = vmatprep.subr.mxu0 0.0
    %2671 = vmatpush1.msra.mxu0 0.0
    %2672 = vmatprep.subr.mxu0 0.0
    %2673 = vmatpush1.msra.mxu0 0.0
    %2674 = vmatprep.subr.mxu0 0.0
    %2675 = vmatpush1.msra.mxu0 0.0
    %2676 = vmatprep.mubr.f32.mxu0 0.0
    %2677 = vmatmul.mubr.f32.gmra.mrb[0].mxu0 %v224
    %v2678 = vpop.f32.mrb[0].mxu0
    %v2679 = vadd.f32 0.0, %v2678
    %v2680 = vpop.f32.mrb[0].mxu0
    %2681 = vmatprep.mubr.f32.mxu0 0.0
    %2682 = vmatmul.mubr.f32.gmra.mrb[0].mxu0 %v227
    %v2683 = vpop.f32.mrb[0].mxu0
    %v2684 = vadd.f32 0.0, %v2683
    %v2685 = vpop.f32.mrb[0].mxu0
    %2686 = vmatprep.mubr.f32.mxu0 0.0
    %2687 = vmatmul.mubr.f32.gmra.mrb[0].mxu0 %v230
    %v2688 = vpop.f32.mrb[0].mxu0
    %v2689 = vadd.f32 0.0, %v2688
    %v2690 = vpop.f32.mrb[0].mxu0
    %2691 = vmatprep.mubr.f32.mxu0 0.0
    %2692 = vmatmul.mubr.f32.gmra.mrb[0].mxu0 %v233
    %v2693 = vpop.f32.mrb[0].mxu0
    %v2694 = vadd.f32 0.0, %v2693
    %v2695 = vpop.f32.mrb[0].mxu0
    %2696 = vmatprep.mubr.f32.mxu0 0.0
    %2697 = vmatmul.mubr.f32.gmra.mrb[0].mxu0 %v236
    %v2698 = vpop.f32.mrb[0].mxu0
    %v2699 = vadd.f32 0.0, %v2698
    %v2700 = vpop.f32.mrb[0].mxu0
    %2701 = vmatprep.mubr.f32.mxu0 0.0
    %2702 = vmatmul.mubr.f32.gmra.mrb[0].mxu0 %v239
    %v2703 = vpop.f32.mrb[0].mxu0
    %v2704 = vadd.f32 0.0, %v2703
    %v2705 = vpop.f32.mrb[0].mxu0
    %2706 = vmatprep.mubr.f32.mxu0 0.0
    %2707 = vmatmul.mubr.f32.gmra.mrb[0].mxu0 %v242
    %v2708 = vpop.f32.mrb[0].mxu0
    %v2709 = vadd.f32 0.0, %v2708
    %v2710 = vpop.f32.mrb[0].mxu0
    %2711 = vmatprep.mubr.f32.mxu0 0.0
    %2712 = vmatmul.mubr.f32.gmra.mrb[0].mxu0 %v245
    %v2713 = vpop.f32.mrb[0].mxu0
    %v2714 = vadd.f32 0.0, %v2713
    %v2715 = vpop.f32.mrb[0].mxu0
    %2716 = vmatprep.mubr.f32.mxu0 0.0
    %2717 = vmatmul.mubr.f32.gmra.mrb[0].mxu0 %v248
    %v2718 = vpop.f32.mrb[0].mxu0
    %v2719 = vadd.f32 0.0, %v2718
    %v2720 = vpop.f32.mrb[0].mxu0
    %2721 = vmatprep.mubr.f32.mxu0 0.0
    %2722 = vmatmul.mubr.f32.gmra.mrb[0].mxu0 %v251
    %v2723 = vpop.f32.mrb[0].mxu0
    %v2724 = vadd.f32 0.0, %v2723
    %v2725 = vpop.f32.mrb[0].mxu0
    %2726 = vmatprep.mubr.f32.mxu0 0.0
    %2727 = vmatmul.mubr.f32.gmra.mrb[0].mxu0 %v254
    %v2728 = vpop.f32.mrb[0].mxu0
    %v2729 = vadd.f32 0.0, %v2728
    %v2730 = vpop.f32.mrb[0].mxu0
    %2731 = vmatprep.mubr.f32.mxu0 0.0
    %2732 = vmatmul.mubr.f32.gmra.mrb[0].mxu0 %v257
    %v2733 = vpop.f32.mrb[0].mxu0
    %v2734 = vadd.f32 0.0, %v2733
    %v2735 = vpop.f32.mrb[0].mxu0
    %2736 = vmatprep.mubr.f32.mxu0 0.0
    %2737 = vmatmul.mubr.f32.gmra.mrb[0].mxu0 %v260
    %v2738 = vpop.f32.mrb[0].mxu0
    %v2739 = vadd.f32 0.0, %v2738
    %v2740 = vpop.f32.mrb[0].mxu0
    %2741 = vmatprep.mubr.f32.mxu0 0.0
    %2742 = vmatmul.mubr.f32.gmra.mrb[0].mxu0 %v263
    %v2743 = vpop.f32.mrb[0].mxu0
    %v2744 = vadd.f32 0.0, %v2743
    %v2745 = vpop.f32.mrb[0].mxu0
    %2746 = vmatprep.mubr.f32.mxu0 0.0
    %2747 = vmatmul.mubr.f32.gmra.mrb[0].mxu0 %v266
    %v2748 = vpop.f32.mrb[0].mxu0
    %v2749 = vadd.f32 0.0, %v2748
    %v2750 = vpop.f32.mrb[0].mxu0
    %2751 = vmatprep.mubr.f32.mxu0 0.0
    %2752 = vmatmul.mubr.f32.gmra.mrb[0].mxu0 %v269
    %v2753 = vpop.f32.mrb[0].mxu0
    %v2754 = vadd.f32 0.0, %v2753
    %v2755 = vpop.f32.mrb[0].mxu0
    %2756 = vdwg.mxu0
    %v2759 = vunpack.c.l.b16 %v2610
    %v2760 = vunpack.c.l.b16 %v2611
    %v2761 = vpack.c.b16 %v2760, %v2759
    %2763 = vmatprep.subr.bf16.mxu0 0
    %2764 = vmatpush1.bf16.msra.mxu0 %v2761
    %2765 = vmatprep.subr.bf16.mxu0 0
    %2766 = vmatpush1.bf16.msra.mxu0 0
    %2767 = vmatprep.subr.bf16.mxu0 0
    %2768 = vmatpush1.bf16.msra.mxu0 0
    %2769 = vmatprep.subr.bf16.mxu0 0
    %2770 = vmatpush1.bf16.msra.mxu0 0
    %2771 = vmatprep.subr.bf16.mxu0 0
    %2772 = vmatpush1.bf16.msra.mxu0 0
    %2773 = vmatprep.subr.bf16.mxu0 0
    %2774 = vmatpush1.bf16.msra.mxu0 0
    %2775 = vmatprep.subr.bf16.mxu0 0
    %2776 = vmatpush1.bf16.msra.mxu0 0
    %2777 = vmatprep.subr.bf16.mxu0 0
    %2778 = vmatpush1.bf16.msra.mxu0 0
    %2779 = vmatprep.subr.bf16.mxu0 0
    %2780 = vmatpush1.bf16.msra.mxu0 0
    %2781 = vmatprep.subr.bf16.mxu0 0
    %2782 = vmatpush1.bf16.msra.mxu0 0
    %2783 = vmatprep.subr.bf16.mxu0 0
    %2784 = vmatpush1.bf16.msra.mxu0 0
    %2785 = vmatprep.subr.bf16.mxu0 0
    %2786 = vmatpush1.bf16.msra.mxu0 0
    %2787 = vmatprep.subr.bf16.mxu0 0
    %2788 = vmatpush1.bf16.msra.mxu0 0
    %2789 = vmatprep.subr.bf16.mxu0 0
    %2790 = vmatpush1.bf16.msra.mxu0 0
    %2791 = vmatprep.subr.bf16.mxu0 0
    %2792 = vmatpush1.bf16.msra.mxu0 0
    %2793 = vmatprep.subr.bf16.mxu0 0
    %2794 = vmatpush1.bf16.msra.mxu0 0
    %2795 = vmatprep.mubr.bf16.mxu0 0
    %2796 = vmatmul.mubr.bf16.gmra.mrb[0].mxu0 %v464
    %v2797 = vpop.f32.mrb[0].mxu0
    %v2798 = vadd.f32 %v2679, %v2797
    %v2799 = vpop.f32.mrb[0].mxu0
    %v2800 = vpop.f32.mrb[0].mxu0
    %v2801 = vadd.f32 %v2684, %v2800
    %v2802 = vpop.f32.mrb[0].mxu0
    %2803 = vmatprep.mubr.bf16.mxu0 0
    %2804 = vmatmul.mubr.bf16.gmra.mrb[0].mxu0 %v467
    %v2805 = vpop.f32.mrb[0].mxu0
    %v2806 = vadd.f32 %v2689, %v2805
    %v2807 = vpop.f32.mrb[0].mxu0
    %v2808 = vpop.f32.mrb[0].mxu0
    %v2809 = vadd.f32 %v2694, %v2808
    %v2810 = vpop.f32.mrb[0].mxu0
    %2811 = vmatprep.mubr.bf16.mxu0 0
    %2812 = vmatmul.mubr.bf16.gmra.mrb[0].mxu0 %v470
    %v2813 = vpop.f32.mrb[0].mxu0
    %v2814 = vadd.f32 %v2699, %v2813
    %v2815 = vpop.f32.mrb[0].mxu0
    %v2816 = vpop.f32.mrb[0].mxu0
    %v2817 = vadd.f32 %v2704, %v2816
    %v2818 = vpop.f32.mrb[0].mxu0
    %2819 = vmatprep.mubr.bf16.mxu0 0
    %2820 = vmatmul.mubr.bf16.gmra.mrb[0].mxu0 %v473
    %v2821 = vpop.f32.mrb[0].mxu0
    %v2822 = vadd.f32 %v2709, %v2821
    %v2823 = vpop.f32.mrb[0].mxu0
    %v2824 = vpop.f32.mrb[0].mxu0
    %v2825 = vadd.f32 %v2714, %v2824
    %v2826 = vpop.f32.mrb[0].mxu0
    %2827 = vmatprep.mubr.bf16.mxu0 0
    %2828 = vmatmul.mubr.bf16.gmra.mrb[0].mxu0 %v476
    %v2829 = vpop.f32.mrb[0].mxu0
    %v2830 = vadd.f32 %v2719, %v2829
    %v2831 = vpop.f32.mrb[0].mxu0
    %v2832 = vpop.f32.mrb[0].mxu0
    %v2833 = vadd.f32 %v2724, %v2832
    %v2834 = vpop.f32.mrb[0].mxu0
    %2835 = vmatprep.mubr.bf16.mxu0 0
    %2836 = vmatmul.mubr.bf16.gmra.mrb[0].mxu0 %v479
    %v2837 = vpop.f32.mrb[0].mxu0
    %v2838 = vadd.f32 %v2729, %v2837
    %v2839 = vpop.f32.mrb[0].mxu0
    %v2840 = vpop.f32.mrb[0].mxu0
    %v2841 = vadd.f32 %v2734, %v2840
    %v2842 = vpop.f32.mrb[0].mxu0
    %2843 = vmatprep.mubr.bf16.mxu0 0
    %2844 = vmatmul.mubr.bf16.gmra.mrb[0].mxu0 %v482
    %v2845 = vpop.f32.mrb[0].mxu0
    %v2846 = vadd.f32 %v2739, %v2845
    %v2847 = vpop.f32.mrb[0].mxu0
    %v2848 = vpop.f32.mrb[0].mxu0
    %v2849 = vadd.f32 %v2744, %v2848
    %v2850 = vpop.f32.mrb[0].mxu0
    %2851 = vmatprep.mubr.bf16.mxu0 0
    %2852 = vmatmul.mubr.bf16.gmra.mrb[0].mxu0 %v485
    %v2853 = vpop.f32.mrb[0].mxu0
    %v2854 = vadd.f32 %v2749, %v2853
    %v2855 = vpop.f32.mrb[0].mxu0
    %v2856 = vpop.f32.mrb[0].mxu0
    %v2857 = vadd.f32 %v2754, %v2856
    %v2858 = vpop.f32.mrb[0].mxu0
    %2859 = vdwg.mxu0
    %v2860 = vadd.f32 %v2798, %v82
    %v2861 = vadd.f32 %v2801, %v87
    %v2862 = vadd.f32 %v2806, %v92
    %v2863 = vadd.f32 %v2809, %v97
    %v2864 = vadd.f32 %v2814, %v102
    %v2865 = vadd.f32 %v2817, %v107
    %v2866 = vadd.f32 %v2822, %v112
    %v2867 = vadd.f32 %v2825, %v117
    %v2868 = vadd.f32 %v2830, %v122
    %v2869 = vadd.f32 %v2833, %v127
    %v2870 = vadd.f32 %v2838, %v132
    %v2871 = vadd.f32 %v2841, %v137
    %v2872 = vadd.f32 %v2846, %v142
    %v2873 = vadd.f32 %v2849, %v147
    %v2874 = vadd.f32 %v2854, %v152
    %v2875 = vadd.f32 %v2857, %v157
    %v2876 = vxor.u32 %v2860, 2147483648
    %v2877 = vxor.u32 %v2861, 2147483648
    %v2878 = vxor.u32 %v2862, 2147483648
    %v2879 = vxor.u32 %v2863, 2147483648
    %v2880 = vmul.f32 %v2876, 1.442695
    %v2881 = vpow.pop %v2880
    %v2882 = vmul.f32 %v2877, 1.442695
    %v2883 = vpow.pop %v2882
    %v2884 = vmul.f32 %v2878, 1.442695
    %v2885 = vpow.pop %v2884
    %v2886 = vmul.f32 %v2879, 1.442695
    %v2887 = vpow.pop %v2886
    %v2888 = vadd.f32 %v2881, 1.0
    %v2889 = vadd.f32 %v2883, 1.0
    %v2890 = vadd.f32 %v2885, 1.0
    %v2891 = vadd.f32 %v2887, 1.0
    %v2892 = vrcp.pop %v2888
    %v2893 = vmul.f32 1.0, %v2892
    %v2894 = vrcp.pop %v2889
    %v2895 = vmul.f32 1.0, %v2894
    %v2896 = vrcp.pop %v2890
    %v2897 = vmul.f32 1.0, %v2896
    %v2898 = vrcp.pop %v2891
    %v2899 = vmul.f32 1.0, %v2898
    %v2900 = vxor.u32 %v2864, 2147483648
    %v2901 = vxor.u32 %v2865, 2147483648
    %v2902 = vxor.u32 %v2866, 2147483648
    %v2903 = vxor.u32 %v2867, 2147483648
    %v2904 = vmul.f32 %v2900, 1.442695
    %v2905 = vpow.pop %v2904
    %v2906 = vmul.f32 %v2901, 1.442695
    %v2907 = vpow.pop %v2906
    %v2908 = vmul.f32 %v2902, 1.442695
    %v2909 = vpow.pop %v2908
    %v2910 = vmul.f32 %v2903, 1.442695
    %v2911 = vpow.pop %v2910
    %v2912 = vadd.f32 %v2905, 1.0
    %v2913 = vadd.f32 %v2907, 1.0
    %v2914 = vadd.f32 %v2909, 1.0
    %v2915 = vadd.f32 %v2911, 1.0
    %v2916 = vrcp.pop %v2912
    %v2917 = vmul.f32 1.0, %v2916
    %v2918 = vrcp.pop %v2913
    %v2919 = vmul.f32 1.0, %v2918
    %v2920 = vrcp.pop %v2914
    %v2921 = vmul.f32 1.0, %v2920
    %v2922 = vrcp.pop %v2915
    %v2923 = vmul.f32 1.0, %v2922
    %v2924 = vtanh.pop %v2868
    %v2925 = vtanh.pop %v2869
    %v2926 = vtanh.pop %v2870
    %v2927 = vtanh.pop %v2871
    %v2928 = vxor.u32 %v2872, 2147483648
    %v2929 = vxor.u32 %v2873, 2147483648
    %v2930 = vxor.u32 %v2874, 2147483648
    %v2931 = vxor.u32 %v2875, 2147483648
    %v2932 = vmul.f32 %v2928, 1.442695
    %v2933 = vpow.pop %v2932
    %v2934 = vmul.f32 %v2929, 1.442695
    %v2935 = vpow.pop %v2934
    %v2936 = vmul.f32 %v2930, 1.442695
    %v2937 = vpow.pop %v2936
    %v2938 = vmul.f32 %v2931, 1.442695
    %v2939 = vpow.pop %v2938
    %v2940 = vadd.f32 %v2933, 1.0
    %v2941 = vadd.f32 %v2935, 1.0
    %v2942 = vadd.f32 %v2937, 1.0
    %v2943 = vadd.f32 %v2939, 1.0
    %v2944 = vrcp.pop %v2940
    %v2945 = vmul.f32 1.0, %v2944
    %v2946 = vrcp.pop %v2941
    %v2947 = vmul.f32 1.0, %v2946
    %v2948 = vrcp.pop %v2942
    %v2949 = vmul.f32 1.0, %v2948
    %v2950 = vrcp.pop %v2943
    %v2951 = vmul.f32 1.0, %v2950
    %v2952 = vmul.f32 %v2917, %v2507
    %v2953 = vmul.f32 %v2919, %v2508
    %v2954 = vmul.f32 %v2921, %v2509
    %v2955 = vmul.f32 %v2923, %v2510
    %v2956 = vmul.f32 %v2893, %v2924
    %v2957 = vmul.f32 %v2895, %v2925
    %v2958 = vmul.f32 %v2897, %v2926
    %v2959 = vmul.f32 %v2899, %v2927
    %v2960 = vadd.f32 %v2952, %v2956
    %v2961 = vadd.f32 %v2953, %v2957
    %v2962 = vadd.f32 %v2954, %v2958
    %v2963 = vadd.f32 %v2955, %v2959
    %v2964 = vtanh.pop %v2960
    %v2965 = vtanh.pop %v2961
    %v2966 = vtanh.pop %v2962
    %v2967 = vtanh.pop %v2963
    %v2968 = vmul.f32 %v2945, %v2964
    %v2969 = vmul.f32 %v2947, %v2965
    %v2970 = vmul.f32 %v2949, %v2966
    %v2971 = vmul.f32 %v2951, %v2967
    %2972 = vmatprep.subr.mxu0 0.0
    %2973 = vmatpush1.msra.mxu0 %v2968
    %2974 = vmatprep.subr.mxu0 0.0
    %2975 = vmatpush1.msra.mxu0 %v2969
    %2976 = vmatprep.subr.mxu0 0.0
    %2977 = vmatpush1.msra.mxu0 %v2970
    %2978 = vmatprep.subr.mxu0 0.0
    %2979 = vmatpush1.msra.mxu0 %v2971
    %2980 = vmatprep.subr.mxu0 0.0
    %2981 = vmatpush1.msra.mxu0 0.0
    %2982 = vmatprep.subr.mxu0 0.0
    %2983 = vmatpush1.msra.mxu0 0.0
    %2984 = vmatprep.subr.mxu0 0.0
    %2985 = vmatpush1.msra.mxu0 0.0
    %2986 = vmatprep.subr.mxu0 0.0
    %2987 = vmatpush1.msra.mxu0 0.0
    %2988 = vmatprep.subr.mxu0 0.0
    %2989 = vmatpush1.msra.mxu0 0.0
    %2990 = vmatprep.subr.mxu0 0.0
    %2991 = vmatpush1.msra.mxu0 0.0
    %2992 = vmatprep.subr.mxu0 0.0
    %2993 = vmatpush1.msra.mxu0 0.0
    %2994 = vmatprep.subr.mxu0 0.0
    %2995 = vmatpush1.msra.mxu0 0.0
    %2996 = vmatprep.subr.mxu0 0.0
    %2997 = vmatpush1.msra.mxu0 0.0
    %2998 = vmatprep.subr.mxu0 0.0
    %2999 = vmatpush1.msra.mxu0 0.0
    %3000 = vmatprep.subr.mxu0 0.0
    %3001 = vmatpush1.msra.mxu0 0.0
    %3002 = vmatprep.subr.mxu0 0.0
    %3003 = vmatpush1.msra.mxu0 0.0
    %3004 = vmatprep.subr.mxu0 0.0
    %3005 = vmatpush1.msra.mxu0 0.0
    %3006 = vmatprep.subr.mxu0 0.0
    %3007 = vmatpush1.msra.mxu0 0.0
    %3008 = vmatprep.subr.mxu0 0.0
    %3009 = vmatpush1.msra.mxu0 0.0
    %3010 = vmatprep.subr.mxu0 0.0
    %3011 = vmatpush1.msra.mxu0 0.0
    %3012 = vmatprep.subr.mxu0 0.0
    %3013 = vmatpush1.msra.mxu0 0.0
    %3014 = vmatprep.subr.mxu0 0.0
    %3015 = vmatpush1.msra.mxu0 0.0
    %3016 = vmatprep.subr.mxu0 0.0
    %3017 = vmatpush1.msra.mxu0 0.0
    %3018 = vmatprep.subr.mxu0 0.0
    %3019 = vmatpush1.msra.mxu0 0.0
    %3020 = vmatprep.subr.mxu0 0.0
    %3021 = vmatpush1.msra.mxu0 0.0
    %3022 = vmatprep.subr.mxu0 0.0
    %3023 = vmatpush1.msra.mxu0 0.0
    %3024 = vmatprep.subr.mxu0 0.0
    %3025 = vmatpush1.msra.mxu0 0.0
    %3026 = vmatprep.subr.mxu0 0.0
    %3027 = vmatpush1.msra.mxu0 0.0
    %3028 = vmatprep.subr.mxu0 0.0
    %3029 = vmatpush1.msra.mxu0 0.0
    %3030 = vmatprep.subr.mxu0 0.0
    %3031 = vmatpush1.msra.mxu0 0.0
    %3032 = vmatprep.subr.mxu0 0.0
    %3033 = vmatpush1.msra.mxu0 0.0
    %3034 = vmatprep.subr.mxu0 0.0
    %3035 = vmatpush1.msra.mxu0 0.0
    %3036 = vmatprep.mubr.f32.mxu0 0.0
    %3037 = vmatmul.mubr.f32.gmra.mrb[0].mxu0 %v697
    %v3038 = vpop.f32.mrb[0].mxu0
    %v3039 = vadd.f32 %v190, %v3038
    %v3040 = vpop.f32.mrb[0].mxu0
    %3041 = vmatprep.mubr.f32.mxu0 0.0
    %3042 = vmatmul.mubr.f32.gmra.mrb[0].mxu0 %v700
    %v3043 = vpop.f32.mrb[0].mxu0
    %v3044 = vadd.f32 %v195, %v3043
    %v3045 = vpop.f32.mrb[0].mxu0
    %3046 = vmatprep.mubr.f32.mxu0 0.0
    %3047 = vmatmul.mubr.f32.gmra.mrb[0].mxu0 %v703
    %v3048 = vpop.f32.mrb[0].mxu0
    %v3049 = vadd.f32 %v200, %v3048
    %v3050 = vpop.f32.mrb[0].mxu0
    %3051 = vmatprep.mubr.f32.mxu0 0.0
    %3052 = vmatmul.mubr.f32.gmra.mrb[0].mxu0 %v706
    %v3053 = vpop.f32.mrb[0].mxu0
    %v3054 = vadd.f32 %v205, %v3053
    %v3055 = vpop.f32.mrb[0].mxu0
    %3056 = vdwg.mxu0
    %s3057 = scalar_lea.vmem [#allocation2], 160
    %3058 = vst [vmem:[%s3057] sm:$0xff] %v3039
    %3059 = vst [vmem:[%s3057 + $0x8] sm:$0xff] %v3044
    %3060 = vst [vmem:[%s3057 + $0x10] sm:$0xff] %v3049
    %3061 = vst [vmem:[%s3057 + $0x18] sm:$0xff] %v3054
    %s3062 = scalar_lea.vmem %s0, 48
    %v3063 = vld [vmem:[%s3062] sm:$0xf]
    %v3064 = vld [vmem:[%s3062 + $0x4] sm:$0xf]
    %3065 = vmatprep.subr.mxu0 0.0
    %3066 = vmatpush1.msra.mxu0 %v2968
    %3067 = vmatprep.subr.mxu0 0.0
    %3068 = vmatpush1.msra.mxu0 %v2969
    %3069 = vmatprep.subr.mxu0 0.0
    %3070 = vmatpush1.msra.mxu0 %v2970
    %3071 = vmatprep.subr.mxu0 0.0
    %3072 = vmatpush1.msra.mxu0 %v2971
    %3073 = vmatprep.subr.mxu0 0.0
    %3074 = vmatpush1.msra.mxu0 0.0
    %3075 = vmatprep.subr.mxu0 0.0
    %3076 = vmatpush1.msra.mxu0 0.0
    %3077 = vmatprep.subr.mxu0 0.0
    %3078 = vmatpush1.msra.mxu0 0.0
    %3079 = vmatprep.subr.mxu0 0.0
    %3080 = vmatpush1.msra.mxu0 0.0
    %3081 = vmatprep.subr.mxu0 0.0
    %3082 = vmatpush1.msra.mxu0 0.0
    %3083 = vmatprep.subr.mxu0 0.0
    %3084 = vmatpush1.msra.mxu0 0.0
    %3085 = vmatprep.subr.mxu0 0.0
    %3086 = vmatpush1.msra.mxu0 0.0
    %3087 = vmatprep.subr.mxu0 0.0
    %3088 = vmatpush1.msra.mxu0 0.0
    %3089 = vmatprep.subr.mxu0 0.0
    %3090 = vmatpush1.msra.mxu0 0.0
    %3091 = vmatprep.subr.mxu0 0.0
    %3092 = vmatpush1.msra.mxu0 0.0
    %3093 = vmatprep.subr.mxu0 0.0
    %3094 = vmatpush1.msra.mxu0 0.0
    %3095 = vmatprep.subr.mxu0 0.0
    %3096 = vmatpush1.msra.mxu0 0.0
    %3097 = vmatprep.subr.mxu0 0.0
    %3098 = vmatpush1.msra.mxu0 0.0
    %3099 = vmatprep.subr.mxu0 0.0
    %3100 = vmatpush1.msra.mxu0 0.0
    %3101 = vmatprep.subr.mxu0 0.0
    %3102 = vmatpush1.msra.mxu0 0.0
    %3103 = vmatprep.subr.mxu0 0.0
    %3104 = vmatpush1.msra.mxu0 0.0
    %3105 = vmatprep.subr.mxu0 0.0
    %3106 = vmatpush1.msra.mxu0 0.0
    %3107 = vmatprep.subr.mxu0 0.0
    %3108 = vmatpush1.msra.mxu0 0.0
    %3109 = vmatprep.subr.mxu0 0.0
    %3110 = vmatpush1.msra.mxu0 0.0
    %3111 = vmatprep.subr.mxu0 0.0
    %3112 = vmatpush1.msra.mxu0 0.0
    %3113 = vmatprep.subr.mxu0 0.0
    %3114 = vmatpush1.msra.mxu0 0.0
    %3115 = vmatprep.subr.mxu0 0.0
    %3116 = vmatpush1.msra.mxu0 0.0
    %3117 = vmatprep.subr.mxu0 0.0
    %3118 = vmatpush1.msra.mxu0 0.0
    %3119 = vmatprep.subr.mxu0 0.0
    %3120 = vmatpush1.msra.mxu0 0.0
    %3121 = vmatprep.subr.mxu0 0.0
    %3122 = vmatpush1.msra.mxu0 0.0
    %3123 = vmatprep.subr.mxu0 0.0
    %3124 = vmatpush1.msra.mxu0 0.0
    %3125 = vmatprep.subr.mxu0 0.0
    %3126 = vmatpush1.msra.mxu0 0.0
    %3127 = vmatprep.subr.mxu0 0.0
    %3128 = vmatpush1.msra.mxu0 0.0
    %3129 = vmatprep.mubr.f32.mxu0 0.0
    %3130 = vmatmul.mubr.f32.gmra.mrb[0].mxu0 %v224
    %v3131 = vpop.f32.mrb[0].mxu0
    %v3132 = vadd.f32 0.0, %v3131
    %v3133 = vpop.f32.mrb[0].mxu0
    %3134 = vmatprep.mubr.f32.mxu0 0.0
    %3135 = vmatmul.mubr.f32.gmra.mrb[0].mxu0 %v227
    %v3136 = vpop.f32.mrb[0].mxu0
    %v3137 = vadd.f32 0.0, %v3136
    %v3138 = vpop.f32.mrb[0].mxu0
    %3139 = vmatprep.mubr.f32.mxu0 0.0
    %3140 = vmatmul.mubr.f32.gmra.mrb[0].mxu0 %v230
    %v3141 = vpop.f32.mrb[0].mxu0
    %v3142 = vadd.f32 0.0, %v3141
    %v3143 = vpop.f32.mrb[0].mxu0
    %3144 = vmatprep.mubr.f32.mxu0 0.0
    %3145 = vmatmul.mubr.f32.gmra.mrb[0].mxu0 %v233
    %v3146 = vpop.f32.mrb[0].mxu0
    %v3147 = vadd.f32 0.0, %v3146
    %v3148 = vpop.f32.mrb[0].mxu0
    %3149 = vmatprep.mubr.f32.mxu0 0.0
    %3150 = vmatmul.mubr.f32.gmra.mrb[0].mxu0 %v236
    %v3151 = vpop.f32.mrb[0].mxu0
    %v3152 = vadd.f32 0.0, %v3151
    %v3153 = vpop.f32.mrb[0].mxu0
    %3154 = vmatprep.mubr.f32.mxu0 0.0
    %3155 = vmatmul.mubr.f32.gmra.mrb[0].mxu0 %v239
    %v3156 = vpop.f32.mrb[0].mxu0
    %v3157 = vadd.f32 0.0, %v3156
    %v3158 = vpop.f32.mrb[0].mxu0
    %3159 = vmatprep.mubr.f32.mxu0 0.0
    %3160 = vmatmul.mubr.f32.gmra.mrb[0].mxu0 %v242
    %v3161 = vpop.f32.mrb[0].mxu0
    %v3162 = vadd.f32 0.0, %v3161
    %v3163 = vpop.f32.mrb[0].mxu0
    %3164 = vmatprep.mubr.f32.mxu0 0.0
    %3165 = vmatmul.mubr.f32.gmra.mrb[0].mxu0 %v245
    %v3166 = vpop.f32.mrb[0].mxu0
    %v3167 = vadd.f32 0.0, %v3166
    %v3168 = vpop.f32.mrb[0].mxu0
    %3169 = vmatprep.mubr.f32.mxu0 0.0
    %3170 = vmatmul.mubr.f32.gmra.mrb[0].mxu0 %v248
    %v3171 = vpop.f32.mrb[0].mxu0
    %v3172 = vadd.f32 0.0, %v3171
    %v3173 = vpop.f32.mrb[0].mxu0
    %3174 = vmatprep.mubr.f32.mxu0 0.0
    %3175 = vmatmul.mubr.f32.gmra.mrb[0].mxu0 %v251
    %v3176 = vpop.f32.mrb[0].mxu0
    %v3177 = vadd.f32 0.0, %v3176
    %v3178 = vpop.f32.mrb[0].mxu0
    %3179 = vmatprep.mubr.f32.mxu0 0.0
    %3180 = vmatmul.mubr.f32.gmra.mrb[0].mxu0 %v254
    %v3181 = vpop.f32.mrb[0].mxu0
    %v3182 = vadd.f32 0.0, %v3181
    %v3183 = vpop.f32.mrb[0].mxu0
    %3184 = vmatprep.mubr.f32.mxu0 0.0
    %3185 = vmatmul.mubr.f32.gmra.mrb[0].mxu0 %v257
    %v3186 = vpop.f32.mrb[0].mxu0
    %v3187 = vadd.f32 0.0, %v3186
    %v3188 = vpop.f32.mrb[0].mxu0
    %3189 = vmatprep.mubr.f32.mxu0 0.0
    %3190 = vmatmul.mubr.f32.gmra.mrb[0].mxu0 %v260
    %v3191 = vpop.f32.mrb[0].mxu0
    %v3192 = vadd.f32 0.0, %v3191
    %v3193 = vpop.f32.mrb[0].mxu0
    %3194 = vmatprep.mubr.f32.mxu0 0.0
    %3195 = vmatmul.mubr.f32.gmra.mrb[0].mxu0 %v263
    %v3196 = vpop.f32.mrb[0].mxu0
    %v3197 = vadd.f32 0.0, %v3196
    %v3198 = vpop.f32.mrb[0].mxu0
    %3199 = vmatprep.mubr.f32.mxu0 0.0
    %3200 = vmatmul.mubr.f32.gmra.mrb[0].mxu0 %v266
    %v3201 = vpop.f32.mrb[0].mxu0
    %v3202 = vadd.f32 0.0, %v3201
    %v3203 = vpop.f32.mrb[0].mxu0
    %3204 = vmatprep.mubr.f32.mxu0 0.0
    %3205 = vmatmul.mubr.f32.gmra.mrb[0].mxu0 %v269
    %v3206 = vpop.f32.mrb[0].mxu0
    %v3207 = vadd.f32 0.0, %v3206
    %v3208 = vpop.f32.mrb[0].mxu0
    %3209 = vdwg.mxu0
    %v3212 = vunpack.c.l.b16 %v3063
    %v3213 = vunpack.c.l.b16 %v3064
    %v3214 = vpack.c.b16 %v3213, %v3212
    %3216 = vmatprep.subr.bf16.mxu0 0
    %3217 = vmatpush1.bf16.msra.mxu0 %v3214
    %3218 = vmatprep.subr.bf16.mxu0 0
    %3219 = vmatpush1.bf16.msra.mxu0 0
    %3220 = vmatprep.subr.bf16.mxu0 0
    %3221 = vmatpush1.bf16.msra.mxu0 0
    %3222 = vmatprep.subr.bf16.mxu0 0
    %3223 = vmatpush1.bf16.msra.mxu0 0
    %3224 = vmatprep.subr.bf16.mxu0 0
    %3225 = vmatpush1.bf16.msra.mxu0 0
    %3226 = vmatprep.subr.bf16.mxu0 0
    %3227 = vmatpush1.bf16.msra.mxu0 0
    %3228 = vmatprep.subr.bf16.mxu0 0
    %3229 = vmatpush1.bf16.msra.mxu0 0
    %3230 = vmatprep.subr.bf16.mxu0 0
    %3231 = vmatpush1.bf16.msra.mxu0 0
    %3232 = vmatprep.subr.bf16.mxu0 0
    %3233 = vmatpush1.bf16.msra.mxu0 0
    %3234 = vmatprep.subr.bf16.mxu0 0
    %3235 = vmatpush1.bf16.msra.mxu0 0
    %3236 = vmatprep.subr.bf16.mxu0 0
    %3237 = vmatpush1.bf16.msra.mxu0 0
    %3238 = vmatprep.subr.bf16.mxu0 0
    %3239 = vmatpush1.bf16.msra.mxu0 0
    %3240 = vmatprep.subr.bf16.mxu0 0
    %3241 = vmatpush1.bf16.msra.mxu0 0
    %3242 = vmatprep.subr.bf16.mxu0 0
    %3243 = vmatpush1.bf16.msra.mxu0 0
    %3244 = vmatprep.subr.bf16.mxu0 0
    %3245 = vmatpush1.bf16.msra.mxu0 0
    %3246 = vmatprep.subr.bf16.mxu0 0
    %3247 = vmatpush1.bf16.msra.mxu0 0
    %3248 = vmatprep.mubr.bf16.mxu0 0
    %3249 = vmatmul.mubr.bf16.gmra.mrb[0].mxu0 %v464
    %v3250 = vpop.f32.mrb[0].mxu0
    %v3251 = vadd.f32 %v3132, %v3250
    %v3252 = vpop.f32.mrb[0].mxu0
    %v3253 = vpop.f32.mrb[0].mxu0
    %v3254 = vadd.f32 %v3137, %v3253
    %v3255 = vpop.f32.mrb[0].mxu0
    %3256 = vmatprep.mubr.bf16.mxu0 0
    %3257 = vmatmul.mubr.bf16.gmra.mrb[0].mxu0 %v467
    %v3258 = vpop.f32.mrb[0].mxu0
    %v3259 = vadd.f32 %v3142, %v3258
    %v3260 = vpop.f32.mrb[0].mxu0
    %v3261 = vpop.f32.mrb[0].mxu0
    %v3262 = vadd.f32 %v3147, %v3261
    %v3263 = vpop.f32.mrb[0].mxu0
    %3264 = vmatprep.mubr.bf16.mxu0 0
    %3265 = vmatmul.mubr.bf16.gmra.mrb[0].mxu0 %v470
    %v3266 = vpop.f32.mrb[0].mxu0
    %v3267 = vadd.f32 %v3152, %v3266
    %v3268 = vpop.f32.mrb[0].mxu0
    %v3269 = vpop.f32.mrb[0].mxu0
    %v3270 = vadd.f32 %v3157, %v3269
    %v3271 = vpop.f32.mrb[0].mxu0
    %3272 = vmatprep.mubr.bf16.mxu0 0
    %3273 = vmatmul.mubr.bf16.gmra.mrb[0].mxu0 %v473
    %v3274 = vpop.f32.mrb[0].mxu0
    %v3275 = vadd.f32 %v3162, %v3274
    %v3276 = vpop.f32.mrb[0].mxu0
    %v3277 = vpop.f32.mrb[0].mxu0
    %v3278 = vadd.f32 %v3167, %v3277
    %v3279 = vpop.f32.mrb[0].mxu0
    %3280 = vmatprep.mubr.bf16.mxu0 0
    %3281 = vmatmul.mubr.bf16.gmra.mrb[0].mxu0 %v476
    %v3282 = vpop.f32.mrb[0].mxu0
    %v3283 = vadd.f32 %v3172, %v3282
    %v3284 = vpop.f32.mrb[0].mxu0
    %v3285 = vpop.f32.mrb[0].mxu0
    %v3286 = vadd.f32 %v3177, %v3285
    %v3287 = vpop.f32.mrb[0].mxu0
    %3288 = vmatprep.mubr.bf16.mxu0 0
    %3289 = vmatmul.mubr.bf16.gmra.mrb[0].mxu0 %v479
    %v3290 = vpop.f32.mrb[0].mxu0
    %v3291 = vadd.f32 %v3182, %v3290
    %v3292 = vpop.f32.mrb[0].mxu0
    %v3293 = vpop.f32.mrb[0].mxu0
    %v3294 = vadd.f32 %v3187, %v3293
    %v3295 = vpop.f32.mrb[0].mxu0
    %3296 = vmatprep.mubr.bf16.mxu0 0
    %3297 = vmatmul.mubr.bf16.gmra.mrb[0].mxu0 %v482
    %v3298 = vpop.f32.mrb[0].mxu0
    %v3299 = vadd.f32 %v3192, %v3298
    %v3300 = vpop.f32.mrb[0].mxu0
    %v3301 = vpop.f32.mrb[0].mxu0
    %v3302 = vadd.f32 %v3197, %v3301
    %v3303 = vpop.f32.mrb[0].mxu0
    %3304 = vmatprep.mubr.bf16.mxu0 0
    %3305 = vmatmul.mubr.bf16.gmra.mrb[0].mxu0 %v485
    %v3306 = vpop.f32.mrb[0].mxu0
    %v3307 = vadd.f32 %v3202, %v3306
    %v3308 = vpop.f32.mrb[0].mxu0
    %v3309 = vpop.f32.mrb[0].mxu0
    %v3310 = vadd.f32 %v3207, %v3309
    %v3311 = vpop.f32.mrb[0].mxu0
    %3312 = vdwg.mxu0
    %v3313 = vadd.f32 %v3251, %v82
    %v3314 = vadd.f32 %v3254, %v87
    %v3315 = vadd.f32 %v3259, %v92
    %v3316 = vadd.f32 %v3262, %v97
    %v3317 = vadd.f32 %v3267, %v102
    %v3318 = vadd.f32 %v3270, %v107
    %v3319 = vadd.f32 %v3275, %v112
    %v3320 = vadd.f32 %v3278, %v117
    %v3321 = vadd.f32 %v3283, %v122
    %v3322 = vadd.f32 %v3286, %v127
    %v3323 = vadd.f32 %v3291, %v132
    %v3324 = vadd.f32 %v3294, %v137
    %v3325 = vadd.f32 %v3299, %v142
    %v3326 = vadd.f32 %v3302, %v147
    %v3327 = vadd.f32 %v3307, %v152
    %v3328 = vadd.f32 %v3310, %v157
    %v3329 = vxor.u32 %v3313, 2147483648
    %v3330 = vxor.u32 %v3314, 2147483648
    %v3331 = vxor.u32 %v3315, 2147483648
    %v3332 = vxor.u32 %v3316, 2147483648
    %v3333 = vmul.f32 %v3329, 1.442695
    %v3334 = vpow.pop %v3333
    %v3335 = vmul.f32 %v3330, 1.442695
    %v3336 = vpow.pop %v3335
    %v3337 = vmul.f32 %v3331, 1.442695
    %v3338 = vpow.pop %v3337
    %v3339 = vmul.f32 %v3332, 1.442695
    %v3340 = vpow.pop %v3339
    %v3341 = vadd.f32 %v3334, 1.0
    %v3342 = vadd.f32 %v3336, 1.0
    %v3343 = vadd.f32 %v3338, 1.0
    %v3344 = vadd.f32 %v3340, 1.0
    %v3345 = vrcp.pop %v3341
    %v3346 = vmul.f32 1.0, %v3345
    %v3347 = vrcp.pop %v3342
    %v3348 = vmul.f32 1.0, %v3347
    %v3349 = vrcp.pop %v3343
    %v3350 = vmul.f32 1.0, %v3349
    %v3351 = vrcp.pop %v3344
    %v3352 = vmul.f32 1.0, %v3351
    %v3353 = vxor.u32 %v3317, 2147483648
    %v3354 = vxor.u32 %v3318, 2147483648
    %v3355 = vxor.u32 %v3319, 2147483648
    %v3356 = vxor.u32 %v3320, 2147483648
    %v3357 = vmul.f32 %v3353, 1.442695
    %v3358 = vpow.pop %v3357
    %v3359 = vmul.f32 %v3354, 1.442695
    %v3360 = vpow.pop %v3359
    %v3361 = vmul.f32 %v3355, 1.442695
    %v3362 = vpow.pop %v3361
    %v3363 = vmul.f32 %v3356, 1.442695
    %v3364 = vpow.pop %v3363
    %v3365 = vadd.f32 %v3358, 1.0
    %v3366 = vadd.f32 %v3360, 1.0
    %v3367 = vadd.f32 %v3362, 1.0
    %v3368 = vadd.f32 %v3364, 1.0
    %v3369 = vrcp.pop %v3365
    %v3370 = vmul.f32 1.0, %v3369
    %v3371 = vrcp.pop %v3366
    %v3372 = vmul.f32 1.0, %v3371
    %v3373 = vrcp.pop %v3367
    %v3374 = vmul.f32 1.0, %v3373
    %v3375 = vrcp.pop %v3368
    %v3376 = vmul.f32 1.0, %v3375
    %v3377 = vtanh.pop %v3321
    %v3378 = vtanh.pop %v3322
    %v3379 = vtanh.pop %v3323
    %v3380 = vtanh.pop %v3324
    %v3381 = vxor.u32 %v3325, 2147483648
    %v3382 = vxor.u32 %v3326, 2147483648
    %v3383 = vxor.u32 %v3327, 2147483648
    %v3384 = vxor.u32 %v3328, 2147483648
    %v3385 = vmul.f32 %v3381, 1.442695
    %v3386 = vpow.pop %v3385
    %v3387 = vmul.f32 %v3382, 1.442695
    %v3388 = vpow.pop %v3387
    %v3389 = vmul.f32 %v3383, 1.442695
    %v3390 = vpow.pop %v3389
    %v3391 = vmul.f32 %v3384, 1.442695
    %v3392 = vpow.pop %v3391
    %v3393 = vadd.f32 %v3386, 1.0
    %v3394 = vadd.f32 %v3388, 1.0
    %v3395 = vadd.f32 %v3390, 1.0
    %v3396 = vadd.f32 %v3392, 1.0
    %v3397 = vrcp.pop %v3393
    %v3398 = vmul.f32 1.0, %v3397
    %v3399 = vrcp.pop %v3394
    %v3400 = vmul.f32 1.0, %v3399
    %v3401 = vrcp.pop %v3395
    %v3402 = vmul.f32 1.0, %v3401
    %v3403 = vrcp.pop %v3396
    %v3404 = vmul.f32 1.0, %v3403
    %v3405 = vmul.f32 %v3370, %v2960
    %v3406 = vmul.f32 %v3372, %v2961
    %v3407 = vmul.f32 %v3374, %v2962
    %v3408 = vmul.f32 %v3376, %v2963
    %v3409 = vmul.f32 %v3346, %v3377
    %v3410 = vmul.f32 %v3348, %v3378
    %v3411 = vmul.f32 %v3350, %v3379
    %v3412 = vmul.f32 %v3352, %v3380
    %v3413 = vadd.f32 %v3405, %v3409
    %v3414 = vadd.f32 %v3406, %v3410
    %v3415 = vadd.f32 %v3407, %v3411
    %v3416 = vadd.f32 %v3408, %v3412
    %v3417 = vtanh.pop %v3413
    %v3418 = vtanh.pop %v3414
    %v3419 = vtanh.pop %v3415
    %v3420 = vtanh.pop %v3416
    %v3421 = vmul.f32 %v3398, %v3417
    %v3422 = vmul.f32 %v3400, %v3418
    %v3423 = vmul.f32 %v3402, %v3419
    %v3424 = vmul.f32 %v3404, %v3420
    %3425 = vmatprep.subr.mxu0 0.0
    %3426 = vmatpush1.msra.mxu0 %v3421
    %3427 = vmatprep.subr.mxu0 0.0
    %3428 = vmatpush1.msra.mxu0 %v3422
    %3429 = vmatprep.subr.mxu0 0.0
    %3430 = vmatpush1.msra.mxu0 %v3423
    %3431 = vmatprep.subr.mxu0 0.0
    %3432 = vmatpush1.msra.mxu0 %v3424
    %3433 = vmatprep.subr.mxu0 0.0
    %3434 = vmatpush1.msra.mxu0 0.0
    %3435 = vmatprep.subr.mxu0 0.0
    %3436 = vmatpush1.msra.mxu0 0.0
    %3437 = vmatprep.subr.mxu0 0.0
    %3438 = vmatpush1.msra.mxu0 0.0
    %3439 = vmatprep.subr.mxu0 0.0
    %3440 = vmatpush1.msra.mxu0 0.0
    %3441 = vmatprep.subr.mxu0 0.0
    %3442 = vmatpush1.msra.mxu0 0.0
    %3443 = vmatprep.subr.mxu0 0.0
    %3444 = vmatpush1.msra.mxu0 0.0
    %3445 = vmatprep.subr.mxu0 0.0
    %3446 = vmatpush1.msra.mxu0 0.0
    %3447 = vmatprep.subr.mxu0 0.0
    %3448 = vmatpush1.msra.mxu0 0.0
    %3449 = vmatprep.subr.mxu0 0.0
    %3450 = vmatpush1.msra.mxu0 0.0
    %3451 = vmatprep.subr.mxu0 0.0
    %3452 = vmatpush1.msra.mxu0 0.0
    %3453 = vmatprep.subr.mxu0 0.0
    %3454 = vmatpush1.msra.mxu0 0.0
    %3455 = vmatprep.subr.mxu0 0.0
    %3456 = vmatpush1.msra.mxu0 0.0
    %3457 = vmatprep.subr.mxu0 0.0
    %3458 = vmatpush1.msra.mxu0 0.0
    %3459 = vmatprep.subr.mxu0 0.0
    %3460 = vmatpush1.msra.mxu0 0.0
    %3461 = vmatprep.subr.mxu0 0.0
    %3462 = vmatpush1.msra.mxu0 0.0
    %3463 = vmatprep.subr.mxu0 0.0
    %3464 = vmatpush1.msra.mxu0 0.0
    %3465 = vmatprep.subr.mxu0 0.0
    %3466 = vmatpush1.msra.mxu0 0.0
    %3467 = vmatprep.subr.mxu0 0.0
    %3468 = vmatpush1.msra.mxu0 0.0
    %3469 = vmatprep.subr.mxu0 0.0
    %3470 = vmatpush1.msra.mxu0 0.0
    %3471 = vmatprep.subr.mxu0 0.0
    %3472 = vmatpush1.msra.mxu0 0.0
    %3473 = vmatprep.subr.mxu0 0.0
    %3474 = vmatpush1.msra.mxu0 0.0
    %3475 = vmatprep.subr.mxu0 0.0
    %3476 = vmatpush1.msra.mxu0 0.0
    %3477 = vmatprep.subr.mxu0 0.0
    %3478 = vmatpush1.msra.mxu0 0.0
    %3479 = vmatprep.subr.mxu0 0.0
    %3480 = vmatpush1.msra.mxu0 0.0
    %3481 = vmatprep.subr.mxu0 0.0
    %3482 = vmatpush1.msra.mxu0 0.0
    %3483 = vmatprep.subr.mxu0 0.0
    %3484 = vmatpush1.msra.mxu0 0.0
    %3485 = vmatprep.subr.mxu0 0.0
    %3486 = vmatpush1.msra.mxu0 0.0
    %3487 = vmatprep.subr.mxu0 0.0
    %3488 = vmatpush1.msra.mxu0 0.0
    %3489 = vmatprep.mubr.f32.mxu0 0.0
    %3490 = vmatmul.mubr.f32.gmra.mrb[0].mxu0 %v697
    %v3491 = vpop.f32.mrb[0].mxu0
    %v3492 = vadd.f32 %v190, %v3491
    %v3493 = vpop.f32.mrb[0].mxu0
    %3494 = vmatprep.mubr.f32.mxu0 0.0
    %3495 = vmatmul.mubr.f32.gmra.mrb[0].mxu0 %v700
    %v3496 = vpop.f32.mrb[0].mxu0
    %v3497 = vadd.f32 %v195, %v3496
    %v3498 = vpop.f32.mrb[0].mxu0
    %3499 = vmatprep.mubr.f32.mxu0 0.0
    %3500 = vmatmul.mubr.f32.gmra.mrb[0].mxu0 %v703
    %v3501 = vpop.f32.mrb[0].mxu0
    %v3502 = vadd.f32 %v200, %v3501
    %v3503 = vpop.f32.mrb[0].mxu0
    %3504 = vmatprep.mubr.f32.mxu0 0.0
    %3505 = vmatmul.mubr.f32.gmra.mrb[0].mxu0 %v706
    %v3506 = vpop.f32.mrb[0].mxu0
    %v3507 = vadd.f32 %v205, %v3506
    %v3508 = vpop.f32.mrb[0].mxu0
    %3509 = vdwg.mxu0
    %s3510 = scalar_lea.vmem [#allocation2], 192
    %3511 = vst [vmem:[%s3510] sm:$0xff] %v3492
    %3512 = vst [vmem:[%s3510 + $0x8] sm:$0xff] %v3497
    %3513 = vst [vmem:[%s3510 + $0x10] sm:$0xff] %v3502
    %3514 = vst [vmem:[%s3510 + $0x18] sm:$0xff] %v3507
    %s3515 = scalar_lea.vmem %s0, 56
    %v3516 = vld [vmem:[%s3515] sm:$0xf]
    %v3517 = vld [vmem:[%s3515 + $0x4] sm:$0xf]
    %3518 = vmatprep.subr.mxu0 0.0
    %3519 = vmatpush1.msra.mxu0 %v3421
    %3520 = vmatprep.subr.mxu0 0.0
    %3521 = vmatpush1.msra.mxu0 %v3422
    %3522 = vmatprep.subr.mxu0 0.0
    %3523 = vmatpush1.msra.mxu0 %v3423
    %3524 = vmatprep.subr.mxu0 0.0
    %3525 = vmatpush1.msra.mxu0 %v3424
    %3526 = vmatprep.subr.mxu0 0.0
    %3527 = vmatpush1.msra.mxu0 0.0
    %3528 = vmatprep.subr.mxu0 0.0
    %3529 = vmatpush1.msra.mxu0 0.0
    %3530 = vmatprep.subr.mxu0 0.0
    %3531 = vmatpush1.msra.mxu0 0.0
    %3532 = vmatprep.subr.mxu0 0.0
    %3533 = vmatpush1.msra.mxu0 0.0
    %3534 = vmatprep.subr.mxu0 0.0
    %3535 = vmatpush1.msra.mxu0 0.0
    %3536 = vmatprep.subr.mxu0 0.0
    %3537 = vmatpush1.msra.mxu0 0.0
    %3538 = vmatprep.subr.mxu0 0.0
    %3539 = vmatpush1.msra.mxu0 0.0
    %3540 = vmatprep.subr.mxu0 0.0
    %3541 = vmatpush1.msra.mxu0 0.0
    %3542 = vmatprep.subr.mxu0 0.0
    %3543 = vmatpush1.msra.mxu0 0.0
    %3544 = vmatprep.subr.mxu0 0.0
    %3545 = vmatpush1.msra.mxu0 0.0
    %3546 = vmatprep.subr.mxu0 0.0
    %3547 = vmatpush1.msra.mxu0 0.0
    %3548 = vmatprep.subr.mxu0 0.0
    %3549 = vmatpush1.msra.mxu0 0.0
    %3550 = vmatprep.subr.mxu0 0.0
    %3551 = vmatpush1.msra.mxu0 0.0
    %3552 = vmatprep.subr.mxu0 0.0
    %3553 = vmatpush1.msra.mxu0 0.0
    %3554 = vmatprep.subr.mxu0 0.0
    %3555 = vmatpush1.msra.mxu0 0.0
    %3556 = vmatprep.subr.mxu0 0.0
    %3557 = vmatpush1.msra.mxu0 0.0
    %3558 = vmatprep.subr.mxu0 0.0
    %3559 = vmatpush1.msra.mxu0 0.0
    %3560 = vmatprep.subr.mxu0 0.0
    %3561 = vmatpush1.msra.mxu0 0.0
    %3562 = vmatprep.subr.mxu0 0.0
    %3563 = vmatpush1.msra.mxu0 0.0
    %3564 = vmatprep.subr.mxu0 0.0
    %3565 = vmatpush1.msra.mxu0 0.0
    %3566 = vmatprep.subr.mxu0 0.0
    %3567 = vmatpush1.msra.mxu0 0.0
    %3568 = vmatprep.subr.mxu0 0.0
    %3569 = vmatpush1.msra.mxu0 0.0
    %3570 = vmatprep.subr.mxu0 0.0
    %3571 = vmatpush1.msra.mxu0 0.0
    %3572 = vmatprep.subr.mxu0 0.0
    %3573 = vmatpush1.msra.mxu0 0.0
    %3574 = vmatprep.subr.mxu0 0.0
    %3575 = vmatpush1.msra.mxu0 0.0
    %3576 = vmatprep.subr.mxu0 0.0
    %3577 = vmatpush1.msra.mxu0 0.0
    %3578 = vmatprep.subr.mxu0 0.0
    %3579 = vmatpush1.msra.mxu0 0.0
    %3580 = vmatprep.subr.mxu0 0.0
    %3581 = vmatpush1.msra.mxu0 0.0
    %3582 = vmatprep.mubr.f32.mxu0 0.0
    %3583 = vmatmul.mubr.f32.gmra.mrb[0].mxu0 %v224
    %v3584 = vpop.f32.mrb[0].mxu0
    %v3585 = vadd.f32 0.0, %v3584
    %v3586 = vpop.f32.mrb[0].mxu0
    %3587 = vmatprep.mubr.f32.mxu0 0.0
    %3588 = vmatmul.mubr.f32.gmra.mrb[0].mxu0 %v227
    %v3589 = vpop.f32.mrb[0].mxu0
    %v3590 = vadd.f32 0.0, %v3589
    %v3591 = vpop.f32.mrb[0].mxu0
    %3592 = vmatprep.mubr.f32.mxu0 0.0
    %3593 = vmatmul.mubr.f32.gmra.mrb[0].mxu0 %v230
    %v3594 = vpop.f32.mrb[0].mxu0
    %v3595 = vadd.f32 0.0, %v3594
    %v3596 = vpop.f32.mrb[0].mxu0
    %3597 = vmatprep.mubr.f32.mxu0 0.0
    %3598 = vmatmul.mubr.f32.gmra.mrb[0].mxu0 %v233
    %v3599 = vpop.f32.mrb[0].mxu0
    %v3600 = vadd.f32 0.0, %v3599
    %v3601 = vpop.f32.mrb[0].mxu0
    %3602 = vmatprep.mubr.f32.mxu0 0.0
    %3603 = vmatmul.mubr.f32.gmra.mrb[0].mxu0 %v236
    %v3604 = vpop.f32.mrb[0].mxu0
    %v3605 = vadd.f32 0.0, %v3604
    %v3606 = vpop.f32.mrb[0].mxu0
    %3607 = vmatprep.mubr.f32.mxu0 0.0
    %3608 = vmatmul.mubr.f32.gmra.mrb[0].mxu0 %v239
    %v3609 = vpop.f32.mrb[0].mxu0
    %v3610 = vadd.f32 0.0, %v3609
    %v3611 = vpop.f32.mrb[0].mxu0
    %3612 = vmatprep.mubr.f32.mxu0 0.0
    %3613 = vmatmul.mubr.f32.gmra.mrb[0].mxu0 %v242
    %v3614 = vpop.f32.mrb[0].mxu0
    %v3615 = vadd.f32 0.0, %v3614
    %v3616 = vpop.f32.mrb[0].mxu0
    %3617 = vmatprep.mubr.f32.mxu0 0.0
    %3618 = vmatmul.mubr.f32.gmra.mrb[0].mxu0 %v245
    %v3619 = vpop.f32.mrb[0].mxu0
    %v3620 = vadd.f32 0.0, %v3619
    %v3621 = vpop.f32.mrb[0].mxu0
    %3622 = vmatprep.mubr.f32.mxu0 0.0
    %3623 = vmatmul.mubr.f32.gmra.mrb[0].mxu0 %v248
    %v3624 = vpop.f32.mrb[0].mxu0
    %v3625 = vadd.f32 0.0, %v3624
    %v3626 = vpop.f32.mrb[0].mxu0
    %3627 = vmatprep.mubr.f32.mxu0 0.0
    %3628 = vmatmul.mubr.f32.gmra.mrb[0].mxu0 %v251
    %v3629 = vpop.f32.mrb[0].mxu0
    %v3630 = vadd.f32 0.0, %v3629
    %v3631 = vpop.f32.mrb[0].mxu0
    %3632 = vmatprep.mubr.f32.mxu0 0.0
    %3633 = vmatmul.mubr.f32.gmra.mrb[0].mxu0 %v254
    %v3634 = vpop.f32.mrb[0].mxu0
    %v3635 = vadd.f32 0.0, %v3634
    %v3636 = vpop.f32.mrb[0].mxu0
    %3637 = vmatprep.mubr.f32.mxu0 0.0
    %3638 = vmatmul.mubr.f32.gmra.mrb[0].mxu0 %v257
    %v3639 = vpop.f32.mrb[0].mxu0
    %v3640 = vadd.f32 0.0, %v3639
    %v3641 = vpop.f32.mrb[0].mxu0
    %3642 = vmatprep.mubr.f32.mxu0 0.0
    %3643 = vmatmul.mubr.f32.gmra.mrb[0].mxu0 %v260
    %v3644 = vpop.f32.mrb[0].mxu0
    %v3645 = vadd.f32 0.0, %v3644
    %v3646 = vpop.f32.mrb[0].mxu0
    %3647 = vmatprep.mubr.f32.mxu0 0.0
    %3648 = vmatmul.mubr.f32.gmra.mrb[0].mxu0 %v263
    %v3649 = vpop.f32.mrb[0].mxu0
    %v3650 = vadd.f32 0.0, %v3649
    %v3651 = vpop.f32.mrb[0].mxu0
    %3652 = vmatprep.mubr.f32.mxu0 0.0
    %3653 = vmatmul.mubr.f32.gmra.mrb[0].mxu0 %v266
    %v3654 = vpop.f32.mrb[0].mxu0
    %v3655 = vadd.f32 0.0, %v3654
    %v3656 = vpop.f32.mrb[0].mxu0
    %3657 = vmatprep.mubr.f32.mxu0 0.0
    %3658 = vmatmul.mubr.f32.gmra.mrb[0].mxu0 %v269
    %v3659 = vpop.f32.mrb[0].mxu0
    %v3660 = vadd.f32 0.0, %v3659
    %v3661 = vpop.f32.mrb[0].mxu0
    %3662 = vdwg.mxu0
    %v3665 = vunpack.c.l.b16 %v3516
    %v3666 = vunpack.c.l.b16 %v3517
    %v3667 = vpack.c.b16 %v3666, %v3665
    %3669 = vmatprep.subr.bf16.mxu0 0
    %3670 = vmatpush1.bf16.msra.mxu0 %v3667
    %3671 = vmatprep.subr.bf16.mxu0 0
    %3672 = vmatpush1.bf16.msra.mxu0 0
    %3673 = vmatprep.subr.bf16.mxu0 0
    %3674 = vmatpush1.bf16.msra.mxu0 0
    %3675 = vmatprep.subr.bf16.mxu0 0
    %3676 = vmatpush1.bf16.msra.mxu0 0
    %3677 = vmatprep.subr.bf16.mxu0 0
    %3678 = vmatpush1.bf16.msra.mxu0 0
    %3679 = vmatprep.subr.bf16.mxu0 0
    %3680 = vmatpush1.bf16.msra.mxu0 0
    %3681 = vmatprep.subr.bf16.mxu0 0
    %3682 = vmatpush1.bf16.msra.mxu0 0
    %3683 = vmatprep.subr.bf16.mxu0 0
    %3684 = vmatpush1.bf16.msra.mxu0 0
    %3685 = vmatprep.subr.bf16.mxu0 0
    %3686 = vmatpush1.bf16.msra.mxu0 0
    %3687 = vmatprep.subr.bf16.mxu0 0
    %3688 = vmatpush1.bf16.msra.mxu0 0
    %3689 = vmatprep.subr.bf16.mxu0 0
    %3690 = vmatpush1.bf16.msra.mxu0 0
    %3691 = vmatprep.subr.bf16.mxu0 0
    %3692 = vmatpush1.bf16.msra.mxu0 0
    %3693 = vmatprep.subr.bf16.mxu0 0
    %3694 = vmatpush1.bf16.msra.mxu0 0
    %3695 = vmatprep.subr.bf16.mxu0 0
    %3696 = vmatpush1.bf16.msra.mxu0 0
    %3697 = vmatprep.subr.bf16.mxu0 0
    %3698 = vmatpush1.bf16.msra.mxu0 0
    %3699 = vmatprep.subr.bf16.mxu0 0
    %3700 = vmatpush1.bf16.msra.mxu0 0
    %3701 = vmatprep.mubr.bf16.mxu0 0
    %3702 = vmatmul.mubr.bf16.gmra.mrb[0].mxu0 %v464
    %v3703 = vpop.f32.mrb[0].mxu0
    %v3704 = vadd.f32 %v3585, %v3703
    %v3705 = vpop.f32.mrb[0].mxu0
    %v3706 = vpop.f32.mrb[0].mxu0
    %v3707 = vadd.f32 %v3590, %v3706
    %v3708 = vpop.f32.mrb[0].mxu0
    %3709 = vmatprep.mubr.bf16.mxu0 0
    %3710 = vmatmul.mubr.bf16.gmra.mrb[0].mxu0 %v467
    %v3711 = vpop.f32.mrb[0].mxu0
    %v3712 = vadd.f32 %v3595, %v3711
    %v3713 = vpop.f32.mrb[0].mxu0
    %v3714 = vpop.f32.mrb[0].mxu0
    %v3715 = vadd.f32 %v3600, %v3714
    %v3716 = vpop.f32.mrb[0].mxu0
    %3717 = vmatprep.mubr.bf16.mxu0 0
    %3718 = vmatmul.mubr.bf16.gmra.mrb[0].mxu0 %v470
    %v3719 = vpop.f32.mrb[0].mxu0
    %v3720 = vadd.f32 %v3605, %v3719
    %v3721 = vpop.f32.mrb[0].mxu0
    %v3722 = vpop.f32.mrb[0].mxu0
    %v3723 = vadd.f32 %v3610, %v3722
    %v3724 = vpop.f32.mrb[0].mxu0
    %3725 = vmatprep.mubr.bf16.mxu0 0
    %3726 = vmatmul.mubr.bf16.gmra.mrb[0].mxu0 %v473
    %v3727 = vpop.f32.mrb[0].mxu0
    %v3728 = vadd.f32 %v3615, %v3727
    %v3729 = vpop.f32.mrb[0].mxu0
    %v3730 = vpop.f32.mrb[0].mxu0
    %v3731 = vadd.f32 %v3620, %v3730
    %v3732 = vpop.f32.mrb[0].mxu0
    %3733 = vmatprep.mubr.bf16.mxu0 0
    %3734 = vmatmul.mubr.bf16.gmra.mrb[0].mxu0 %v476
    %v3735 = vpop.f32.mrb[0].mxu0
    %v3736 = vadd.f32 %v3625, %v3735
    %v3737 = vpop.f32.mrb[0].mxu0
    %v3738 = vpop.f32.mrb[0].mxu0
    %v3739 = vadd.f32 %v3630, %v3738
    %v3740 = vpop.f32.mrb[0].mxu0
    %3741 = vmatprep.mubr.bf16.mxu0 0
    %3742 = vmatmul.mubr.bf16.gmra.mrb[0].mxu0 %v479
    %v3743 = vpop.f32.mrb[0].mxu0
    %v3744 = vadd.f32 %v3635, %v3743
    %v3745 = vpop.f32.mrb[0].mxu0
    %v3746 = vpop.f32.mrb[0].mxu0
    %v3747 = vadd.f32 %v3640, %v3746
    %v3748 = vpop.f32.mrb[0].mxu0
    %3749 = vmatprep.mubr.bf16.mxu0 0
    %3750 = vmatmul.mubr.bf16.gmra.mrb[0].mxu0 %v482
    %v3751 = vpop.f32.mrb[0].mxu0
    %v3752 = vadd.f32 %v3645, %v3751
    %v3753 = vpop.f32.mrb[0].mxu0
    %v3754 = vpop.f32.mrb[0].mxu0
    %v3755 = vadd.f32 %v3650, %v3754
    %v3756 = vpop.f32.mrb[0].mxu0
    %3757 = vmatprep.mubr.bf16.mxu0 0
    %3758 = vmatmul.mubr.bf16.gmra.mrb[0].mxu0 %v485
    %v3759 = vpop.f32.mrb[0].mxu0
    %v3760 = vadd.f32 %v3655, %v3759
    %v3761 = vpop.f32.mrb[0].mxu0
    %v3762 = vpop.f32.mrb[0].mxu0
    %v3763 = vadd.f32 %v3660, %v3762
    %v3764 = vpop.f32.mrb[0].mxu0
    %3765 = vdwg.mxu0
    %v3766 = vadd.f32 %v3704, %v82
    %v3767 = vadd.f32 %v3707, %v87
    %v3768 = vadd.f32 %v3712, %v92
    %v3769 = vadd.f32 %v3715, %v97
    %v3770 = vadd.f32 %v3720, %v102
    %v3771 = vadd.f32 %v3723, %v107
    %v3772 = vadd.f32 %v3728, %v112
    %v3773 = vadd.f32 %v3731, %v117
    %v3774 = vadd.f32 %v3736, %v122
    %v3775 = vadd.f32 %v3739, %v127
    %v3776 = vadd.f32 %v3744, %v132
    %v3777 = vadd.f32 %v3747, %v137
    %v3778 = vadd.f32 %v3752, %v142
    %v3779 = vadd.f32 %v3755, %v147
    %v3780 = vadd.f32 %v3760, %v152
    %v3781 = vadd.f32 %v3763, %v157
    %v3782 = vxor.u32 %v3766, 2147483648
    %v3783 = vxor.u32 %v3767, 2147483648
    %v3784 = vxor.u32 %v3768, 2147483648
    %v3785 = vxor.u32 %v3769, 2147483648
    %v3786 = vmul.f32 %v3782, 1.442695
    %v3787 = vpow.pop %v3786
    %v3788 = vmul.f32 %v3783, 1.442695
    %v3789 = vpow.pop %v3788
    %v3790 = vmul.f32 %v3784, 1.442695
    %v3791 = vpow.pop %v3790
    %v3792 = vmul.f32 %v3785, 1.442695
    %v3793 = vpow.pop %v3792
    %v3794 = vadd.f32 %v3787, 1.0
    %v3795 = vadd.f32 %v3789, 1.0
    %v3796 = vadd.f32 %v3791, 1.0
    %v3797 = vadd.f32 %v3793, 1.0
    %v3798 = vrcp.pop %v3794
    %v3799 = vmul.f32 1.0, %v3798
    %v3800 = vrcp.pop %v3795
    %v3801 = vmul.f32 1.0, %v3800
    %v3802 = vrcp.pop %v3796
    %v3803 = vmul.f32 1.0, %v3802
    %v3804 = vrcp.pop %v3797
    %v3805 = vmul.f32 1.0, %v3804
    %v3806 = vxor.u32 %v3770, 2147483648
    %v3807 = vxor.u32 %v3771, 2147483648
    %v3808 = vxor.u32 %v3772, 2147483648
    %v3809 = vxor.u32 %v3773, 2147483648
    %v3810 = vmul.f32 %v3806, 1.442695
    %v3811 = vpow.pop %v3810
    %v3812 = vmul.f32 %v3807, 1.442695
    %v3813 = vpow.pop %v3812
    %v3814 = vmul.f32 %v3808, 1.442695
    %v3815 = vpow.pop %v3814
    %v3816 = vmul.f32 %v3809, 1.442695
    %v3817 = vpow.pop %v3816
    %v3818 = vadd.f32 %v3811, 1.0
    %v3819 = vadd.f32 %v3813, 1.0
    %v3820 = vadd.f32 %v3815, 1.0
    %v3821 = vadd.f32 %v3817, 1.0
    %v3822 = vrcp.pop %v3818
    %v3823 = vmul.f32 1.0, %v3822
    %v3824 = vrcp.pop %v3819
    %v3825 = vmul.f32 1.0, %v3824
    %v3826 = vrcp.pop %v3820
    %v3827 = vmul.f32 1.0, %v3826
    %v3828 = vrcp.pop %v3821
    %v3829 = vmul.f32 1.0, %v3828
    %v3830 = vtanh.pop %v3774
    %v3831 = vtanh.pop %v3775
    %v3832 = vtanh.pop %v3776
    %v3833 = vtanh.pop %v3777
    %v3834 = vxor.u32 %v3778, 2147483648
    %v3835 = vxor.u32 %v3779, 2147483648
    %v3836 = vxor.u32 %v3780, 2147483648
    %v3837 = vxor.u32 %v3781, 2147483648
    %v3838 = vmul.f32 %v3834, 1.442695
    %v3839 = vpow.pop %v3838
    %v3840 = vmul.f32 %v3835, 1.442695
    %v3841 = vpow.pop %v3840
    %v3842 = vmul.f32 %v3836, 1.442695
    %v3843 = vpow.pop %v3842
    %v3844 = vmul.f32 %v3837, 1.442695
    %v3845 = vpow.pop %v3844
    %v3846 = vadd.f32 %v3839, 1.0
    %v3847 = vadd.f32 %v3841, 1.0
    %v3848 = vadd.f32 %v3843, 1.0
    %v3849 = vadd.f32 %v3845, 1.0
    %v3850 = vrcp.pop %v3846
    %v3851 = vmul.f32 1.0, %v3850
    %v3852 = vrcp.pop %v3847
    %v3853 = vmul.f32 1.0, %v3852
    %v3854 = vrcp.pop %v3848
    %v3855 = vmul.f32 1.0, %v3854
    %v3856 = vrcp.pop %v3849
    %v3857 = vmul.f32 1.0, %v3856
    %v3858 = vmul.f32 %v3823, %v3413
    %v3859 = vmul.f32 %v3825, %v3414
    %v3860 = vmul.f32 %v3827, %v3415
    %v3861 = vmul.f32 %v3829, %v3416
    %v3862 = vmul.f32 %v3799, %v3830
    %v3863 = vmul.f32 %v3801, %v3831
    %v3864 = vmul.f32 %v3803, %v3832
    %v3865 = vmul.f32 %v3805, %v3833
    %v3866 = vadd.f32 %v3858, %v3862
    %v3867 = vadd.f32 %v3859, %v3863
    %v3868 = vadd.f32 %v3860, %v3864
    %v3869 = vadd.f32 %v3861, %v3865
    %v3870 = vtanh.pop %v3866
    %v3871 = vtanh.pop %v3867
    %v3872 = vtanh.pop %v3868
    %v3873 = vtanh.pop %v3869
    %v3874 = vmul.f32 %v3851, %v3870
    %v3875 = vmul.f32 %v3853, %v3871
    %v3876 = vmul.f32 %v3855, %v3872
    %v3877 = vmul.f32 %v3857, %v3873
    %3878 = vmatprep.subr.mxu0 0.0
    %3879 = vmatpush1.msra.mxu0 %v3874
    %3880 = vmatprep.subr.mxu0 0.0
    %3881 = vmatpush1.msra.mxu0 %v3875
    %3882 = vmatprep.subr.mxu0 0.0
    %3883 = vmatpush1.msra.mxu0 %v3876
    %3884 = vmatprep.subr.mxu0 0.0
    %3885 = vmatpush1.msra.mxu0 %v3877
    %3886 = vmatprep.subr.mxu0 0.0
    %3887 = vmatpush1.msra.mxu0 0.0
    %3888 = vmatprep.subr.mxu0 0.0
    %3889 = vmatpush1.msra.mxu0 0.0
    %3890 = vmatprep.subr.mxu0 0.0
    %3891 = vmatpush1.msra.mxu0 0.0
    %3892 = vmatprep.subr.mxu0 0.0
    %3893 = vmatpush1.msra.mxu0 0.0
    %3894 = vmatprep.subr.mxu0 0.0
    %3895 = vmatpush1.msra.mxu0 0.0
    %3896 = vmatprep.subr.mxu0 0.0
    %3897 = vmatpush1.msra.mxu0 0.0
    %3898 = vmatprep.subr.mxu0 0.0
    %3899 = vmatpush1.msra.mxu0 0.0
    %3900 = vmatprep.subr.mxu0 0.0
    %3901 = vmatpush1.msra.mxu0 0.0
    %3902 = vmatprep.subr.mxu0 0.0
    %3903 = vmatpush1.msra.mxu0 0.0
    %3904 = vmatprep.subr.mxu0 0.0
    %3905 = vmatpush1.msra.mxu0 0.0
    %3906 = vmatprep.subr.mxu0 0.0
    %3907 = vmatpush1.msra.mxu0 0.0
    %3908 = vmatprep.subr.mxu0 0.0
    %3909 = vmatpush1.msra.mxu0 0.0
    %3910 = vmatprep.subr.mxu0 0.0
    %3911 = vmatpush1.msra.mxu0 0.0
    %3912 = vmatprep.subr.mxu0 0.0
    %3913 = vmatpush1.msra.mxu0 0.0
    %3914 = vmatprep.subr.mxu0 0.0
    %3915 = vmatpush1.msra.mxu0 0.0
    %3916 = vmatprep.subr.mxu0 0.0
    %3917 = vmatpush1.msra.mxu0 0.0
    %3918 = vmatprep.subr.mxu0 0.0
    %3919 = vmatpush1.msra.mxu0 0.0
    %3920 = vmatprep.subr.mxu0 0.0
    %3921 = vmatpush1.msra.mxu0 0.0
    %3922 = vmatprep.subr.mxu0 0.0
    %3923 = vmatpush1.msra.mxu0 0.0
    %3924 = vmatprep.subr.mxu0 0.0
    %3925 = vmatpush1.msra.mxu0 0.0
    %3926 = vmatprep.subr.mxu0 0.0
    %3927 = vmatpush1.msra.mxu0 0.0
    %3928 = vmatprep.subr.mxu0 0.0
    %3929 = vmatpush1.msra.mxu0 0.0
    %3930 = vmatprep.subr.mxu0 0.0
    %3931 = vmatpush1.msra.mxu0 0.0
    %3932 = vmatprep.subr.mxu0 0.0
    %3933 = vmatpush1.msra.mxu0 0.0
    %3934 = vmatprep.subr.mxu0 0.0
    %3935 = vmatpush1.msra.mxu0 0.0
    %3936 = vmatprep.subr.mxu0 0.0
    %3937 = vmatpush1.msra.mxu0 0.0
    %3938 = vmatprep.subr.mxu0 0.0
    %3939 = vmatpush1.msra.mxu0 0.0
    %3940 = vmatprep.subr.mxu0 0.0
    %3941 = vmatpush1.msra.mxu0 0.0
    %3942 = vmatprep.mubr.f32.mxu0 0.0
    %3943 = vmatmul.mubr.f32.gmra.mrb[0].mxu0 %v697
    %v3944 = vpop.f32.mrb[0].mxu0
    %v3945 = vadd.f32 %v190, %v3944
    %v3946 = vpop.f32.mrb[0].mxu0
    %3947 = vmatprep.mubr.f32.mxu0 0.0
    %3948 = vmatmul.mubr.f32.gmra.mrb[0].mxu0 %v700
    %v3949 = vpop.f32.mrb[0].mxu0
    %v3950 = vadd.f32 %v195, %v3949
    %v3951 = vpop.f32.mrb[0].mxu0
    %3952 = vmatprep.mubr.f32.mxu0 0.0
    %3953 = vmatmul.mubr.f32.gmra.mrb[0].mxu0 %v703
    %v3954 = vpop.f32.mrb[0].mxu0
    %v3955 = vadd.f32 %v200, %v3954
    %v3956 = vpop.f32.mrb[0].mxu0
    %3957 = vmatprep.mubr.f32.mxu0 0.0
    %3958 = vmatmul.mubr.f32.gmra.mrb[0].mxu0 %v706
    %v3959 = vpop.f32.mrb[0].mxu0
    %v3960 = vadd.f32 %v205, %v3959
    %v3961 = vpop.f32.mrb[0].mxu0
    %3962 = vdwg.mxu0
    %s3963 = scalar_lea.vmem [#allocation2], 224
    %3964 = vst [vmem:[%s3963] sm:$0xff] %v3945
    %3965 = vst [vmem:[%s3963 + $0x8] sm:$0xff] %v3950
    %3966 = vst [vmem:[%s3963 + $0x10] sm:$0xff] %v3955
    %3967 = vst [vmem:[%s3963 + $0x18] sm:$0xff] %v3960
    %v3968 = vld [vmem:[#allocation2] sm:$0xff]
    %v3969 = vld [vmem:[#allocation2 + $0x8] sm:$0xff]
    %v3970 = vld [vmem:[#allocation2 + $0x10] sm:$0xff]
    %v3971 = vld [vmem:[#allocation2 + $0x18] sm:$0xff]
    %v3972 = vld [vmem:[#allocation2 + $0x20] sm:$0xff]
    %v3973 = vld [vmem:[#allocation2 + $0x28] sm:$0xff]
    %v3974 = vld [vmem:[#allocation2 + $0x30] sm:$0xff]
    %v3975 = vld [vmem:[#allocation2 + $0x38] sm:$0xff]
    %v3976 = vld [vmem:[#allocation2 + $0x40] sm:$0xff]
    %v3977 = vld [vmem:[#allocation2 + $0x48] sm:$0xff]
    %v3978 = vld [vmem:[#allocation2 + $0x50] sm:$0xff]
    %v3979 = vld [vmem:[#allocation2 + $0x58] sm:$0xff]
    %v3980 = vld [vmem:[#allocation2 + $0x60] sm:$0xff]
    %v3981 = vld [vmem:[#allocation2 + $0x68] sm:$0xff]
    %v3982 = vld [vmem:[#allocation2 + $0x70] sm:$0xff]
    %v3983 = vld [vmem:[#allocation2 + $0x78] sm:$0xff]
    %v3984 = vld [vmem:[#allocation2 + $0x80] sm:$0xff]
    %v3985 = vld [vmem:[#allocation2 + $0x88] sm:$0xff]
    %v3986 = vld [vmem:[#allocation2 + $0x90] sm:$0xff]
    %v3987 = vld [vmem:[#allocation2 + $0x98] sm:$0xff]
    %v3988 = vld [vmem:[#allocation2 + $0xa0] sm:$0xff]
    %v3989 = vld [vmem:[#allocation2 + $0xa8] sm:$0xff]
    %v3990 = vld [vmem:[#allocation2 + $0xb0] sm:$0xff]
    %v3991 = vld [vmem:[#allocation2 + $0xb8] sm:$0xff]
    %v3992 = vld [vmem:[#allocation2 + $0xc0] sm:$0xff]
    %v3993 = vld [vmem:[#allocation2 + $0xc8] sm:$0xff]
    %v3994 = vld [vmem:[#allocation2 + $0xd0] sm:$0xff]
    %v3995 = vld [vmem:[#allocation2 + $0xd8] sm:$0xff]
    %v3996 = vld [vmem:[#allocation2 + $0xe0] sm:$0xff]
    %v3997 = vld [vmem:[#allocation2 + $0xe8] sm:$0xff]
    %v3998 = vld [vmem:[#allocation2 + $0xf0] sm:$0xff]
    %v3999 = vld [vmem:[#allocation2 + $0xf8] sm:$0xff]
    %v4001 = vsel %vm222, %v51, 0
    %v4004 = vsel %vm222, %v52, 0
    %v4007 = vsel %vm222, %v53, 0
    %v4010 = vsel %vm222, %v54, 0
    %4012 = vmatprep.subr.mxu0 0.0
    %4013 = vmatpush1.msra.mxu0 %v3874
    %4014 = vmatprep.subr.mxu0 0.0
    %4015 = vmatpush1.msra.mxu0 %v3875
    %4016 = vmatprep.subr.mxu0 0.0
    %4017 = vmatpush1.msra.mxu0 %v3876
    %4018 = vmatprep.subr.mxu0 0.0
    %4019 = vmatpush1.msra.mxu0 %v3877
    %4020 = vmatprep.subr.mxu0 0.0
    %4021 = vmatpush1.msra.mxu0 0.0
    %4022 = vmatprep.subr.mxu0 0.0
    %4023 = vmatpush1.msra.mxu0 0.0
    %4024 = vmatprep.subr.mxu0 0.0
    %4025 = vmatpush1.msra.mxu0 0.0
    %4026 = vmatprep.subr.mxu0 0.0
    %4027 = vmatpush1.msra.mxu0 0.0
    %4028 = vmatprep.subr.mxu0 0.0
    %4029 = vmatpush1.msra.mxu0 0.0
    %4030 = vmatprep.subr.mxu0 0.0
    %4031 = vmatpush1.msra.mxu0 0.0
    %4032 = vmatprep.subr.mxu0 0.0
    %4033 = vmatpush1.msra.mxu0 0.0
    %4034 = vmatprep.subr.mxu0 0.0
    %4035 = vmatpush1.msra.mxu0 0.0
    %4036 = vmatprep.subr.mxu0 0.0
    %4037 = vmatpush1.msra.mxu0 0.0
    %4038 = vmatprep.subr.mxu0 0.0
    %4039 = vmatpush1.msra.mxu0 0.0
    %4040 = vmatprep.subr.mxu0 0.0
    %4041 = vmatpush1.msra.mxu0 0.0
    %4042 = vmatprep.subr.mxu0 0.0
    %4043 = vmatpush1.msra.mxu0 0.0
    %4044 = vmatprep.subr.mxu0 0.0
    %4045 = vmatpush1.msra.mxu0 0.0
    %4046 = vmatprep.subr.mxu0 0.0
    %4047 = vmatpush1.msra.mxu0 0.0
    %4048 = vmatprep.subr.mxu0 0.0
    %4049 = vmatpush1.msra.mxu0 0.0
    %4050 = vmatprep.subr.mxu0 0.0
    %4051 = vmatpush1.msra.mxu0 0.0
    %4052 = vmatprep.subr.mxu0 0.0
    %4053 = vmatpush1.msra.mxu0 0.0
    %4054 = vmatprep.subr.mxu0 0.0
    %4055 = vmatpush1.msra.mxu0 0.0
    %4056 = vmatprep.subr.mxu0 0.0
    %4057 = vmatpush1.msra.mxu0 0.0
    %4058 = vmatprep.subr.mxu0 0.0
    %4059 = vmatpush1.msra.mxu0 0.0
    %4060 = vmatprep.subr.mxu0 0.0
    %4061 = vmatpush1.msra.mxu0 0.0
    %4062 = vmatprep.subr.mxu0 0.0
    %4063 = vmatpush1.msra.mxu0 0.0
    %4064 = vmatprep.subr.mxu0 0.0
    %4065 = vmatpush1.msra.mxu0 0.0
    %4066 = vmatprep.subr.mxu0 0.0
    %4067 = vmatpush1.msra.mxu0 0.0
    %4068 = vmatprep.subr.mxu0 0.0
    %4069 = vmatpush1.msra.mxu0 0.0
    %4070 = vmatprep.subr.mxu0 0.0
    %4071 = vmatpush1.msra.mxu0 0.0
    %4072 = vmatprep.subr.mxu0 0.0
    %4073 = vmatpush1.msra.mxu0 0.0
    %4074 = vmatprep.subr.mxu0 0.0
    %4075 = vmatpush1.msra.mxu0 0.0
    %4076 = vmatprep.mubr.f32.mxu0 0.0
    %4077 = vmatmul.mubr.f32.gmra.mrb[0].mxu0 %v4001
    %v4078 = vpop.f32.mrb[0].mxu0
    %v4079 = vadd.f32 %v166, %v4078
    %v4080 = vpop.f32.mrb[0].mxu0
    %4081 = vmatprep.mubr.f32.mxu0 0.0
    %4082 = vmatmul.mubr.f32.gmra.mrb[0].mxu0 %v4004
    %v4083 = vpop.f32.mrb[0].mxu0
    %v4084 = vadd.f32 %v171, %v4083
    %v4085 = vpop.f32.mrb[0].mxu0
    %4086 = vmatprep.mubr.f32.mxu0 0.0
    %4087 = vmatmul.mubr.f32.gmra.mrb[0].mxu0 %v4007
    %v4088 = vpop.f32.mrb[0].mxu0
    %v4089 = vadd.f32 %v176, %v4088
    %v4090 = vpop.f32.mrb[0].mxu0
    %4091 = vmatprep.mubr.f32.mxu0 0.0
    %4092 = vmatmul.mubr.f32.gmra.mrb[0].mxu0 %v4010
    %v4093 = vpop.f32.mrb[0].mxu0
    %v4094 = vadd.f32 %v181, %v4093
    %v4095 = vpop.f32.mrb[0].mxu0
    %4096 = vdwg.mxu0
    %v4097 = vadd.f32 %v4079, %v3968
    %v4098 = vadd.f32 %v4084, %v3969
    %v4099 = vadd.f32 %v4089, %v3970
    %v4100 = vadd.f32 %v4094, %v3971
    %v4101 = vadd.f32 %v4079, %v3972
    %v4102 = vadd.f32 %v4084, %v3973
    %v4103 = vadd.f32 %v4089, %v3974
    %v4104 = vadd.f32 %v4094, %v3975
    %v4105 = vadd.f32 %v4079, %v3976
    %v4106 = vadd.f32 %v4084, %v3977
    %v4107 = vadd.f32 %v4089, %v3978
    %v4108 = vadd.f32 %v4094, %v3979
    %v4109 = vadd.f32 %v4079, %v3980
    %v4110 = vadd.f32 %v4084, %v3981
    %v4111 = vadd.f32 %v4089, %v3982
    %v4112 = vadd.f32 %v4094, %v3983
    %v4113 = vadd.f32 %v4079, %v3984
    %v4114 = vadd.f32 %v4084, %v3985
    %v4115 = vadd.f32 %v4089, %v3986
    %v4116 = vadd.f32 %v4094, %v3987
    %v4117 = vadd.f32 %v4079, %v3988
    %v4118 = vadd.f32 %v4084, %v3989
    %v4119 = vadd.f32 %v4089, %v3990
    %v4120 = vadd.f32 %v4094, %v3991
    %v4121 = vadd.f32 %v4079, %v3992
    %v4122 = vadd.f32 %v4084, %v3993
    %v4123 = vadd.f32 %v4089, %v3994
    %v4124 = vadd.f32 %v4094, %v3995
    %v4125 = vadd.f32 %v4079, %v3996
    %v4126 = vadd.f32 %v4084, %v3997
    %v4127 = vadd.f32 %v4089, %v3998
    %v4128 = vadd.f32 %v4094, %v3999
    %v4129 = vtanh.pop %v4097
    %v4130 = vtanh.pop %v4098
    %v4131 = vtanh.pop %v4099
    %v4132 = vtanh.pop %v4100
    %v4133 = vtanh.pop %v4101
    %v4134 = vtanh.pop %v4102
    %v4135 = vtanh.pop %v4103
    %v4136 = vtanh.pop %v4104
    %v4137 = vtanh.pop %v4105
    %v4138 = vtanh.pop %v4106
    %v4139 = vtanh.pop %v4107
    %v4140 = vtanh.pop %v4108
    %v4141 = vtanh.pop %v4109
    %v4142 = vtanh.pop %v4110
    %v4143 = vtanh.pop %v4111
    %v4144 = vtanh.pop %v4112
    %v4145 = vtanh.pop %v4113
    %v4146 = vtanh.pop %v4114
    %v4147 = vtanh.pop %v4115
    %v4148 = vtanh.pop %v4116
    %v4149 = vtanh.pop %v4117
    %v4150 = vtanh.pop %v4118
    %v4151 = vtanh.pop %v4119
    %v4152 = vtanh.pop %v4120
    %v4153 = vtanh.pop %v4121
    %v4154 = vtanh.pop %v4122
    %v4155 = vtanh.pop %v4123
    %v4156 = vtanh.pop %v4124
    %v4157 = vtanh.pop %v4125
    %v4158 = vtanh.pop %v4126
    %v4159 = vtanh.pop %v4127
    %v4160 = vtanh.pop %v4128
    %4162 = vset.pattern.permute.xlu0 0
    %4163 = vperm.xlu0 %4162, %v207
    %v4164 = vpop.permute.xlu0 %4163
    %4167 = vset.pattern.permute.xlu0 0
    %4168 = vperm.xlu0 %4167, %v208
    %v4169 = vpop.permute.xlu0 %4168
    %4172 = vset.pattern.permute.xlu0 0
    %4173 = vperm.xlu0 %4172, %v209
    %v4174 = vpop.permute.xlu0 %4173
    %4177 = vset.pattern.permute.xlu0 0
    %4178 = vperm.xlu0 %4177, %v210
    %v4179 = vpop.permute.xlu0 %4178
    %v4181 = vmul.f32 %v4129, %v4164
    %v4182 = vmul.f32 %v4130, %v4169
    %v4183 = vmul.f32 %v4131, %v4174
    %v4184 = vmul.f32 %v4132, %v4179
    %v4185 = vmul.f32 %v4133, %v4164
    %v4186 = vmul.f32 %v4134, %v4169
    %v4187 = vmul.f32 %v4135, %v4174
    %v4188 = vmul.f32 %v4136, %v4179
    %v4189 = vmul.f32 %v4137, %v4164
    %v4190 = vmul.f32 %v4138, %v4169
    %v4191 = vmul.f32 %v4139, %v4174
    %v4192 = vmul.f32 %v4140, %v4179
    %v4193 = vmul.f32 %v4141, %v4164
    %v4194 = vmul.f32 %v4142, %v4169
    %v4195 = vmul.f32 %v4143, %v4174
    %v4196 = vmul.f32 %v4144, %v4179
    %v4197 = vmul.f32 %v4145, %v4164
    %v4198 = vmul.f32 %v4146, %v4169
    %v4199 = vmul.f32 %v4147, %v4174
    %v4200 = vmul.f32 %v4148, %v4179
    %v4201 = vmul.f32 %v4149, %v4164
    %v4202 = vmul.f32 %v4150, %v4169
    %v4203 = vmul.f32 %v4151, %v4174
    %v4204 = vmul.f32 %v4152, %v4179
    %v4205 = vmul.f32 %v4153, %v4164
    %v4206 = vmul.f32 %v4154, %v4169
    %v4207 = vmul.f32 %v4155, %v4174
    %v4208 = vmul.f32 %v4156, %v4179
    %v4209 = vmul.f32 %v4157, %v4164
    %v4210 = vmul.f32 %v4158, %v4169
    %v4211 = vmul.f32 %v4159, %v4174
    %v4212 = vmul.f32 %v4160, %v4179
    %v4213 = vadd.f32 %v4181, %v4182
    %v4214 = vadd.f32 %v4213, %v4183
    %v4215 = vadd.f32 %v4214, %v4184
    %v4216 = vrot.slane %v4215, 4
    %v4217 = vadd.f32 %v4215, %v4216
    %v4218 = vrot.slane %v4217, 2
    %v4219 = vadd.f32 %v4217, %v4218
    %v4220 = vrot.slane %v4219, 1
    %v4221 = vadd.f32 %v4219, %v4220
    %v4222 = vadd.f32 %v4185, %v4186
    %v4223 = vadd.f32 %v4222, %v4187
    %v4224 = vadd.f32 %v4223, %v4188
    %v4225 = vrot.slane %v4224, 4
    %v4226 = vadd.f32 %v4224, %v4225
    %v4227 = vrot.slane %v4226, 2
    %v4228 = vadd.f32 %v4226, %v4227
    %v4229 = vrot.slane %v4228, 1
    %v4230 = vadd.f32 %v4228, %v4229
    %v4231 = vadd.f32 %v4189, %v4190
    %v4232 = vadd.f32 %v4231, %v4191
    %v4233 = vadd.f32 %v4232, %v4192
    %v4234 = vrot.slane %v4233, 4
    %v4235 = vadd.f32 %v4233, %v4234
    %v4236 = vrot.slane %v4235, 2
    %v4237 = vadd.f32 %v4235, %v4236
    %v4238 = vrot.slane %v4237, 1
    %v4239 = vadd.f32 %v4237, %v4238
    %v4240 = vadd.f32 %v4193, %v4194
    %v4241 = vadd.f32 %v4240, %v4195
    %v4242 = vadd.f32 %v4241, %v4196
    %v4243 = vrot.slane %v4242, 4
    %v4244 = vadd.f32 %v4242, %v4243
    %v4245 = vrot.slane %v4244, 2
    %v4246 = vadd.f32 %v4244, %v4245
    %v4247 = vrot.slane %v4246, 1
    %v4248 = vadd.f32 %v4246, %v4247
    %v4249 = vadd.f32 %v4197, %v4198
    %v4250 = vadd.f32 %v4249, %v4199
    %v4251 = vadd.f32 %v4250, %v4200
    %v4252 = vrot.slane %v4251, 4
    %v4253 = vadd.f32 %v4251, %v4252
    %v4254 = vrot.slane %v4253, 2
    %v4255 = vadd.f32 %v4253, %v4254
    %v4256 = vrot.slane %v4255, 1
    %v4257 = vadd.f32 %v4255, %v4256
    %v4258 = vadd.f32 %v4201, %v4202
    %v4259 = vadd.f32 %v4258, %v4203
    %v4260 = vadd.f32 %v4259, %v4204
    %v4261 = vrot.slane %v4260, 4
    %v4262 = vadd.f32 %v4260, %v4261
    %v4263 = vrot.slane %v4262, 2
    %v4264 = vadd.f32 %v4262, %v4263
    %v4265 = vrot.slane %v4264, 1
    %v4266 = vadd.f32 %v4264, %v4265
    %v4267 = vadd.f32 %v4205, %v4206
    %v4268 = vadd.f32 %v4267, %v4207
    %v4269 = vadd.f32 %v4268, %v4208
    %v4270 = vrot.slane %v4269, 4
    %v4271 = vadd.f32 %v4269, %v4270
    %v4272 = vrot.slane %v4271, 2
    %v4273 = vadd.f32 %v4271, %v4272
    %v4274 = vrot.slane %v4273, 1
    %v4275 = vadd.f32 %v4273, %v4274
    %v4276 = vadd.f32 %v4209, %v4210
    %v4277 = vadd.f32 %v4276, %v4211
    %v4278 = vadd.f32 %v4277, %v4212
    %v4279 = vrot.slane %v4278, 4
    %v4280 = vadd.f32 %v4278, %v4279
    %v4281 = vrot.slane %v4280, 2
    %v4282 = vadd.f32 %v4280, %v4281
    %v4283 = vrot.slane %v4282, 1
    %v4284 = vadd.f32 %v4282, %v4283
    %v4285 = vtanh.pop %v4221
    %v4286 = vtanh.pop %v4230
    %v4287 = vtanh.pop %v4239
    %v4288 = vtanh.pop %v4248
    %v4289 = vtanh.pop %v4257
    %v4290 = vtanh.pop %v4266
    %v4291 = vtanh.pop %v4275
    %v4292 = vtanh.pop %v4284
    %v4293 = vmul.f32 %v4285, 10.0
    %v4294 = vmul.f32 %v4286, 10.0
    %v4295 = vmul.f32 %v4287, 10.0
    %v4296 = vmul.f32 %v4288, 10.0
    %v4297 = vmul.f32 %v4289, 10.0
    %v4298 = vmul.f32 %v4290, 10.0
    %v4299 = vmul.f32 %v4291, 10.0
    %v4300 = vmul.f32 %v4292, 10.0
    %v4301 = vmax.f32 %v4293, %v4297
    %v4302 = vmax.f32 %v4294, %v4298
    %v4303 = vmax.f32 %v4295, %v4299
    %v4304 = vmax.f32 %v4296, %v4300
    %v4305 = vmax.f32 %v4301, %v4302
    %v4306 = vmax.f32 %v4303, %v4304
    %v4307 = vmax.f32 %v4305, %v4306
    %v4308 = vsub.f32 %v4293, %v4307
    %v4309 = vsub.f32 %v4294, %v4307
    %v4310 = vsub.f32 %v4295, %v4307
    %v4311 = vsub.f32 %v4296, %v4307
    %v4312 = vsub.f32 %v4297, %v4307
    %v4313 = vsub.f32 %v4298, %v4307
    %v4314 = vsub.f32 %v4299, %v4307
    %v4315 = vsub.f32 %v4300, %v4307
    %v4316 = vmul.f32 %v4308, 1.442695
    %v4317 = vpow.pop %v4316
    %v4318 = vmul.f32 %v4309, 1.442695
    %v4319 = vpow.pop %v4318
    %v4320 = vmul.f32 %v4310, 1.442695
    %v4321 = vpow.pop %v4320
    %v4322 = vmul.f32 %v4311, 1.442695
    %v4323 = vpow.pop %v4322
    %v4324 = vmul.f32 %v4312, 1.442695
    %v4325 = vpow.pop %v4324
    %v4326 = vmul.f32 %v4313, 1.442695
    %v4327 = vpow.pop %v4326
    %v4328 = vmul.f32 %v4314, 1.442695
    %v4329 = vpow.pop %v4328
    %v4330 = vmul.f32 %v4315, 1.442695
    %v4331 = vpow.pop %v4330
    %v4332 = vadd.f32 %v4317, %v4319
    %v4333 = vadd.f32 %v4332, %v4321
    %v4334 = vadd.f32 %v4333, %v4323
    %v4335 = vadd.f32 %v4334, %v4325
    %v4336 = vadd.f32 %v4335, %v4327
    %v4337 = vadd.f32 %v4336, %v4329
    %v4338 = vadd.f32 %v4337, %v4331
    %v4339 = vmul.f32 %v3968, %v4317
    %v4340 = vmul.f32 %v3969, %v4317
    %v4341 = vmul.f32 %v3970, %v4317
    %v4342 = vmul.f32 %v3971, %v4317
    %v4343 = vmul.f32 %v3972, %v4319
    %v4344 = vmul.f32 %v3973, %v4319
    %v4345 = vmul.f32 %v3974, %v4319
    %v4346 = vmul.f32 %v3975, %v4319
    %v4347 = vmul.f32 %v3976, %v4321
    %v4348 = vmul.f32 %v3977, %v4321
    %v4349 = vmul.f32 %v3978, %v4321
    %v4350 = vmul.f32 %v3979, %v4321
    %v4351 = vmul.f32 %v3980, %v4323
    %v4352 = vmul.f32 %v3981, %v4323
    %v4353 = vmul.f32 %v3982, %v4323
    %v4354 = vmul.f32 %v3983, %v4323
    %v4355 = vmul.f32 %v3984, %v4325
    %v4356 = vmul.f32 %v3985, %v4325
    %v4357 = vmul.f32 %v3986, %v4325
    %v4358 = vmul.f32 %v3987, %v4325
    %v4359 = vmul.f32 %v3988, %v4327
    %v4360 = vmul.f32 %v3989, %v4327
    %v4361 = vmul.f32 %v3990, %v4327
    %v4362 = vmul.f32 %v3991, %v4327
    %v4363 = vmul.f32 %v3992, %v4329
    %v4364 = vmul.f32 %v3993, %v4329
    %v4365 = vmul.f32 %v3994, %v4329
    %v4366 = vmul.f32 %v3995, %v4329
    %v4367 = vmul.f32 %v3996, %v4331
    %v4368 = vmul.f32 %v3997, %v4331
    %v4369 = vmul.f32 %v3998, %v4331
    %v4370 = vmul.f32 %v3999, %v4331
    %v4371 = vadd.f32 %v4339, %v4343
    %v4372 = vadd.f32 %v4371, %v4347
    %v4373 = vadd.f32 %v4372, %v4351
    %v4374 = vadd.f32 %v4373, %v4355
    %v4375 = vadd.f32 %v4374, %v4359
    %v4376 = vadd.f32 %v4375, %v4363
    %v4377 = vadd.f32 %v4376, %v4367
    %v4378 = vadd.f32 %v4340, %v4344
    %v4379 = vadd.f32 %v4378, %v4348
    %v4380 = vadd.f32 %v4379, %v4352
    %v4381 = vadd.f32 %v4380, %v4356
    %v4382 = vadd.f32 %v4381, %v4360
    %v4383 = vadd.f32 %v4382, %v4364
    %v4384 = vadd.f32 %v4383, %v4368
    %v4385 = vadd.f32 %v4341, %v4345
    %v4386 = vadd.f32 %v4385, %v4349
    %v4387 = vadd.f32 %v4386, %v4353
    %v4388 = vadd.f32 %v4387, %v4357
    %v4389 = vadd.f32 %v4388, %v4361
    %v4390 = vadd.f32 %v4389, %v4365
    %v4391 = vadd.f32 %v4390, %v4369
    %v4392 = vadd.f32 %v4342, %v4346
    %v4393 = vadd.f32 %v4392, %v4350
    %v4394 = vadd.f32 %v4393, %v4354
    %v4395 = vadd.f32 %v4394, %v4358
    %v4396 = vadd.f32 %v4395, %v4362
    %v4397 = vadd.f32 %v4396, %v4366
    %v4398 = vadd.f32 %v4397, %v4370
    %v4399 = vrcp.pop %v4338
    %v4400 = vmul.f32 %v4377, %v4399
    %v4401 = vmul.f32 %v4384, %v4399
    %v4402 = vmul.f32 %v4391, %v4399
    %v4403 = vmul.f32 %v4398, %v4399
    %4404 = vmatprep.subr.mxu0 0.0
    %4405 = vmatpush1.msra.mxu0 %v4400
    %4406 = vmatprep.subr.mxu0 0.0
    %4407 = vmatpush1.msra.mxu0 %v4401
    %4408 = vmatprep.subr.mxu0 0.0
    %4409 = vmatpush1.msra.mxu0 %v4402
    %4410 = vmatprep.subr.mxu0 0.0
    %4411 = vmatpush1.msra.mxu0 %v4403
    %4412 = vmatprep.subr.mxu0 0.0
    %4413 = vmatpush1.msra.mxu0 0.0
    %4414 = vmatprep.subr.mxu0 0.0
    %4415 = vmatpush1.msra.mxu0 0.0
    %4416 = vmatprep.subr.mxu0 0.0
    %4417 = vmatpush1.msra.mxu0 0.0
    %4418 = vmatprep.subr.mxu0 0.0
    %4419 = vmatpush1.msra.mxu0 0.0
    %4420 = vmatprep.subr.mxu0 0.0
    %4421 = vmatpush1.msra.mxu0 0.0
    %4422 = vmatprep.subr.mxu0 0.0
    %4423 = vmatpush1.msra.mxu0 0.0
    %4424 = vmatprep.subr.mxu0 0.0
    %4425 = vmatpush1.msra.mxu0 0.0
    %4426 = vmatprep.subr.mxu0 0.0
    %4427 = vmatpush1.msra.mxu0 0.0
    %4428 = vmatprep.subr.mxu0 0.0
    %4429 = vmatpush1.msra.mxu0 0.0
    %4430 = vmatprep.subr.mxu0 0.0
    %4431 = vmatpush1.msra.mxu0 0.0
    %4432 = vmatprep.subr.mxu0 0.0
    %4433 = vmatpush1.msra.mxu0 0.0
    %4434 = vmatprep.subr.mxu0 0.0
    %4435 = vmatpush1.msra.mxu0 0.0
    %4436 = vmatprep.subr.mxu0 0.0
    %4437 = vmatpush1.msra.mxu0 0.0
    %4438 = vmatprep.subr.mxu0 0.0
    %4439 = vmatpush1.msra.mxu0 0.0
    %4440 = vmatprep.subr.mxu0 0.0
    %4441 = vmatpush1.msra.mxu0 0.0
    %4442 = vmatprep.subr.mxu0 0.0
    %4443 = vmatpush1.msra.mxu0 0.0
    %4444 = vmatprep.subr.mxu0 0.0
    %4445 = vmatpush1.msra.mxu0 0.0
    %4446 = vmatprep.subr.mxu0 0.0
    %4447 = vmatpush1.msra.mxu0 0.0
    %4448 = vmatprep.subr.mxu0 0.0
    %4449 = vmatpush1.msra.mxu0 0.0
    %4450 = vmatprep.subr.mxu0 0.0
    %4451 = vmatpush1.msra.mxu0 0.0
    %4452 = vmatprep.subr.mxu0 0.0
    %4453 = vmatpush1.msra.mxu0 0.0
    %4454 = vmatprep.subr.mxu0 0.0
    %4455 = vmatpush1.msra.mxu0 0.0
    %4456 = vmatprep.subr.mxu0 0.0
    %4457 = vmatpush1.msra.mxu0 0.0
    %4458 = vmatprep.subr.mxu0 0.0
    %4459 = vmatpush1.msra.mxu0 0.0
    %4460 = vmatprep.subr.mxu0 0.0
    %4461 = vmatpush1.msra.mxu0 0.0
    %4462 = vmatprep.subr.mxu0 0.0
    %4463 = vmatpush1.msra.mxu0 0.0
    %4464 = vmatprep.subr.mxu0 0.0
    %4465 = vmatpush1.msra.mxu0 0.0
    %4466 = vmatprep.subr.mxu0 0.0
    %4467 = vmatpush1.msra.mxu0 0.0
    %4468 = vmatprep.mubr.f32.mxu0 0.0
    %4469 = vmatmul.mubr.f32.gmra.mrb[0].mxu0 %v4001
    %v4470 = vpop.f32.mrb[0].mxu0
    %v4471 = vadd.f32 %v166, %v4470
    %v4472 = vpop.f32.mrb[0].mxu0
    %4473 = vmatprep.mubr.f32.mxu0 0.0
    %4474 = vmatmul.mubr.f32.gmra.mrb[0].mxu0 %v4004
    %v4475 = vpop.f32.mrb[0].mxu0
    %v4476 = vadd.f32 %v171, %v4475
    %v4477 = vpop.f32.mrb[0].mxu0
    %4478 = vmatprep.mubr.f32.mxu0 0.0
    %4479 = vmatmul.mubr.f32.gmra.mrb[0].mxu0 %v4007
    %v4480 = vpop.f32.mrb[0].mxu0
    %v4481 = vadd.f32 %v176, %v4480
    %v4482 = vpop.f32.mrb[0].mxu0
    %4483 = vmatprep.mubr.f32.mxu0 0.0
    %4484 = vmatmul.mubr.f32.gmra.mrb[0].mxu0 %v4010
    %v4485 = vpop.f32.mrb[0].mxu0
    %v4486 = vadd.f32 %v181, %v4485
    %v4487 = vpop.f32.mrb[0].mxu0
    %4488 = vdwg.mxu0
    %v4489 = vadd.f32 %v4471, %v3968
    %v4490 = vadd.f32 %v4476, %v3969
    %v4491 = vadd.f32 %v4481, %v3970
    %v4492 = vadd.f32 %v4486, %v3971
    %v4493 = vadd.f32 %v4471, %v3972
    %v4494 = vadd.f32 %v4476, %v3973
    %v4495 = vadd.f32 %v4481, %v3974
    %v4496 = vadd.f32 %v4486, %v3975
    %v4497 = vadd.f32 %v4471, %v3976
    %v4498 = vadd.f32 %v4476, %v3977
    %v4499 = vadd.f32 %v4481, %v3978
    %v4500 = vadd.f32 %v4486, %v3979
    %v4501 = vadd.f32 %v4471, %v3980
    %v4502 = vadd.f32 %v4476, %v3981
    %v4503 = vadd.f32 %v4481, %v3982
    %v4504 = vadd.f32 %v4486, %v3983
    %v4505 = vadd.f32 %v4471, %v3984
    %v4506 = vadd.f32 %v4476, %v3985
    %v4507 = vadd.f32 %v4481, %v3986
    %v4508 = vadd.f32 %v4486, %v3987
    %v4509 = vadd.f32 %v4471, %v3988
    %v4510 = vadd.f32 %v4476, %v3989
    %v4511 = vadd.f32 %v4481, %v3990
    %v4512 = vadd.f32 %v4486, %v3991
    %v4513 = vadd.f32 %v4471, %v3992
    %v4514 = vadd.f32 %v4476, %v3993
    %v4515 = vadd.f32 %v4481, %v3994
    %v4516 = vadd.f32 %v4486, %v3995
    %v4517 = vadd.f32 %v4471, %v3996
    %v4518 = vadd.f32 %v4476, %v3997
    %v4519 = vadd.f32 %v4481, %v3998
    %v4520 = vadd.f32 %v4486, %v3999
    %v4521 = vtanh.pop %v4489
    %v4522 = vtanh.pop %v4490
    %v4523 = vtanh.pop %v4491
    %v4524 = vtanh.pop %v4492
    %v4525 = vtanh.pop %v4493
    %v4526 = vtanh.pop %v4494
    %v4527 = vtanh.pop %v4495
    %v4528 = vtanh.pop %v4496
    %v4529 = vtanh.pop %v4497
    %v4530 = vtanh.pop %v4498
    %v4531 = vtanh.pop %v4499
    %v4532 = vtanh.pop %v4500
    %v4533 = vtanh.pop %v4501
    %v4534 = vtanh.pop %v4502
    %v4535 = vtanh.pop %v4503
    %v4536 = vtanh.pop %v4504
    %v4537 = vtanh.pop %v4505
    %v4538 = vtanh.pop %v4506
    %v4539 = vtanh.pop %v4507
    %v4540 = vtanh.pop %v4508
    %v4541 = vtanh.pop %v4509
    %v4542 = vtanh.pop %v4510
    %v4543 = vtanh.pop %v4511
    %v4544 = vtanh.pop %v4512
    %v4545 = vtanh.pop %v4513
    %v4546 = vtanh.pop %v4514
    %v4547 = vtanh.pop %v4515
    %v4548 = vtanh.pop %v4516
    %v4549 = vtanh.pop %v4517
    %v4550 = vtanh.pop %v4518
    %v4551 = vtanh.pop %v4519
    %v4552 = vtanh.pop %v4520
    %v4553 = vmul.f32 %v4521, %v4164
    %v4554 = vmul.f32 %v4522, %v4169
    %v4555 = vmul.f32 %v4523, %v4174
    %v4556 = vmul.f32 %v4524, %v4179
    %v4557 = vmul.f32 %v4525, %v4164
    %v4558 = vmul.f32 %v4526, %v4169
    %v4559 = vmul.f32 %v4527, %v4174
    %v4560 = vmul.f32 %v4528, %v4179
    %v4561 = vmul.f32 %v4529, %v4164
    %v4562 = vmul.f32 %v4530, %v4169
    %v4563 = vmul.f32 %v4531, %v4174
    %v4564 = vmul.f32 %v4532, %v4179
    %v4565 = vmul.f32 %v4533, %v4164
    %v4566 = vmul.f32 %v4534, %v4169
    %v4567 = vmul.f32 %v4535, %v4174
    %v4568 = vmul.f32 %v4536, %v4179
    %v4569 = vmul.f32 %v4537, %v4164
    %v4570 = vmul.f32 %v4538, %v4169
    %v4571 = vmul.f32 %v4539, %v4174
    %v4572 = vmul.f32 %v4540, %v4179
    %v4573 = vmul.f32 %v4541, %v4164
    %v4574 = vmul.f32 %v4542, %v4169
    %v4575 = vmul.f32 %v4543, %v4174
    %v4576 = vmul.f32 %v4544, %v4179
    %v4577 = vmul.f32 %v4545, %v4164
    %v4578 = vmul.f32 %v4546, %v4169
    %v4579 = vmul.f32 %v4547, %v4174
    %v4580 = vmul.f32 %v4548, %v4179
    %v4581 = vmul.f32 %v4549, %v4164
    %v4582 = vmul.f32 %v4550, %v4169
    %v4583 = vmul.f32 %v4551, %v4174
    %v4584 = vmul.f32 %v4552, %v4179
    %v4585 = vadd.f32 %v4553, %v4554
    %v4586 = vadd.f32 %v4585, %v4555
    %v4587 = vadd.f32 %v4586, %v4556
    %v4588 = vrot.slane %v4587, 4
    %v4589 = vadd.f32 %v4587, %v4588
    %v4590 = vrot.slane %v4589, 2
    %v4591 = vadd.f32 %v4589, %v4590
    %v4592 = vrot.slane %v4591, 1
    %v4593 = vadd.f32 %v4591, %v4592
    %v4594 = vadd.f32 %v4557, %v4558
    %v4595 = vadd.f32 %v4594, %v4559
    %v4596 = vadd.f32 %v4595, %v4560
    %v4597 = vrot.slane %v4596, 4
    %v4598 = vadd.f32 %v4596, %v4597
    %v4599 = vrot.slane %v4598, 2
    %v4600 = vadd.f32 %v4598, %v4599
    %v4601 = vrot.slane %v4600, 1
    %v4602 = vadd.f32 %v4600, %v4601
    %v4603 = vadd.f32 %v4561, %v4562
    %v4604 = vadd.f32 %v4603, %v4563
    %v4605 = vadd.f32 %v4604, %v4564
    %v4606 = vrot.slane %v4605, 4
    %v4607 = vadd.f32 %v4605, %v4606
    %v4608 = vrot.slane %v4607, 2
    %v4609 = vadd.f32 %v4607, %v4608
    %v4610 = vrot.slane %v4609, 1
    %v4611 = vadd.f32 %v4609, %v4610
    %v4612 = vadd.f32 %v4565, %v4566
    %v4613 = vadd.f32 %v4612, %v4567
    %v4614 = vadd.f32 %v4613, %v4568
    %v4615 = vrot.slane %v4614, 4
    %v4616 = vadd.f32 %v4614, %v4615
    %v4617 = vrot.slane %v4616, 2
    %v4618 = vadd.f32 %v4616, %v4617
    %v4619 = vrot.slane %v4618, 1
    %v4620 = vadd.f32 %v4618, %v4619
    %v4621 = vadd.f32 %v4569, %v4570
    %v4622 = vadd.f32 %v4621, %v4571
    %v4623 = vadd.f32 %v4622, %v4572
    %v4624 = vrot.slane %v4623, 4
    %v4625 = vadd.f32 %v4623, %v4624
    %v4626 = vrot.slane %v4625, 2
    %v4627 = vadd.f32 %v4625, %v4626
    %v4628 = vrot.slane %v4627, 1
    %v4629 = vadd.f32 %v4627, %v4628
    %v4630 = vadd.f32 %v4573, %v4574
    %v4631 = vadd.f32 %v4630, %v4575
    %v4632 = vadd.f32 %v4631, %v4576
    %v4633 = vrot.slane %v4632, 4
    %v4634 = vadd.f32 %v4632, %v4633
    %v4635 = vrot.slane %v4634, 2
    %v4636 = vadd.f32 %v4634, %v4635
    %v4637 = vrot.slane %v4636, 1
    %v4638 = vadd.f32 %v4636, %v4637
    %v4639 = vadd.f32 %v4577, %v4578
    %v4640 = vadd.f32 %v4639, %v4579
    %v4641 = vadd.f32 %v4640, %v4580
    %v4642 = vrot.slane %v4641, 4
    %v4643 = vadd.f32 %v4641, %v4642
    %v4644 = vrot.slane %v4643, 2
    %v4645 = vadd.f32 %v4643, %v4644
    %v4646 = vrot.slane %v4645, 1
    %v4647 = vadd.f32 %v4645, %v4646
    %v4648 = vadd.f32 %v4581, %v4582
    %v4649 = vadd.f32 %v4648, %v4583
    %v4650 = vadd.f32 %v4649, %v4584
    %v4651 = vrot.slane %v4650, 4
    %v4652 = vadd.f32 %v4650, %v4651
    %v4653 = vrot.slane %v4652, 2
    %v4654 = vadd.f32 %v4652, %v4653
    %v4655 = vrot.slane %v4654, 1
    %v4656 = vadd.f32 %v4654, %v4655
    %v4657 = vtanh.pop %v4593
    %v4658 = vtanh.pop %v4602
    %v4659 = vtanh.pop %v4611
    %v4660 = vtanh.pop %v4620
    %v4661 = vtanh.pop %v4629
    %v4662 = vtanh.pop %v4638
    %v4663 = vtanh.pop %v4647
    %v4664 = vtanh.pop %v4656
    %v4665 = vmul.f32 %v4657, 10.0
    %v4666 = vmul.f32 %v4658, 10.0
    %v4667 = vmul.f32 %v4659, 10.0
    %v4668 = vmul.f32 %v4660, 10.0
    %v4669 = vmul.f32 %v4661, 10.0
    %v4670 = vmul.f32 %v4662, 10.0
    %v4671 = vmul.f32 %v4663, 10.0
    %v4672 = vmul.f32 %v4664, 10.0
    %v4673 = vmax.f32 %v4665, %v4669
    %v4674 = vmax.f32 %v4666, %v4670
    %v4675 = vmax.f32 %v4667, %v4671
    %v4676 = vmax.f32 %v4668, %v4672
    %v4677 = vmax.f32 %v4673, %v4674
    %v4678 = vmax.f32 %v4675, %v4676
    %v4679 = vmax.f32 %v4677, %v4678
    %v4680 = vsub.f32 %v4665, %v4679
    %v4681 = vsub.f32 %v4666, %v4679
    %v4682 = vsub.f32 %v4667, %v4679
    %v4683 = vsub.f32 %v4668, %v4679
    %v4684 = vsub.f32 %v4669, %v4679
    %v4685 = vsub.f32 %v4670, %v4679
    %v4686 = vsub.f32 %v4671, %v4679
    %v4687 = vsub.f32 %v4672, %v4679
    %v4688 = vmul.f32 %v4680, 1.442695
    %v4689 = vpow.pop %v4688
    %v4690 = vmul.f32 %v4681, 1.442695
    %v4691 = vpow.pop %v4690
    %v4692 = vmul.f32 %v4682, 1.442695
    %v4693 = vpow.pop %v4692
    %v4694 = vmul.f32 %v4683, 1.442695
    %v4695 = vpow.pop %v4694
    %v4696 = vmul.f32 %v4684, 1.442695
    %v4697 = vpow.pop %v4696
    %v4698 = vmul.f32 %v4685, 1.442695
    %v4699 = vpow.pop %v4698
    %v4700 = vmul.f32 %v4686, 1.442695
    %v4701 = vpow.pop %v4700
    %v4702 = vmul.f32 %v4687, 1.442695
    %v4703 = vpow.pop %v4702
    %v4704 = vadd.f32 %v4689, %v4691
    %v4705 = vadd.f32 %v4704, %v4693
    %v4706 = vadd.f32 %v4705, %v4695
    %v4707 = vadd.f32 %v4706, %v4697
    %v4708 = vadd.f32 %v4707, %v4699
    %v4709 = vadd.f32 %v4708, %v4701
    %v4710 = vadd.f32 %v4709, %v4703
    %v4711 = vmul.f32 %v3968, %v4689
    %v4712 = vmul.f32 %v3969, %v4689
    %v4713 = vmul.f32 %v3970, %v4689
    %v4714 = vmul.f32 %v3971, %v4689
    %v4715 = vmul.f32 %v3972, %v4691
    %v4716 = vmul.f32 %v3973, %v4691
    %v4717 = vmul.f32 %v3974, %v4691
    %v4718 = vmul.f32 %v3975, %v4691
    %v4719 = vmul.f32 %v3976, %v4693
    %v4720 = vmul.f32 %v3977, %v4693
    %v4721 = vmul.f32 %v3978, %v4693
    %v4722 = vmul.f32 %v3979, %v4693
    %v4723 = vmul.f32 %v3980, %v4695
    %v4724 = vmul.f32 %v3981, %v4695
    %v4725 = vmul.f32 %v3982, %v4695
    %v4726 = vmul.f32 %v3983, %v4695
    %v4727 = vmul.f32 %v3984, %v4697
    %v4728 = vmul.f32 %v3985, %v4697
    %v4729 = vmul.f32 %v3986, %v4697
    %v4730 = vmul.f32 %v3987, %v4697
    %v4731 = vmul.f32 %v3988, %v4699
    %v4732 = vmul.f32 %v3989, %v4699
    %v4733 = vmul.f32 %v3990, %v4699
    %v4734 = vmul.f32 %v3991, %v4699
    %v4735 = vmul.f32 %v3992, %v4701
    %v4736 = vmul.f32 %v3993, %v4701
    %v4737 = vmul.f32 %v3994, %v4701
    %v4738 = vmul.f32 %v3995, %v4701
    %v4739 = vmul.f32 %v3996, %v4703
    %v4740 = vmul.f32 %v3997, %v4703
    %v4741 = vmul.f32 %v3998, %v4703
    %v4742 = vmul.f32 %v3999, %v4703
    %v4743 = vadd.f32 %v4711, %v4715
    %v4744 = vadd.f32 %v4743, %v4719
    %v4745 = vadd.f32 %v4744, %v4723
    %v4746 = vadd.f32 %v4745, %v4727
    %v4747 = vadd.f32 %v4746, %v4731
    %v4748 = vadd.f32 %v4747, %v4735
    %v4749 = vadd.f32 %v4748, %v4739
    %v4750 = vadd.f32 %v4712, %v4716
    %v4751 = vadd.f32 %v4750, %v4720
    %v4752 = vadd.f32 %v4751, %v4724
    %v4753 = vadd.f32 %v4752, %v4728
    %v4754 = vadd.f32 %v4753, %v4732
    %v4755 = vadd.f32 %v4754, %v4736
    %v4756 = vadd.f32 %v4755, %v4740
    %v4757 = vadd.f32 %v4713, %v4717
    %v4758 = vadd.f32 %v4757, %v4721
    %v4759 = vadd.f32 %v4758, %v4725
    %v4760 = vadd.f32 %v4759, %v4729
    %v4761 = vadd.f32 %v4760, %v4733
    %v4762 = vadd.f32 %v4761, %v4737
    %v4763 = vadd.f32 %v4762, %v4741
    %v4764 = vadd.f32 %v4714, %v4718
    %v4765 = vadd.f32 %v4764, %v4722
    %v4766 = vadd.f32 %v4765, %v4726
    %v4767 = vadd.f32 %v4766, %v4730
    %v4768 = vadd.f32 %v4767, %v4734
    %v4769 = vadd.f32 %v4768, %v4738
    %v4770 = vadd.f32 %v4769, %v4742
    %v4771 = vrcp.pop %v4710
    %v4772 = vmul.f32 %v4749, %v4771
    %v4773 = vmul.f32 %v4756, %v4771
    %v4774 = vmul.f32 %v4763, %v4771
    %v4775 = vmul.f32 %v4770, %v4771
    %4776 = vmatprep.subr.mxu0 0.0
    %4777 = vmatpush1.msra.mxu0 %v4772
    %4778 = vmatprep.subr.mxu0 0.0
    %4779 = vmatpush1.msra.mxu0 %v4773
    %4780 = vmatprep.subr.mxu0 0.0
    %4781 = vmatpush1.msra.mxu0 %v4774
    %4782 = vmatprep.subr.mxu0 0.0
    %4783 = vmatpush1.msra.mxu0 %v4775
    %4784 = vmatprep.subr.mxu0 0.0
    %4785 = vmatpush1.msra.mxu0 0.0
    %4786 = vmatprep.subr.mxu0 0.0
    %4787 = vmatpush1.msra.mxu0 0.0
    %4788 = vmatprep.subr.mxu0 0.0
    %4789 = vmatpush1.msra.mxu0 0.0
    %4790 = vmatprep.subr.mxu0 0.0
    %4791 = vmatpush1.msra.mxu0 0.0
    %4792 = vmatprep.subr.mxu0 0.0
    %4793 = vmatpush1.msra.mxu0 0.0
    %4794 = vmatprep.subr.mxu0 0.0
    %4795 = vmatpush1.msra.mxu0 0.0
    %4796 = vmatprep.subr.mxu0 0.0
    %4797 = vmatpush1.msra.mxu0 0.0
    %4798 = vmatprep.subr.mxu0 0.0
    %4799 = vmatpush1.msra.mxu0 0.0
    %4800 = vmatprep.subr.mxu0 0.0
    %4801 = vmatpush1.msra.mxu0 0.0
    %4802 = vmatprep.subr.mxu0 0.0
    %4803 = vmatpush1.msra.mxu0 0.0
    %4804 = vmatprep.subr.mxu0 0.0
    %4805 = vmatpush1.msra.mxu0 0.0
    %4806 = vmatprep.subr.mxu0 0.0
    %4807 = vmatpush1.msra.mxu0 0.0
    %4808 = vmatprep.subr.mxu0 0.0
    %4809 = vmatpush1.msra.mxu0 0.0
    %4810 = vmatprep.subr.mxu0 0.0
    %4811 = vmatpush1.msra.mxu0 0.0
    %4812 = vmatprep.subr.mxu0 0.0
    %4813 = vmatpush1.msra.mxu0 0.0
    %4814 = vmatprep.subr.mxu0 0.0
    %4815 = vmatpush1.msra.mxu0 0.0
    %4816 = vmatprep.subr.mxu0 0.0
    %4817 = vmatpush1.msra.mxu0 0.0
    %4818 = vmatprep.subr.mxu0 0.0
    %4819 = vmatpush1.msra.mxu0 0.0
    %4820 = vmatprep.subr.mxu0 0.0
    %4821 = vmatpush1.msra.mxu0 0.0
    %4822 = vmatprep.subr.mxu0 0.0
    %4823 = vmatpush1.msra.mxu0 0.0
    %4824 = vmatprep.subr.mxu0 0.0
    %4825 = vmatpush1.msra.mxu0 0.0
    %4826 = vmatprep.subr.mxu0 0.0
    %4827 = vmatpush1.msra.mxu0 0.0
    %4828 = vmatprep.subr.mxu0 0.0
    %4829 = vmatpush1.msra.mxu0 0.0
    %4830 = vmatprep.subr.mxu0 0.0
    %4831 = vmatpush1.msra.mxu0 0.0
    %4832 = vmatprep.subr.mxu0 0.0
    %4833 = vmatpush1.msra.mxu0 0.0
    %4834 = vmatprep.subr.mxu0 0.0
    %4835 = vmatpush1.msra.mxu0 0.0
    %4836 = vmatprep.subr.mxu0 0.0
    %4837 = vmatpush1.msra.mxu0 0.0
    %4838 = vmatprep.subr.mxu0 0.0
    %4839 = vmatpush1.msra.mxu0 0.0
    %4840 = vmatprep.mubr.f32.mxu0 0.0
    %4841 = vmatmul.mubr.f32.gmra.mrb[0].mxu0 %v4001
    %v4842 = vpop.f32.mrb[0].mxu0
    %v4843 = vadd.f32 %v166, %v4842
    %v4844 = vpop.f32.mrb[0].mxu0
    %4845 = vmatprep.mubr.f32.mxu0 0.0
    %4846 = vmatmul.mubr.f32.gmra.mrb[0].mxu0 %v4004
    %v4847 = vpop.f32.mrb[0].mxu0
    %v4848 = vadd.f32 %v171, %v4847
    %v4849 = vpop.f32.mrb[0].mxu0
    %4850 = vmatprep.mubr.f32.mxu0 0.0
    %4851 = vmatmul.mubr.f32.gmra.mrb[0].mxu0 %v4007
    %v4852 = vpop.f32.mrb[0].mxu0
    %v4853 = vadd.f32 %v176, %v4852
    %v4854 = vpop.f32.mrb[0].mxu0
    %4855 = vmatprep.mubr.f32.mxu0 0.0
    %4856 = vmatmul.mubr.f32.gmra.mrb[0].mxu0 %v4010
    %v4857 = vpop.f32.mrb[0].mxu0
    %v4858 = vadd.f32 %v181, %v4857
    %v4859 = vpop.f32.mrb[0].mxu0
    %4860 = vdwg.mxu0
    %v4861 = vadd.f32 %v4843, %v3968
    %v4862 = vadd.f32 %v4848, %v3969
    %v4863 = vadd.f32 %v4853, %v3970
    %v4864 = vadd.f32 %v4858, %v3971
    %v4865 = vadd.f32 %v4843, %v3972
    %v4866 = vadd.f32 %v4848, %v3973
    %v4867 = vadd.f32 %v4853, %v3974
    %v4868 = vadd.f32 %v4858, %v3975
    %v4869 = vadd.f32 %v4843, %v3976
    %v4870 = vadd.f32 %v4848, %v3977
    %v4871 = vadd.f32 %v4853, %v3978
    %v4872 = vadd.f32 %v4858, %v3979
    %v4873 = vadd.f32 %v4843, %v3980
    %v4874 = vadd.f32 %v4848, %v3981
    %v4875 = vadd.f32 %v4853, %v3982
    %v4876 = vadd.f32 %v4858, %v3983
    %v4877 = vadd.f32 %v4843, %v3984
    %v4878 = vadd.f32 %v4848, %v3985
    %v4879 = vadd.f32 %v4853, %v3986
    %v4880 = vadd.f32 %v4858, %v3987
    %v4881 = vadd.f32 %v4843, %v3988
    %v4882 = vadd.f32 %v4848, %v3989
    %v4883 = vadd.f32 %v4853, %v3990
    %v4884 = vadd.f32 %v4858, %v3991
    %v4885 = vadd.f32 %v4843, %v3992
    %v4886 = vadd.f32 %v4848, %v3993
    %v4887 = vadd.f32 %v4853, %v3994
    %v4888 = vadd.f32 %v4858, %v3995
    %v4889 = vadd.f32 %v4843, %v3996
    %v4890 = vadd.f32 %v4848, %v3997
    %v4891 = vadd.f32 %v4853, %v3998
    %v4892 = vadd.f32 %v4858, %v3999
    %v4893 = vtanh.pop %v4861
    %v4894 = vtanh.pop %v4862
    %v4895 = vtanh.pop %v4863
    %v4896 = vtanh.pop %v4864
    %v4897 = vtanh.pop %v4865
    %v4898 = vtanh.pop %v4866
    %v4899 = vtanh.pop %v4867
    %v4900 = vtanh.pop %v4868
    %v4901 = vtanh.pop %v4869
    %v4902 = vtanh.pop %v4870
    %v4903 = vtanh.pop %v4871
    %v4904 = vtanh.pop %v4872
    %v4905 = vtanh.pop %v4873
    %v4906 = vtanh.pop %v4874
    %v4907 = vtanh.pop %v4875
    %v4908 = vtanh.pop %v4876
    %v4909 = vtanh.pop %v4877
    %v4910 = vtanh.pop %v4878
    %v4911 = vtanh.pop %v4879
    %v4912 = vtanh.pop %v4880
    %v4913 = vtanh.pop %v4881
    %v4914 = vtanh.pop %v4882
    %v4915 = vtanh.pop %v4883
    %v4916 = vtanh.pop %v4884
    %v4917 = vtanh.pop %v4885
    %v4918 = vtanh.pop %v4886
    %v4919 = vtanh.pop %v4887
    %v4920 = vtanh.pop %v4888
    %v4921 = vtanh.pop %v4889
    %v4922 = vtanh.pop %v4890
    %v4923 = vtanh.pop %v4891
    %v4924 = vtanh.pop %v4892
    %v4925 = vmul.f32 %v4893, %v4164
    %v4926 = vmul.f32 %v4894, %v4169
    %v4927 = vmul.f32 %v4895, %v4174
    %v4928 = vmul.f32 %v4896, %v4179
    %v4929 = vmul.f32 %v4897, %v4164
    %v4930 = vmul.f32 %v4898, %v4169
    %v4931 = vmul.f32 %v4899, %v4174
    %v4932 = vmul.f32 %v4900, %v4179
    %v4933 = vmul.f32 %v4901, %v4164
    %v4934 = vmul.f32 %v4902, %v4169
    %v4935 = vmul.f32 %v4903, %v4174
    %v4936 = vmul.f32 %v4904, %v4179
    %v4937 = vmul.f32 %v4905, %v4164
    %v4938 = vmul.f32 %v4906, %v4169
    %v4939 = vmul.f32 %v4907, %v4174
    %v4940 = vmul.f32 %v4908, %v4179
    %v4941 = vmul.f32 %v4909, %v4164
    %v4942 = vmul.f32 %v4910, %v4169
    %v4943 = vmul.f32 %v4911, %v4174
    %v4944 = vmul.f32 %v4912, %v4179
    %v4945 = vmul.f32 %v4913, %v4164
    %v4946 = vmul.f32 %v4914, %v4169
    %v4947 = vmul.f32 %v4915, %v4174
    %v4948 = vmul.f32 %v4916, %v4179
    %v4949 = vmul.f32 %v4917, %v4164
    %v4950 = vmul.f32 %v4918, %v4169
    %v4951 = vmul.f32 %v4919, %v4174
    %v4952 = vmul.f32 %v4920, %v4179
    %v4953 = vmul.f32 %v4921, %v4164
    %v4954 = vmul.f32 %v4922, %v4169
    %v4955 = vmul.f32 %v4923, %v4174
    %v4956 = vmul.f32 %v4924, %v4179
    %v4957 = vadd.f32 %v4925, %v4926
    %v4958 = vadd.f32 %v4957, %v4927
    %v4959 = vadd.f32 %v4958, %v4928
    %v4960 = vrot.slane %v4959, 4
    %v4961 = vadd.f32 %v4959, %v4960
    %v4962 = vrot.slane %v4961, 2
    %v4963 = vadd.f32 %v4961, %v4962
    %v4964 = vrot.slane %v4963, 1
    %v4965 = vadd.f32 %v4963, %v4964
    %v4966 = vadd.f32 %v4929, %v4930
    %v4967 = vadd.f32 %v4966, %v4931
    %v4968 = vadd.f32 %v4967, %v4932
    %v4969 = vrot.slane %v4968, 4
    %v4970 = vadd.f32 %v4968, %v4969
    %v4971 = vrot.slane %v4970, 2
    %v4972 = vadd.f32 %v4970, %v4971
    %v4973 = vrot.slane %v4972, 1
    %v4974 = vadd.f32 %v4972, %v4973
    %v4975 = vadd.f32 %v4933, %v4934
    %v4976 = vadd.f32 %v4975, %v4935
    %v4977 = vadd.f32 %v4976, %v4936
    %v4978 = vrot.slane %v4977, 4
    %v4979 = vadd.f32 %v4977, %v4978
    %v4980 = vrot.slane %v4979, 2
    %v4981 = vadd.f32 %v4979, %v4980
    %v4982 = vrot.slane %v4981, 1
    %v4983 = vadd.f32 %v4981, %v4982
    %v4984 = vadd.f32 %v4937, %v4938
    %v4985 = vadd.f32 %v4984, %v4939
    %v4986 = vadd.f32 %v4985, %v4940
    %v4987 = vrot.slane %v4986, 4
    %v4988 = vadd.f32 %v4986, %v4987
    %v4989 = vrot.slane %v4988, 2
    %v4990 = vadd.f32 %v4988, %v4989
    %v4991 = vrot.slane %v4990, 1
    %v4992 = vadd.f32 %v4990, %v4991
    %v4993 = vadd.f32 %v4941, %v4942
    %v4994 = vadd.f32 %v4993, %v4943
    %v4995 = vadd.f32 %v4994, %v4944
    %v4996 = vrot.slane %v4995, 4
    %v4997 = vadd.f32 %v4995, %v4996
    %v4998 = vrot.slane %v4997, 2
    %v4999 = vadd.f32 %v4997, %v4998
    %v5000 = vrot.slane %v4999, 1
    %v5001 = vadd.f32 %v4999, %v5000
    %v5002 = vadd.f32 %v4945, %v4946
    %v5003 = vadd.f32 %v5002, %v4947
    %v5004 = vadd.f32 %v5003, %v4948
    %v5005 = vrot.slane %v5004, 4
    %v5006 = vadd.f32 %v5004, %v5005
    %v5007 = vrot.slane %v5006, 2
    %v5008 = vadd.f32 %v5006, %v5007
    %v5009 = vrot.slane %v5008, 1
    %v5010 = vadd.f32 %v5008, %v5009
    %v5011 = vadd.f32 %v4949, %v4950
    %v5012 = vadd.f32 %v5011, %v4951
    %v5013 = vadd.f32 %v5012, %v4952
    %v5014 = vrot.slane %v5013, 4
    %v5015 = vadd.f32 %v5013, %v5014
    %v5016 = vrot.slane %v5015, 2
    %v5017 = vadd.f32 %v5015, %v5016
    %v5018 = vrot.slane %v5017, 1
    %v5019 = vadd.f32 %v5017, %v5018
    %v5020 = vadd.f32 %v4953, %v4954
    %v5021 = vadd.f32 %v5020, %v4955
    %v5022 = vadd.f32 %v5021, %v4956
    %v5023 = vrot.slane %v5022, 4
    %v5024 = vadd.f32 %v5022, %v5023
    %v5025 = vrot.slane %v5024, 2
    %v5026 = vadd.f32 %v5024, %v5025
    %v5027 = vrot.slane %v5026, 1
    %v5028 = vadd.f32 %v5026, %v5027
    %v5029 = vtanh.pop %v4965
    %v5030 = vtanh.pop %v4974
    %v5031 = vtanh.pop %v4983
    %v5032 = vtanh.pop %v4992
    %v5033 = vtanh.pop %v5001
    %v5034 = vtanh.pop %v5010
    %v5035 = vtanh.pop %v5019
    %v5036 = vtanh.pop %v5028
    %v5037 = vmul.f32 %v5029, 10.0
    %v5038 = vmul.f32 %v5030, 10.0
    %v5039 = vmul.f32 %v5031, 10.0
    %v5040 = vmul.f32 %v5032, 10.0
    %v5041 = vmul.f32 %v5033, 10.0
    %v5042 = vmul.f32 %v5034, 10.0
    %v5043 = vmul.f32 %v5035, 10.0
    %v5044 = vmul.f32 %v5036, 10.0
    %v5045 = vmax.f32 %v5037, %v5041
    %v5046 = vmax.f32 %v5038, %v5042
    %v5047 = vmax.f32 %v5039, %v5043
    %v5048 = vmax.f32 %v5040, %v5044
    %v5049 = vmax.f32 %v5045, %v5046
    %v5050 = vmax.f32 %v5047, %v5048
    %v5051 = vmax.f32 %v5049, %v5050
    %v5052 = vsub.f32 %v5037, %v5051
    %v5053 = vsub.f32 %v5038, %v5051
    %v5054 = vsub.f32 %v5039, %v5051
    %v5055 = vsub.f32 %v5040, %v5051
    %v5056 = vsub.f32 %v5041, %v5051
    %v5057 = vsub.f32 %v5042, %v5051
    %v5058 = vsub.f32 %v5043, %v5051
    %v5059 = vsub.f32 %v5044, %v5051
    %v5060 = vmul.f32 %v5052, 1.442695
    %v5061 = vpow.pop %v5060
    %v5062 = vmul.f32 %v5053, 1.442695
    %v5063 = vpow.pop %v5062
    %v5064 = vmul.f32 %v5054, 1.442695
    %v5065 = vpow.pop %v5064
    %v5066 = vmul.f32 %v5055, 1.442695
    %v5067 = vpow.pop %v5066
    %v5068 = vmul.f32 %v5056, 1.442695
    %v5069 = vpow.pop %v5068
    %v5070 = vmul.f32 %v5057, 1.442695
    %v5071 = vpow.pop %v5070
    %v5072 = vmul.f32 %v5058, 1.442695
    %v5073 = vpow.pop %v5072
    %v5074 = vmul.f32 %v5059, 1.442695
    %v5075 = vpow.pop %v5074
    %v5076 = vadd.f32 %v5061, %v5063
    %v5077 = vadd.f32 %v5076, %v5065
    %v5078 = vadd.f32 %v5077, %v5067
    %v5079 = vadd.f32 %v5078, %v5069
    %v5080 = vadd.f32 %v5079, %v5071
    %v5081 = vadd.f32 %v5080, %v5073
    %v5082 = vadd.f32 %v5081, %v5075
    %v5083 = vmul.f32 %v3968, %v5061
    %v5084 = vmul.f32 %v3969, %v5061
    %v5085 = vmul.f32 %v3970, %v5061
    %v5086 = vmul.f32 %v3971, %v5061
    %v5087 = vmul.f32 %v3972, %v5063
    %v5088 = vmul.f32 %v3973, %v5063
    %v5089 = vmul.f32 %v3974, %v5063
    %v5090 = vmul.f32 %v3975, %v5063
    %v5091 = vmul.f32 %v3976, %v5065
    %v5092 = vmul.f32 %v3977, %v5065
    %v5093 = vmul.f32 %v3978, %v5065
    %v5094 = vmul.f32 %v3979, %v5065
    %v5095 = vmul.f32 %v3980, %v5067
    %v5096 = vmul.f32 %v3981, %v5067
    %v5097 = vmul.f32 %v3982, %v5067
    %v5098 = vmul.f32 %v3983, %v5067
    %v5099 = vmul.f32 %v3984, %v5069
    %v5100 = vmul.f32 %v3985, %v5069
    %v5101 = vmul.f32 %v3986, %v5069
    %v5102 = vmul.f32 %v3987, %v5069
    %v5103 = vmul.f32 %v3988, %v5071
    %v5104 = vmul.f32 %v3989, %v5071
    %v5105 = vmul.f32 %v3990, %v5071
    %v5106 = vmul.f32 %v3991, %v5071
    %v5107 = vmul.f32 %v3992, %v5073
    %v5108 = vmul.f32 %v3993, %v5073
    %v5109 = vmul.f32 %v3994, %v5073
    %v5110 = vmul.f32 %v3995, %v5073
    %v5111 = vmul.f32 %v3996, %v5075
    %v5112 = vmul.f32 %v3997, %v5075
    %v5113 = vmul.f32 %v3998, %v5075
    %v5114 = vmul.f32 %v3999, %v5075
    %v5115 = vadd.f32 %v5083, %v5087
    %v5116 = vadd.f32 %v5115, %v5091
    %v5117 = vadd.f32 %v5116, %v5095
    %v5118 = vadd.f32 %v5117, %v5099
    %v5119 = vadd.f32 %v5118, %v5103
    %v5120 = vadd.f32 %v5119, %v5107
    %v5121 = vadd.f32 %v5120, %v5111
    %v5122 = vadd.f32 %v5084, %v5088
    %v5123 = vadd.f32 %v5122, %v5092
    %v5124 = vadd.f32 %v5123, %v5096
    %v5125 = vadd.f32 %v5124, %v5100
    %v5126 = vadd.f32 %v5125, %v5104
    %v5127 = vadd.f32 %v5126, %v5108
    %v5128 = vadd.f32 %v5127, %v5112
    %v5129 = vadd.f32 %v5085, %v5089
    %v5130 = vadd.f32 %v5129, %v5093
    %v5131 = vadd.f32 %v5130, %v5097
    %v5132 = vadd.f32 %v5131, %v5101
    %v5133 = vadd.f32 %v5132, %v5105
    %v5134 = vadd.f32 %v5133, %v5109
    %v5135 = vadd.f32 %v5134, %v5113
    %v5136 = vadd.f32 %v5086, %v5090
    %v5137 = vadd.f32 %v5136, %v5094
    %v5138 = vadd.f32 %v5137, %v5098
    %v5139 = vadd.f32 %v5138, %v5102
    %v5140 = vadd.f32 %v5139, %v5106
    %v5141 = vadd.f32 %v5140, %v5110
    %v5142 = vadd.f32 %v5141, %v5114
    %v5143 = vrcp.pop %v5082
    %v5144 = vmul.f32 %v5121, %v5143
    %v5145 = vmul.f32 %v5128, %v5143
    %v5146 = vmul.f32 %v5135, %v5143
    %v5147 = vmul.f32 %v5142, %v5143
    %5149 = vset.pattern.permute.xlu0 0
    %5150 = vperm.xlu0 %5149, %v211
    %v5151 = vpop.permute.xlu0 %5150
    %5154 = vset.pattern.permute.xlu0 0
    %5155 = vperm.xlu0 %5154, %v212
    %v5156 = vpop.permute.xlu0 %5155
    %5159 = vset.pattern.permute.xlu0 0
    %5160 = vperm.xlu0 %5159, %v213
    %v5161 = vpop.permute.xlu0 %5160
    %5164 = vset.pattern.permute.xlu0 0
    %5165 = vperm.xlu0 %5164, %v214
    %v5166 = vpop.permute.xlu0 %5165
    %v5169 = vsel %vm222, %v59, 0
    %v5172 = vsel %vm222, %v60, 0
    %v5175 = vsel %vm222, %v61, 0
    %v5178 = vsel %vm222, %v62, 0
    %5180 = vmatprep.subr.mxu0 0.0
    %5181 = vmatpush1.msra.mxu0 %v5144
    %5182 = vmatprep.subr.mxu0 0.0
    %5183 = vmatpush1.msra.mxu0 %v5145
    %5184 = vmatprep.subr.mxu0 0.0
    %5185 = vmatpush1.msra.mxu0 %v5146
    %5186 = vmatprep.subr.mxu0 0.0
    %5187 = vmatpush1.msra.mxu0 %v5147
    %5188 = vmatprep.subr.mxu0 0.0
    %5189 = vmatpush1.msra.mxu0 0.0
    %5190 = vmatprep.subr.mxu0 0.0
    %5191 = vmatpush1.msra.mxu0 0.0
    %5192 = vmatprep.subr.mxu0 0.0
    %5193 = vmatpush1.msra.mxu0 0.0
    %5194 = vmatprep.subr.mxu0 0.0
    %5195 = vmatpush1.msra.mxu0 0.0
    %5196 = vmatprep.subr.mxu0 0.0
    %5197 = vmatpush1.msra.mxu0 0.0
    %5198 = vmatprep.subr.mxu0 0.0
    %5199 = vmatpush1.msra.mxu0 0.0
    %5200 = vmatprep.subr.mxu0 0.0
    %5201 = vmatpush1.msra.mxu0 0.0
    %5202 = vmatprep.subr.mxu0 0.0
    %5203 = vmatpush1.msra.mxu0 0.0
    %5204 = vmatprep.subr.mxu0 0.0
    %5205 = vmatpush1.msra.mxu0 0.0
    %5206 = vmatprep.subr.mxu0 0.0
    %5207 = vmatpush1.msra.mxu0 0.0
    %5208 = vmatprep.subr.mxu0 0.0
    %5209 = vmatpush1.msra.mxu0 0.0
    %5210 = vmatprep.subr.mxu0 0.0
    %5211 = vmatpush1.msra.mxu0 0.0
    %5212 = vmatprep.subr.mxu0 0.0
    %5213 = vmatpush1.msra.mxu0 0.0
    %5214 = vmatprep.subr.mxu0 0.0
    %5215 = vmatpush1.msra.mxu0 0.0
    %5216 = vmatprep.subr.mxu0 0.0
    %5217 = vmatpush1.msra.mxu0 0.0
    %5218 = vmatprep.subr.mxu0 0.0
    %5219 = vmatpush1.msra.mxu0 0.0
    %5220 = vmatprep.subr.mxu0 0.0
    %5221 = vmatpush1.msra.mxu0 0.0
    %5222 = vmatprep.subr.mxu0 0.0
    %5223 = vmatpush1.msra.mxu0 0.0
    %5224 = vmatprep.subr.mxu0 0.0
    %5225 = vmatpush1.msra.mxu0 0.0
    %5226 = vmatprep.subr.mxu0 0.0
    %5227 = vmatpush1.msra.mxu0 0.0
    %5228 = vmatprep.subr.mxu0 0.0
    %5229 = vmatpush1.msra.mxu0 0.0
    %5230 = vmatprep.subr.mxu0 0.0
    %5231 = vmatpush1.msra.mxu0 0.0
    %5232 = vmatprep.subr.mxu0 0.0
    %5233 = vmatpush1.msra.mxu0 0.0
    %5234 = vmatprep.subr.mxu0 0.0
    %5235 = vmatpush1.msra.mxu0 0.0
    %5236 = vmatprep.subr.mxu0 0.0
    %5237 = vmatpush1.msra.mxu0 0.0
    %5238 = vmatprep.subr.mxu0 0.0
    %5239 = vmatpush1.msra.mxu0 0.0
    %5240 = vmatprep.subr.mxu0 0.0
    %5241 = vmatpush1.msra.mxu0 0.0
    %5242 = vmatprep.subr.mxu0 0.0
    %5243 = vmatpush1.msra.mxu0 0.0
    %5244 = vmatprep.mubr.f32.mxu0 0.0
    %5245 = vmatmul.mubr.f32.gmra.mrb[0].mxu0 %v5169
    %v5246 = vpop.f32.mrb[0].mxu0
    %v5247 = vadd.f32 %v5151, %v5246
    %v5248 = vpop.f32.mrb[0].mxu0
    %5249 = vmatprep.mubr.f32.mxu0 0.0
    %5250 = vmatmul.mubr.f32.gmra.mrb[0].mxu0 %v5172
    %v5251 = vpop.f32.mrb[0].mxu0
    %v5252 = vadd.f32 %v5156, %v5251
    %v5253 = vpop.f32.mrb[0].mxu0
    %5254 = vmatprep.mubr.f32.mxu0 0.0
    %5255 = vmatmul.mubr.f32.gmra.mrb[0].mxu0 %v5175
    %v5256 = vpop.f32.mrb[0].mxu0
    %v5257 = vadd.f32 %v5161, %v5256
    %v5258 = vpop.f32.mrb[0].mxu0
    %5259 = vmatprep.mubr.f32.mxu0 0.0
    %5260 = vmatmul.mubr.f32.gmra.mrb[0].mxu0 %v5178
    %v5261 = vpop.f32.mrb[0].mxu0
    %v5262 = vadd.f32 %v5166, %v5261
    %v5263 = vpop.f32.mrb[0].mxu0
    %5264 = vdwg.mxu0
    %v5265 = vmax.f32 %v5247, 0.0
    %v5266 = vmax.f32 %v5252, 0.0
    %v5267 = vmax.f32 %v5257, 0.0
    %v5268 = vmax.f32 %v5262, 0.0
    %5270 = vset.pattern.permute.xlu0 0
    %5271 = vperm.xlu0 %5270, %v215
    %v5272 = vpop.permute.xlu0 %5271
    %5275 = vset.pattern.permute.xlu0 0
    %5276 = vperm.xlu0 %5275, %v216
    %v5277 = vpop.permute.xlu0 %5276
    %5280 = vset.pattern.permute.xlu0 0
    %5281 = vperm.xlu0 %5280, %v217
    %v5282 = vpop.permute.xlu0 %5281
    %5285 = vset.pattern.permute.xlu0 0
    %5286 = vperm.xlu0 %5285, %v218
    %v5287 = vpop.permute.xlu0 %5286
    %v5289 = vmul.f32 %v5265, %v5272
    %v5290 = vmul.f32 %v5266, %v5277
    %v5291 = vmul.f32 %v5267, %v5282
    %v5292 = vmul.f32 %v5268, %v5287
    %v5293 = vadd.f32 %v5289, %v5290
    %v5294 = vadd.f32 %v5293, %v5291
    %v5295 = vadd.f32 %v5294, %v5292
    %v5296 = vrot.slane %v5295, 4
    %v5297 = vadd.f32 %v5295, %v5296
    %v5298 = vrot.slane %v5297, 2
    %v5299 = vadd.f32 %v5297, %v5298
    %v5300 = vrot.slane %v5299, 1
    %v5301 = vadd.f32 %v5299, %v5300
    %5303 = vset.pattern.permute.xlu0 0
    %5304 = vperm.xlu0 %5303, %v219
    %v5305 = vpop.permute.xlu0 %5304
    %v5307 = vadd.f32 %v5301, %v5305
    %5308 = vst [vmem:[#allocation3] sm:$0x1] %v5307
    // Predicated region
    $region18: #{tpu_custom_call.1} parent=1 // pred_check
      _
    $region19: #{tpu_custom_call.1} parent=1 // pred_check_branch
      %5310 = sbr.rel (0) target = $region21
    $region20: #{tpu_custom_call.1} parent=1 // pred_region
      %s5312 = ssub.s32 16, 16
      %5313 = vsyncadd [#allocation4], %s5312
      %s5315 = sshll.u32 [#allocation3], 4
      %s5316 = int_to_ptr.vmem [resolvable:$true] %s5315
      %5318 = dma.vmem_to_hbm [thread:$0]  %s5316, 16, %s4, [#allocation4]
    $region21: #{tpu_custom_call.1} parent=1 // pred_fallthru
      _
    // Predicated region
    $region22: #{tpu_custom_call.1} parent=1 // pred_check
      _
    $region23: #{tpu_custom_call.1} parent=1 // pred_check_branch
      %5320 = sbr.rel (0) target = $region25
    $region24: #{tpu_custom_call.1} parent=1 // pred_region
      %5321 = dma.done [#allocation4], 16
    $region25: #{tpu_custom_call.1} parent=1 // pred_fallthru
      _
    %5322 = vsyncpa [#allocation4], 1

</llo_original>
